<compile_context>
chip_gen: v6e
topology: v6e:2x2x1
jax: 0.10.0
libtpu: 0.0.40
codegen_flags: <defaults>
</compile_context>

<pallas_src>
import functools

import jax
import jax.numpy as jnp
from jax.experimental import pallas as pl
from jax.experimental.pallas import tpu as pltpu

# Tile targets: sized for bf16 operands with double-buffering so they stay well
# under v7x's 64 MiB VMEM while remaining lane-dense (multiples of (8, 128)).
_TM, _TN, _TK = 256, 256, 512     # matmul tiles
_TQ, _TKV = 256, 256              # attention q / kv tiles
_CE_ROWS = 256                    # cross-entropy row tile
_VMEM_LIMIT = 48 * 1024 * 1024    # explicit scoped-VMEM budget (< 64 MiB v7x)
_NEG_INF = -1e30


def _pick_tile(dim, target, unit):
    """Largest multiple of `unit` that divides `dim` and is <= target, else `dim`."""
    if dim <= target:
        return dim
    t = (target // unit) * unit
    while t >= unit:
        if dim % t == 0:
            return t
        t -= unit
    return dim


# --------------------- K-tiled matmul (+ residual epilogue) ------------------ #

def _matmul_residual_kernel(a_ref, b_ref, r_ref, o_ref, acc_ref):
    @pl.when(pl.program_id(2) == 0)
    def _():
        acc_ref[...] = jnp.zeros_like(acc_ref)

    acc_ref[...] += jnp.dot(a_ref[...], b_ref[...],
                            preferred_element_type=jnp.float32)

    @pl.when(pl.program_id(2) == pl.num_programs(2) - 1)
    def _():
        o_ref[...] = (acc_ref[...] + r_ref[...].astype(jnp.float32)
                      ).astype(o_ref.dtype)


def pallas_matmul_residual(a, b, residual, *, out_dtype=jnp.bfloat16):
    """out = a @ b + residual.  a:(M,K), b:(K,N), residual:(M,N)."""
    M, K = a.shape
    K2, N = b.shape
    assert K == K2 and residual.shape == (M, N)
    tm = _pick_tile(M, _TM, 8)
    tn = _pick_tile(N, _TN, 128)
    tk = _pick_tile(K, _TK, 128)
    return pl.pallas_call(
        _matmul_residual_kernel,
        out_shape=jax.ShapeDtypeStruct((M, N), out_dtype),
        grid=(M // tm, N // tn, K // tk),
        in_specs=[pl.BlockSpec((tm, tk), lambda i, j, k: (i, k)),
                  pl.BlockSpec((tk, tn), lambda i, j, k: (k, j)),
                  pl.BlockSpec((tm, tn), lambda i, j, k: (i, j))],
        out_specs=pl.BlockSpec((tm, tn), lambda i, j, k: (i, j)),
        scratch_shapes=[pltpu.VMEM((tm, tn), jnp.float32)],
        compiler_params=pltpu.CompilerParams(
            dimension_semantics=("parallel", "parallel", "arbitrary"),
            vmem_limit_bytes=_VMEM_LIMIT),
    )(a.astype(jnp.bfloat16), b.astype(jnp.bfloat16),
      residual.astype(jnp.bfloat16))


# ------------------ RMSNorm fused into the consumer matmul ------------------- #

def _rmsnorm_matmul_kernel(x_ref, g_ref, w_ref, o_ref, *, eps, activation):
    # full-K row tile: the norm needs entire rows; norm math kept in f32 (v5e).
    x = x_ref[...].astype(jnp.float32)                          # (tm, K)
    var = jnp.mean(x * x, axis=-1, keepdims=True)
    h = x * jax.lax.rsqrt(var + eps) * g_ref[...].astype(jnp.float32)
    y = jnp.dot(h.astype(w_ref.dtype), w_ref[...],
                preferred_element_type=jnp.float32)             # bf16 MXU, f32 acc
    if activation == "gelu":
        y = jax.nn.gelu(y)
    o_ref[...] = y.astype(o_ref.dtype)


def pallas_rmsnorm_matmul(x, gamma, w, *, activation=None,
                          out_dtype=jnp.bfloat16, eps=1e-6):
    """out = act(rmsnorm(x) * gamma @ w).  x:(M,K), gamma:(K,), w:(K,N)."""
    M, K = x.shape
    K2, N = w.shape
    assert K == K2
    tm = _pick_tile(M, _TM, 8)
    tn = _pick_tile(N, _TN, 128)
    kern = functools.partial(_rmsnorm_matmul_kernel, eps=eps,
                             activation=activation)
    return pl.pallas_call(
        kern,
        out_shape=jax.ShapeDtypeStruct((M, N), out_dtype),
        grid=(M // tm, N // tn),
        in_specs=[pl.BlockSpec((tm, K), lambda i, j: (i, 0)),
                  pl.BlockSpec((1, K), lambda i, j: (0, 0)),
                  pl.BlockSpec((K, tn), lambda i, j: (0, j))],
        out_specs=pl.BlockSpec((tm, tn), lambda i, j: (i, j)),
        compiler_params=pltpu.CompilerParams(
            dimension_semantics=("parallel", "parallel"),
            vmem_limit_bytes=_VMEM_LIMIT),
    )(x.astype(jnp.bfloat16), gamma.reshape(1, K).astype(jnp.float32),
      w.astype(jnp.bfloat16))


# ------------------ flash attention with in-kernel masking ------------------- #

def _flash_attn_kernel(q_ref, k_ref, v_ref, kbias_ref, o_ref,
                       m_sc, l_sc, acc_sc, *, scale, tq, tkv):
    qi = pl.program_id(2)
    ki = pl.program_id(3)

    @pl.when(ki == 0)
    def _():
        m_sc[...] = jnp.full_like(m_sc, -jnp.inf)
        l_sc[...] = jnp.zeros_like(l_sc)
        acc_sc[...] = jnp.zeros_like(acc_sc)

    q = q_ref[0, 0]                                             # (tq, Dh) bf16
    k = k_ref[0, 0]                                             # (tkv, Dh) bf16
    v = v_ref[0, 0]                                             # (tkv, Dh) bf16

    # q @ k^T in bf16 on the MXU, f32 accumulation.
    s = jax.lax.dot_general(q, k, (((1,), (1,)), ((), ())),
                            preferred_element_type=jnp.float32) * scale
    s = s + kbias_ref[0]                                        # key-padding bias

    # causal mask built in-kernel from iotas (no (B,S,S) bias in HBM)
    row = qi * tq + jax.lax.broadcasted_iota(jnp.int32, (tq, tkv), 0)
    col = ki * tkv + jax.lax.broadcasted_iota(jnp.int32, (tq, tkv), 1)
    s = jnp.where(row >= col, s, _NEG_INF)

    m_prev = m_sc[...]
    m_new = jnp.maximum(m_prev, jnp.max(s, axis=-1, keepdims=True))
    alpha = jnp.exp(m_prev - m_new)
    p = jnp.exp(s - m_new)
    l_sc[...] = alpha * l_sc[...] + jnp.sum(p, axis=-1, keepdims=True)
    acc_sc[...] = alpha * acc_sc[...] + jax.lax.dot_general(
        p.astype(v.dtype), v, (((1,), (0,)), ((), ())),
        preferred_element_type=jnp.float32)
    m_sc[...] = m_new

    @pl.when(ki == pl.num_programs(3) - 1)
    def _():
        o_ref[0, 0] = (acc_sc[...] * pl.reciprocal(l_sc[...], approx=True)
                       ).astype(o_ref.dtype)


def pallas_flash_attention(q, k, v, key_bias):
    """q,k,v: (B,H,S,Dh) bf16; key_bias: (B,1,S) f32 additive -> (B,H,S,Dh)."""
    B, H, S, Dh = q.shape
    tq = _pick_tile(S, _TQ, 8)
    tkv = _pick_tile(S, _TKV, 128)   # also the lane dim of the key-bias block
    kern = functools.partial(_flash_attn_kernel, scale=1.0 / (Dh ** 0.5),
                             tq=tq, tkv=tkv)
    q_spec = pl.BlockSpec((1, 1, tq, Dh), lambda b, h, qi, ki: (b, h, qi, 0))
    kv_spec = pl.BlockSpec((1, 1, tkv, Dh), lambda b, h, qi, ki: (b, h, ki, 0))
    kb_spec = pl.BlockSpec((1, 1, tkv), lambda b, h, qi, ki: (b, 0, ki))
    return pl.pallas_call(
        kern,
        out_shape=jax.ShapeDtypeStruct((B, H, S, Dh), jnp.bfloat16),
        grid=(B, H, S // tq, S // tkv),
        in_specs=[q_spec, kv_spec, kv_spec, kb_spec],
        out_specs=pl.BlockSpec((1, 1, tq, Dh), lambda b, h, qi, ki: (b, h, qi, 0)),
        scratch_shapes=[pltpu.VMEM((tq, 1), jnp.float32),
                        pltpu.VMEM((tq, 1), jnp.float32),
                        pltpu.VMEM((tq, Dh), jnp.float32)],
        compiler_params=pltpu.CompilerParams(
            dimension_semantics=("parallel", "parallel", "parallel", "arbitrary"),
            vmem_limit_bytes=_VMEM_LIMIT),
    )(q, k, v, key_bias)


# ----------------------- tiled gather-free cross-entropy --------------------- #

def _ce_kernel(logits_ref, labels_ref, sum_ref, cnt_ref):
    @pl.when(pl.program_id(0) == 0)
    def _():
        sum_ref[...] = jnp.zeros_like(sum_ref)
        cnt_ref[...] = jnp.zeros_like(cnt_ref)

    x = logits_ref[...].astype(jnp.float32)                     # (tr, V)
    lbl = labels_ref[...]                                       # (tr, 1) int32
    m = jnp.max(x, axis=-1, keepdims=True)
    lse = jnp.log(jnp.sum(jnp.exp(x - m), axis=-1, keepdims=True)) + m
    col = jax.lax.broadcasted_iota(jnp.int32, x.shape, 1)
    tgt = jnp.sum(jnp.where(col == lbl, x, 0.0), axis=-1, keepdims=True)
    valid = (lbl != -100).astype(jnp.float32)                   # (tr, 1)
    nll = (lse - tgt) * valid
    sum_ref[...] += jnp.sum(nll, axis=0, keepdims=True)
    cnt_ref[...] += jnp.sum(valid, axis=0, keepdims=True)


def pallas_cross_entropy(logits, labels):
    """Mean NLL over labels != -100.  logits: (N,V) f32, labels: (N,1) int32."""
    # TODO(synk): tile V with an online logsumexp for very large vocabularies.
    N, V = logits.shape
    tr = _pick_tile(N, _CE_ROWS, 8)
    s, c = pl.pallas_call(
        _ce_kernel,
        out_shape=(jax.ShapeDtypeStruct((1, 1), jnp.float32),
                   jax.ShapeDtypeStruct((1, 1), jnp.float32)),
        grid=(N // tr,),
        in_specs=[pl.BlockSpec((tr, V), lambda i: (i, 0)),
                  pl.BlockSpec((tr, 1), lambda i: (i, 0))],
        out_specs=(pl.BlockSpec((1, 1), lambda i: (0, 0)),
                   pl.BlockSpec((1, 1), lambda i: (0, 0))),
        compiler_params=pltpu.CompilerParams(
            dimension_semantics=("arbitrary",),
            vmem_limit_bytes=_VMEM_LIMIT),
    )(logits, labels)
    # guard: loss is 0 (not NaN) when every label is -100
    return s[0, 0] / jnp.maximum(c[0, 0], 1.0)


# ------------------------- parameters & forward pass ------------------------ #

def init_params(key, *, vocab, hidden, n_layers, ffn, dtype=jnp.bfloat16):
    keys = jax.random.split(key, 2 + n_layers)

    def dense(k, shape):
        return (0.02 * jax.random.normal(k, shape, jnp.float32)).astype(dtype)

    params = {
        "embed_tokens": 0.02 * jax.random.normal(keys[0], (vocab, hidden),
                                                 jnp.float32),
        "lm_head": dense(keys[1], (hidden, vocab)),
        "final_norm": jnp.ones((hidden,), jnp.float32),
        "layers": [],
    }
    for l in range(n_layers):
        lk = jax.random.split(keys[2 + l], 6)
        wq = dense(lk[0], (hidden, hidden))
        wk = dense(lk[1], (hidden, hidden))
        wv = dense(lk[2], (hidden, hidden))
        params["layers"].append({
            "ln1": jnp.ones((hidden,), jnp.float32),
            "ln2": jnp.ones((hidden,), jnp.float32),
            "wqkv": jnp.concatenate([wq, wk, wv], axis=1),    # fused QKV (D, 3D)
            "wo": dense(lk[3], (hidden, hidden)),
            "w_up": dense(lk[4], (hidden, ffn)),
            "w_down": dense(lk[5], (ffn, hidden)),
        })
    return params


def embed_input_ids(params, input_ids):
    # mirrors InvDecoder.embed_input_ids (gather left to XLA)
    return jnp.take(params["embed_tokens"], input_ids, axis=0)


def inv_decoder_forward(params, input_embeds, attention_mask, labels, *, n_heads):
    B, S, D = input_embeds.shape
    Dh = D // n_heads
    V = params["lm_head"].shape[1]

    # Per-key additive padding bias (B,1,S); the causal part is built in-kernel,
    # so no (B,S,S) bias is ever materialized in HBM.
    key_bias = jnp.where(attention_mask.astype(jnp.bool_), 0.0, _NEG_INF)
    key_bias = key_bias.astype(jnp.float32).reshape(B, 1, S)

    x = input_embeds.reshape(B * S, D).astype(jnp.bfloat16)
    for layer in params["layers"]:
        # RMSNorm fused into the fused-QKV projection: one pass over x, one matmul
        qkv = pallas_rmsnorm_matmul(x, layer["ln1"], layer["wqkv"])   # (B*S, 3D)
        qkv = qkv.reshape(B, S, 3, n_heads, Dh)
        # TODO(synk): head split/merge transposes stay in XLA; a head-batched
        # in-kernel dot_general would remove these copies entirely.
        q = qkv[:, :, 0].transpose(0, 2, 1, 3)                        # (B,H,S,Dh)
        k = qkv[:, :, 1].transpose(0, 2, 1, 3)
        v = qkv[:, :, 2].transpose(0, 2, 1, 3)
        attn = pallas_flash_attention(q, k, v, key_bias)              # (B,H,S,Dh)
        attn = attn.transpose(0, 2, 1, 3).reshape(B * S, D)
        x = pallas_matmul_residual(attn, layer["wo"], x)              # +residual
        up = pallas_rmsnorm_matmul(x, layer["ln2"], layer["w_up"],
                                   activation="gelu")                 # fused GELU
        x = pallas_matmul_residual(up, layer["w_down"], x)            # +residual

    logits = pallas_rmsnorm_matmul(x, params["final_norm"], params["lm_head"],
                                   out_dtype=jnp.float32).reshape(B, S, V)

    # HF causal-LM loss: shift, ignore label == -100, mean over valid tokens.
    shift_logits = logits[:, :-1, :].reshape(-1, V)
    shift_labels = labels[:, 1:].reshape(-1, 1).astype(jnp.int32)
    loss = pallas_cross_entropy(shift_logits, shift_labels)
    return {"loss": loss, "logits": logits}


# ------------------------------------ main ---------------------------------- #

if __name__ == "__main__":
    B, S, D, H, L, V, FFN = 2, 16, 128, 4, 2, 256, 256

    key = jax.random.PRNGKey(0)
    kp, ki = jax.random.split(key, 2)
    params = init_params(kp, vocab=V, hidden=D, n_layers=L, ffn=FFN)

    input_ids = jax.random.randint(ki, (B, S), 0, V, dtype=jnp.int32)
    input_embeds = embed_input_ids(params, input_ids)                # (B, S, D)
    attention_mask = jnp.ones((B, S), jnp.int32).at[1, S - 3:].set(0)
    labels = jnp.where(attention_mask == 1, input_ids, -100).astype(jnp.int32)

    fwd = jax.jit(functools.partial(inv_decoder_forward, n_heads=H))
    out = fwd(params, input_embeds, attention_mask, labels)
    jax.block_until_ready(out["loss"])
    jax.block_until_ready(out["logits"])

    assert out["logits"].shape == (B, S, V)
    assert bool(jnp.isfinite(out["loss"]))
    print("KERNEL_OK")
</pallas_src>

<mosaic_0001>
module attributes {stable_mosaic.version = 11 : i64} {
  func.func @_rmsnorm_matmul_kernel(%arg0: i32, %arg1: i32, %arg2: memref<32x128xbf16, #tpu.memory_space<vmem>>, %arg3: memref<1x128xf32, #tpu.memory_space<vmem>>, %arg4: memref<128x128xbf16, #tpu.memory_space<vmem>>, %arg5: memref<32x128xbf16, #tpu.memory_space<vmem>>) attributes {dimension_semantics = [#tpu.dimension_semantics<parallel>, #tpu.dimension_semantics<parallel>], iteration_bounds = array<i64: 1, 3>, scalar_prefetch = 0 : i64, scratch_operands = 0 : i64, tpu.core_type = #tpu.core_type<tc>, window_params = [{transform_indices = @transform_0, window_bounds = array<i64: 32, 128>}, {pipeline_mode = #tpu.pipeline_mode<synchronous>, transform_indices = @transform_1, window_bounds = array<i64: 1, 128>}, {transform_indices = @transform_2, window_bounds = array<i64: 128, 128>}, {transform_indices = @transform_3, window_bounds = array<i64: 32, 128>}]} {
    %c0 = arith.constant 0 : index
    %c0_0 = arith.constant 0 : index
    %0 = vector.load %arg2[%c0, %c0_0] : memref<32x128xbf16, #tpu.memory_space<vmem>>, vector<32x128xbf16>
    %1 = arith.extf %0 : vector<32x128xbf16> to vector<32x128xf32>
    %2 = arith.mulf %1, %1 : vector<32x128xf32>
    %cst = arith.constant dense<0.000000e+00> : vector<32xf32>
    %3 = vector.multi_reduction <add>, %2, %cst [1] : vector<32x128xf32> to vector<32xf32>
    %4 = vector.shape_cast %3 : vector<32xf32> to vector<32x1xf32>
    %cst_1 = arith.constant 1.280000e+02 : f32
    %5 = vector.broadcast %cst_1 : f32 to vector<32x1xf32>
    %6 = arith.divf %4, %5 : vector<32x1xf32>
    %cst_2 = arith.constant 9.99999997E-7 : f32
    %7 = vector.broadcast %cst_2 : f32 to vector<32x1xf32>
    %8 = arith.addf %6, %7 : vector<32x1xf32>
    %9 = math.rsqrt %8 : vector<32x1xf32>
    %10 = vector.broadcast %9 : vector<32x1xf32> to vector<32x128xf32>
    %11 = arith.mulf %1, %10 : vector<32x128xf32>
    %c0_3 = arith.constant 0 : index
    %c0_4 = arith.constant 0 : index
    %12 = vector.load %arg3[%c0_3, %c0_4] : memref<1x128xf32, #tpu.memory_space<vmem>>, vector<1x128xf32>
    %13 = vector.broadcast %12 : vector<1x128xf32> to vector<32x128xf32>
    %14 = arith.mulf %11, %13 : vector<32x128xf32>
    %15 = arith.truncf %14 : vector<32x128xf32> to vector<32x128xbf16>
    %c0_5 = arith.constant 0 : index
    %c0_6 = arith.constant 0 : index
    %16 = vector.load %arg4[%c0_5, %c0_6] : memref<128x128xbf16, #tpu.memory_space<vmem>>, vector<128x128xbf16>
    %cst_7 = arith.constant dense<0.000000e+00> : vector<32x128xf32>
    %17 = tpu.matmul %15, %16, %cst_7 {dimension_numbers = #tpu.dot_dimension_numbers<[1], [0], [0], [1], [0, 0, 1, 1], [], []>} : vector<32x128xbf16>, vector<128x128xbf16>, vector<32x128xf32> -> vector<32x128xf32>
    %18 = arith.truncf %17 : vector<32x128xf32> to vector<32x128xbf16>
    %c0_8 = arith.constant 0 : index
    %c0_9 = arith.constant 0 : index
    %19 = vector.load %arg5[%c0_8, %c0_9] : memref<32x128xbf16, #tpu.memory_space<vmem>>, vector<32x128xbf16>
    tpu.vector_store %arg5[%c0_8, %c0_9], %18 {strides = array<i32>} : memref<32x128xbf16, #tpu.memory_space<vmem>>, vector<32x128xbf16>,
    return
  }
  func.func @transform_0(%arg0: i32, %arg1: i32) -> (i32, i32) {
    %c0_i32 = arith.constant 0 : i32
    %c0_i32_0 = arith.constant 0 : i32
    return %arg0, %c0_i32 : i32, i32
  }
  func.func @transform_1(%arg0: i32, %arg1: i32) -> (i32, i32) {
    %c0_i32 = arith.constant 0 : i32
    %c0_i32_0 = arith.constant 0 : i32
    %c0_i32_1 = arith.constant 0 : i32
    return %c0_i32, %c0_i32_0 : i32, i32
  }
  func.func @transform_2(%arg0: i32, %arg1: i32) -> (i32, i32) {
    %c0_i32 = arith.constant 0 : i32
    %c0_i32_0 = arith.constant 0 : i32
    return %c0_i32, %arg1 : i32, i32
  }
  func.func @transform_3(%arg0: i32, %arg1: i32) -> (i32, i32) {
    %c0_i32 = arith.constant 0 : i32
    return %arg0, %arg1 : i32, i32
  }
}

module attributes {stable_mosaic.version = 11 : i64} {
  func.func @_flash_attn_kernel(%arg0: i32, %arg1: i32, %arg2: i32, %arg3: i32, %arg4: memref<1x1x16x32xbf16, #tpu.memory_space<vmem>>, %arg5: memref<1x1x16x32xbf16, #tpu.memory_space<vmem>>, %arg6: memref<1x1x16x32xbf16, #tpu.memory_space<vmem>>, %arg7: memref<1x1x16xf32, #tpu.memory_space<vmem>>, %arg8: memref<1x1x16x32xbf16, #tpu.memory_space<vmem>>, %arg9: memref<16x1xf32, #tpu.memory_space<vmem>>, %arg10: memref<16x1xf32, #tpu.memory_space<vmem>>, %arg11: memref<16x32xf32, #tpu.memory_space<vmem>>) attributes {dimension_semantics = [#tpu.dimension_semantics<parallel>, #tpu.dimension_semantics<parallel>, #tpu.dimension_semantics<parallel>, #tpu.dimension_semantics<arbitrary>], iteration_bounds = array<i64: 2, 4, 1, 1>, scalar_prefetch = 0 : i64, scratch_operands = 3 : i64, tpu.core_type = #tpu.core_type<tc>, window_params = [{transform_indices = @transform_0, window_bounds = array<i64: 1, 1, 16, 32>}, {transform_indices = @transform_1, window_bounds = array<i64: 1, 1, 16, 32>}, {transform_indices = @transform_2, window_bounds = array<i64: 1, 1, 16, 32>}, {transform_indices = @transform_3, window_bounds = array<i64: 1, 1, 16>}, {transform_indices = @transform_4, window_bounds = array<i64: 1, 1, 16, 32>}]} {
    %c0_i32 = arith.constant 0 : i32
    %0 = arith.cmpi eq, %arg3, %c0_i32 : i32
    %1 = arith.extui %0 : i1 to i32
    %c0_i32_0 = arith.constant 0 : i32
    %2 = arith.cmpi ne, %1, %c0_i32_0 : i32
    scf.if %2 {
      %cst_35 = arith.constant 0xFF800000 : f32
      %53 = vector.broadcast %cst_35 : f32 to vector<16x1xf32>
      %c0_36 = arith.constant 0 : index
      %c0_37 = arith.constant 0 : index
      %54 = vector.load %arg9[%c0_36, %c0_37] : memref<16x1xf32, #tpu.memory_space<vmem>>, vector<16x1xf32>
      tpu.vector_store %arg9[%c0_36, %c0_37], %53 {strides = array<i32>} : memref<16x1xf32, #tpu.memory_space<vmem>>, vector<16x1xf32>,
      %cst_38 = arith.constant 0.000000e+00 : f32
      %55 = vector.broadcast %cst_38 : f32 to vector<16x1xf32>
      %c0_39 = arith.constant 0 : index
      %c0_40 = arith.constant 0 : index
      %56 = vector.load %arg10[%c0_39, %c0_40] : memref<16x1xf32, #tpu.memory_space<vmem>>, vector<16x1xf32>
      tpu.vector_store %arg10[%c0_39, %c0_40], %55 {strides = array<i32>} : memref<16x1xf32, #tpu.memory_space<vmem>>, vector<16x1xf32>,
      %cst_41 = arith.constant 0.000000e+00 : f32
      %57 = vector.broadcast %cst_41 : f32 to vector<16x32xf32>
      %c0_42 = arith.constant 0 : index
      %c0_43 = arith.constant 0 : index
      %58 = vector.load %arg11[%c0_42, %c0_43] : memref<16x32xf32, #tpu.memory_space<vmem>>, vector<16x32xf32>
      tpu.vector_store %arg11[%c0_42, %c0_43], %57 {strides = array<i32>} : memref<16x32xf32, #tpu.memory_space<vmem>>, vector<16x32xf32>,
    } else {
    }
    %c0 = arith.constant 0 : index
    %c0_1 = arith.constant 0 : index
    %c0_2 = arith.constant 0 : index
    %c0_3 = arith.constant 0 : index
    %3 = vector.load %arg4[%c0, %c0_1, %c0_2, %c0_3] : memref<1x1x16x32xbf16, #tpu.memory_space<vmem>>, vector<1x1x16x32xbf16>
    %4 = vector.shape_cast %3 : vector<1x1x16x32xbf16> to vector<16x32xbf16>
    %c0_4 = arith.constant 0 : index
    %c0_5 = arith.constant 0 : index
    %c0_6 = arith.constant 0 : index
    %c0_7 = arith.constant 0 : index
    %5 = vector.load %arg5[%c0_4, %c0_5, %c0_6, %c0_7] : memref<1x1x16x32xbf16, #tpu.memory_space<vmem>>, vector<1x1x16x32xbf16>
    %6 = vector.shape_cast %5 : vector<1x1x16x32xbf16> to vector<16x32xbf16>
    %c0_8 = arith.constant 0 : index
    %c0_9 = arith.constant 0 : index
    %c0_10 = arith.constant 0 : index
    %c0_11 = arith.constant 0 : index
    %7 = vector.load %arg6[%c0_8, %c0_9, %c0_10, %c0_11] : memref<1x1x16x32xbf16, #tpu.memory_space<vmem>>, vector<1x1x16x32xbf16>
    %8 = vector.shape_cast %7 : vector<1x1x16x32xbf16> to vector<16x32xbf16>
    %cst = arith.constant dense<0.000000e+00> : vector<16x16xf32>
    %9 = tpu.matmul %4, %6, %cst {dimension_numbers = #tpu.dot_dimension_numbers<[1], [1], [0], [0], [0, 0, 1, 0], [], []>} : vector<16x32xbf16>, vector<16x32xbf16>, vector<16x16xf32> -> vector<16x16xf32>
    %cst_12 = arith.constant 0.176776692 : f32
    %10 = vector.broadcast %cst_12 : f32 to vector<16x16xf32>
    %11 = arith.mulf %9, %10 : vector<16x16xf32>
    %c0_13 = arith.constant 0 : index
    %c0_14 = arith.constant 0 : index
    %c0_15 = arith.constant 0 : index
    %12 = vector.load %arg7[%c0_13, %c0_14, %c0_15] : memref<1x1x16xf32, #tpu.memory_space<vmem>>, vector<1x1x16xf32>
    %13 = vector.shape_cast %12 : vector<1x1x16xf32> to vector<1x16xf32>
    %14 = vector.broadcast %13 : vector<1x16xf32> to vector<16x16xf32>
    %15 = arith.addf %11, %14 : vector<16x16xf32>
    %c16_i32 = arith.constant 16 : i32
    %16 = arith.muli %arg2, %c16_i32 : i32
    %17 = tpu.iota {dimensions = array<i32: 0>} : vector<16x16xi32>
    %18 = vector.broadcast %16 : i32 to vector<16x16xi32>
    %19 = arith.addi %18, %17 : vector<16x16xi32>
    %c16_i32_16 = arith.constant 16 : i32
    %20 = arith.muli %arg3, %c16_i32_16 : i32
    %21 = tpu.iota {dimensions = array<i32: 1>} : vector<16x16xi32>
    %22 = vector.broadcast %20 : i32 to vector<16x16xi32>
    %23 = arith.addi %22, %21 : vector<16x16xi32>
    %24 = arith.cmpi sge, %19, %23 : vector<16x16xi32>
    %cst_17 = arith.constant -1.000000e+30 : f32
    %25 = vector.broadcast %cst_17 : f32 to vector<16x16xf32>
    %26 = arith.select %24, %15, %25 : vector<16x16xi1>, vector<16x16xf32>
    %c0_18 = arith.constant 0 : index
    %c0_19 = arith.constant 0 : index
    %27 = vector.load %arg9[%c0_18, %c0_19] : memref<16x1xf32, #tpu.memory_space<vmem>>, vector<16x1xf32>
    %cst_20 = arith.constant dense<0xFF800000> : vector<16xf32>
    %28 = vector.multi_reduction <maximumf>, %26, %cst_20 [1] : vector<16x16xf32> to vector<16xf32>
    %29 = vector.shape_cast %28 : vector<16xf32> to vector<16x1xf32>
    %30 = arith.maximumf %27, %29 : vector<16x1xf32>
    %31 = arith.subf %27, %30 : vector<16x1xf32>
    %32 = math.exp %31 : vector<16x1xf32>
    %33 = vector.broadcast %30 : vector<16x1xf32> to vector<16x16xf32>
    %34 = arith.subf %26, %33 : vector<16x16xf32>
    %35 = math.exp %34 : vector<16x16xf32>
    %c0_21 = arith.constant 0 : index
    %c0_22 = arith.constant 0 : index
    %36 = vector.load %arg10[%c0_21, %c0_22] : memref<16x1xf32, #tpu.memory_space<vmem>>, vector<16x1xf32>
    %37 = arith.mulf %32, %36 : vector<16x1xf32>
    %cst_23 = arith.constant dense<0.000000e+00> : vector<16xf32>
    %38 = vector.multi_reduction <add>, %35, %cst_23 [1] : vector<16x16xf32> to vector<16xf32>
    %39 = vector.shape_cast %38 : vector<16xf32> to vector<16x1xf32>
    %40 = arith.addf %37, %39 : vector<16x1xf32>
    %c0_24 = arith.constant 0 : index
    %c0_25 = arith.constant 0 : index
    %41 = vector.load %arg10[%c0_24, %c0_25] : memref<16x1xf32, #tpu.memory_space<vmem>>, vector<16x1xf32>
    tpu.vector_store %arg10[%c0_24, %c0_25], %40 {strides = array<i32>} : memref<16x1xf32, #tpu.memory_space<vmem>>, vector<16x1xf32>,
    %c0_26 = arith.constant 0 : index
    %c0_27 = arith.constant 0 : index
    %42 = vector.load %arg11[%c0_26, %c0_27] : memref<16x32xf32, #tpu.memory_space<vmem>>, vector<16x32xf32>
    %43 = vector.broadcast %32 : vector<16x1xf32> to vector<16x32xf32>
    %44 = arith.mulf %43, %42 : vector<16x32xf32>
    %45 = arith.truncf %35 : vector<16x16xf32> to vector<16x16xbf16>
    %cst_28 = arith.constant dense<0.000000e+00> : vector<16x32xf32>
    %46 = tpu.matmul %45, %8, %cst_28 {dimension_numbers = #tpu.dot_dimension_numbers<[1], [0], [0], [1], [0, 0, 1, 1], [], []>} : vector<16x16xbf16>, vector<16x32xbf16>, vector<16x32xf32> -> vector<16x32xf32>
    %47 = arith.addf %44, %46 : vector<16x32xf32>
    %c0_29 = arith.constant 0 : index
    %c0_30 = arith.constant 0 : index
    %48 = vector.load %arg11[%c0_29, %c0_30] : memref<16x32xf32, #tpu.memory_space<vmem>>, vector<16x32xf32>
    tpu.vector_store %arg11[%c0_29, %c0_30], %47 {strides = array<i32>} : memref<16x32xf32, #tpu.memory_space<vmem>>, vector<16x32xf32>,
    %c0_31 = arith.constant 0 : index
    %c0_32 = arith.constant 0 : index
    %49 = vector.load %arg9[%c0_31, %c0_32] : memref<16x1xf32, #tpu.memory_space<vmem>>, vector<16x1xf32>
    tpu.vector_store %arg9[%c0_31, %c0_32], %30 {strides = array<i32>} : memref<16x1xf32, #tpu.memory_space<vmem>>, vector<16x1xf32>,
    %c0_i32_33 = arith.constant 0 : i32
    %50 = arith.cmpi eq, %arg3, %c0_i32_33 : i32
    %51 = arith.extui %50 : i1 to i32
    %c0_i32_34 = arith.constant 0 : i32
    %52 = arith.cmpi ne, %51, %c0_i32_34 : i32
    scf.if %52 {
      %c0_35 = arith.constant 0 : index
      %c0_36 = arith.constant 0 : index
      %53 = vector.load %arg11[%c0_35, %c0_36] : memref<16x32xf32, #tpu.memory_space<vmem>>, vector<16x32xf32>
      %c0_37 = arith.constant 0 : index
      %c0_38 = arith.constant 0 : index
      %54 = vector.load %arg10[%c0_37, %c0_38] : memref<16x1xf32, #tpu.memory_space<vmem>>, vector<16x1xf32>
      %55 = tpu.reciprocal %54 {approx = true} : vector<16x1xf32> -> vector<16x1xf32>
      %56 = vector.broadcast %55 : vector<16x1xf32> to vector<16x32xf32>
      %57 = arith.mulf %53, %56 : vector<16x32xf32>
      %58 = arith.truncf %57 : vector<16x32xf32> to vector<16x32xbf16>
      %c0_39 = arith.constant 0 : index
      %c0_40 = arith.constant 0 : index
      %c0_41 = arith.constant 0 : index
      %c0_42 = arith.constant 0 : index
      %59 = vector.load %arg8[%c0_39, %c0_40, %c0_41, %c0_42] : memref<1x1x16x32xbf16, #tpu.memory_space<vmem>>, vector<1x1x16x32xbf16>
      %60 = vector.shape_cast %59 : vector<1x1x16x32xbf16> to vector<16x32xbf16>
      %61 = vector.shape_cast %58 : vector<16x32xbf16> to vector<1x1x16x32xbf16>
      tpu.vector_store %arg8[%c0_39, %c0_40, %c0_41, %c0_42], %61 {strides = array<i32>} : memref<1x1x16x32xbf16, #tpu.memory_space<vmem>>, vector<1x1x16x32xbf16>,
    } else {
    }
    return
  }
  func.func @transform_0(%arg0: i32, %arg1: i32, %arg2: i32, %arg3: i32) -> (i32, i32, i32, i32) {
    %c0_i32 = arith.constant 0 : i32
    %c0_i32_0 = arith.constant 0 : i32
    return %arg0, %arg1, %arg2, %c0_i32 : i32, i32, i32, i32
  }
  func.func @transform_1(%arg0: i32, %arg1: i32, %arg2: i32, %arg3: i32) -> (i32, i32, i32, i32) {
    %c0_i32 = arith.constant 0 : i32
    %c0_i32_0 = arith.constant 0 : i32
    return %arg0, %arg1, %arg3, %c0_i32 : i32, i32, i32, i32
  }
  func.func @transform_2(%arg0: i32, %arg1: i32, %arg2: i32, %arg3: i32) -> (i32, i32, i32, i32) {
    %c0_i32 = arith.constant 0 : i32
    %c0_i32_0 = arith.constant 0 : i32
    return %arg0, %arg1, %arg3, %c0_i32 : i32, i32, i32, i32
  }
  func.func @transform_3(%arg0: i32, %arg1: i32, %arg2: i32, %arg3: i32) -> (i32, i32, i32) {
    %c0_i32 = arith.constant 0 : i32
    %c0_i32_0 = arith.constant 0 : i32
    return %arg0, %c0_i32, %arg3 : i32, i32, i32
  }
  func.func @transform_4(%arg0: i32, %arg1: i32, %arg2: i32, %arg3: i32) -> (i32, i32, i32, i32) {
    %c0_i32 = arith.constant 0 : i32
    %c0_i32_0 = arith.constant 0 : i32
    return %arg0, %arg1, %arg2, %c0_i32 : i32, i32, i32, i32
  }
}

module attributes {stable_mosaic.version = 11 : i64} {
  func.func @_matmul_residual_kernel(%arg0: i32, %arg1: i32, %arg2: i32, %arg3: memref<32x128xbf16, #tpu.memory_space<vmem>>, %arg4: memref<128x128xbf16, #tpu.memory_space<vmem>>, %arg5: memref<32x128xbf16, #tpu.memory_space<vmem>>, %arg6: memref<32x128xbf16, #tpu.memory_space<vmem>>, %arg7: memref<32x128xf32, #tpu.memory_space<vmem>>) attributes {dimension_semantics = [#tpu.dimension_semantics<parallel>, #tpu.dimension_semantics<parallel>, #tpu.dimension_semantics<arbitrary>], iteration_bounds = array<i64: 1, 1, 1>, scalar_prefetch = 0 : i64, scratch_operands = 1 : i64, tpu.core_type = #tpu.core_type<tc>, window_params = [{transform_indices = @transform_0, window_bounds = array<i64: 32, 128>}, {transform_indices = @transform_1, window_bounds = array<i64: 128, 128>}, {transform_indices = @transform_2, window_bounds = array<i64: 32, 128>}, {transform_indices = @transform_3, window_bounds = array<i64: 32, 128>}]} {
    %c0_i32 = arith.constant 0 : i32
    %0 = arith.cmpi eq, %arg2, %c0_i32 : i32
    %1 = arith.extui %0 : i1 to i32
    %c0_i32_0 = arith.constant 0 : i32
    %2 = arith.cmpi ne, %1, %c0_i32_0 : i32
    scf.if %2 {
      %cst_10 = arith.constant 0.000000e+00 : f32
      %12 = vector.broadcast %cst_10 : f32 to vector<32x128xf32>
      %c0_11 = arith.constant 0 : index
      %c0_12 = arith.constant 0 : index
      %13 = vector.load %arg7[%c0_11, %c0_12] : memref<32x128xf32, #tpu.memory_space<vmem>>, vector<32x128xf32>
      tpu.vector_store %arg7[%c0_11, %c0_12], %12 {strides = array<i32>} : memref<32x128xf32, #tpu.memory_space<vmem>>, vector<32x128xf32>,
    } else {
    }
    %c0 = arith.constant 0 : index
    %c0_1 = arith.constant 0 : index
    %3 = vector.load %arg7[%c0, %c0_1] : memref<32x128xf32, #tpu.memory_space<vmem>>, vector<32x128xf32>
    %c0_2 = arith.constant 0 : index
    %c0_3 = arith.constant 0 : index
    %4 = vector.load %arg3[%c0_2, %c0_3] : memref<32x128xbf16, #tpu.memory_space<vmem>>, vector<32x128xbf16>
    %c0_4 = arith.constant 0 : index
    %c0_5 = arith.constant 0 : index
    %5 = vector.load %arg4[%c0_4, %c0_5] : memref<128x128xbf16, #tpu.memory_space<vmem>>, vector<128x128xbf16>
    %cst = arith.constant dense<0.000000e+00> : vector<32x128xf32>
    %6 = tpu.matmul %4, %5, %cst {dimension_numbers = #tpu.dot_dimension_numbers<[1], [0], [0], [1], [0, 0, 1, 1], [], []>} : vector<32x128xbf16>, vector<128x128xbf16>, vector<32x128xf32> -> vector<32x128xf32>
    %7 = arith.addf %3, %6 : vector<32x128xf32>
    %c0_6 = arith.constant 0 : index
    %c0_7 = arith.constant 0 : index
    %8 = vector.load %arg7[%c0_6, %c0_7] : memref<32x128xf32, #tpu.memory_space<vmem>>, vector<32x128xf32>
    tpu.vector_store %arg7[%c0_6, %c0_7], %7 {strides = array<i32>} : memref<32x128xf32, #tpu.memory_space<vmem>>, vector<32x128xf32>,
    %c0_i32_8 = arith.constant 0 : i32
    %9 = arith.cmpi eq, %arg2, %c0_i32_8 : i32
    %10 = arith.extui %9 : i1 to i32
    %c0_i32_9 = arith.constant 0 : i32
    %11 = arith.cmpi ne, %10, %c0_i32_9 : i32
    scf.if %11 {
      %c0_10 = arith.constant 0 : index
      %c0_11 = arith.constant 0 : index
      %12 = vector.load %arg7[%c0_10, %c0_11] : memref<32x128xf32, #tpu.memory_space<vmem>>, vector<32x128xf32>
      %c0_12 = arith.constant 0 : index
      %c0_13 = arith.constant 0 : index
      %13 = vector.load %arg5[%c0_12, %c0_13] : memref<32x128xbf16, #tpu.memory_space<vmem>>, vector<32x128xbf16>
      %14 = arith.extf %13 : vector<32x128xbf16> to vector<32x128xf32>
      %15 = arith.addf %12, %14 : vector<32x128xf32>
      %16 = arith.truncf %15 : vector<32x128xf32> to vector<32x128xbf16>
      %c0_14 = arith.constant 0 : index
      %c0_15 = arith.constant 0 : index
      %17 = vector.load %arg6[%c0_14, %c0_15] : memref<32x128xbf16, #tpu.memory_space<vmem>>, vector<32x128xbf16>
      tpu.vector_store %arg6[%c0_14, %c0_15], %16 {strides = array<i32>} : memref<32x128xbf16, #tpu.memory_space<vmem>>, vector<32x128xbf16>,
    } else {
    }
    return
  }
  func.func @transform_0(%arg0: i32, %arg1: i32, %arg2: i32) -> (i32, i32) {
    %c0_i32 = arith.constant 0 : i32
    return %arg0, %arg2 : i32, i32
  }
  func.func @transform_1(%arg0: i32, %arg1: i32, %arg2: i32) -> (i32, i32) {
    %c0_i32 = arith.constant 0 : i32
    return %arg2, %arg1 : i32, i32
  }
  func.func @transform_2(%arg0: i32, %arg1: i32, %arg2: i32) -> (i32, i32) {
    %c0_i32 = arith.constant 0 : i32
    return %arg0, %arg1 : i32, i32
  }
  func.func @transform_3(%arg0: i32, %arg1: i32, %arg2: i32) -> (i32, i32) {
    %c0_i32 = arith.constant 0 : i32
    return %arg0, %arg1 : i32, i32
  }
}

module attributes {stable_mosaic.version = 11 : i64} {
  func.func @_rmsnorm_matmul_kernel(%arg0: i32, %arg1: i32, %arg2: memref<32x128xbf16, #tpu.memory_space<vmem>>, %arg3: memref<1x128xf32, #tpu.memory_space<vmem>>, %arg4: memref<128x256xbf16, #tpu.memory_space<vmem>>, %arg5: memref<32x256xbf16, #tpu.memory_space<vmem>>) attributes {dimension_semantics = [#tpu.dimension_semantics<parallel>, #tpu.dimension_semantics<parallel>], iteration_bounds = array<i64: 1, 1>, scalar_prefetch = 0 : i64, scratch_operands = 0 : i64, tpu.core_type = #tpu.core_type<tc>, window_params = [{transform_indices = @transform_0, window_bounds = array<i64: 32, 128>}, {pipeline_mode = #tpu.pipeline_mode<synchronous>, transform_indices = @transform_1, window_bounds = array<i64: 1, 128>}, {transform_indices = @transform_2, window_bounds = array<i64: 128, 256>}, {transform_indices = @transform_3, window_bounds = array<i64: 32, 256>}]} {
    %c0 = arith.constant 0 : index
    %c0_0 = arith.constant 0 : index
    %0 = vector.load %arg2[%c0, %c0_0] : memref<32x128xbf16, #tpu.memory_space<vmem>>, vector<32x128xbf16>
    %1 = arith.extf %0 : vector<32x128xbf16> to vector<32x128xf32>
    %2 = arith.mulf %1, %1 : vector<32x128xf32>
    %cst = arith.constant dense<0.000000e+00> : vector<32xf32>
    %3 = vector.multi_reduction <add>, %2, %cst [1] : vector<32x128xf32> to vector<32xf32>
    %4 = vector.shape_cast %3 : vector<32xf32> to vector<32x1xf32>
    %cst_1 = arith.constant 1.280000e+02 : f32
    %5 = vector.broadcast %cst_1 : f32 to vector<32x1xf32>
    %6 = arith.divf %4, %5 : vector<32x1xf32>
    %cst_2 = arith.constant 9.99999997E-7 : f32
    %7 = vector.broadcast %cst_2 : f32 to vector<32x1xf32>
    %8 = arith.addf %6, %7 : vector<32x1xf32>
    %9 = math.rsqrt %8 : vector<32x1xf32>
    %10 = vector.broadcast %9 : vector<32x1xf32> to vector<32x128xf32>
    %11 = arith.mulf %1, %10 : vector<32x128xf32>
    %c0_3 = arith.constant 0 : index
    %c0_4 = arith.constant 0 : index
    %12 = vector.load %arg3[%c0_3, %c0_4] : memref<1x128xf32, #tpu.memory_space<vmem>>, vector<1x128xf32>
    %13 = vector.broadcast %12 : vector<1x128xf32> to vector<32x128xf32>
    %14 = arith.mulf %11, %13 : vector<32x128xf32>
    %15 = arith.truncf %14 : vector<32x128xf32> to vector<32x128xbf16>
    %c0_5 = arith.constant 0 : index
    %c0_6 = arith.constant 0 : index
    %16 = vector.load %arg4[%c0_5, %c0_6] : memref<128x256xbf16, #tpu.memory_space<vmem>>, vector<128x256xbf16>
    %cst_7 = arith.constant dense<0.000000e+00> : vector<32x256xf32>
    %17 = tpu.matmul %15, %16, %cst_7 {dimension_numbers = #tpu.dot_dimension_numbers<[1], [0], [0], [1], [0, 0, 1, 1], [], []>} : vector<32x128xbf16>, vector<128x256xbf16>, vector<32x256xf32> -> vector<32x256xf32>
    %18 = arith.mulf %17, %17 : vector<32x256xf32>
    %19 = arith.mulf %17, %18 : vector<32x256xf32>
    %cst_8 = arith.constant 4.471500e-02 : f32
    %20 = vector.broadcast %cst_8 : f32 to vector<32x256xf32>
    %21 = arith.mulf %20, %19 : vector<32x256xf32>
    %22 = arith.addf %17, %21 : vector<32x256xf32>
    %cst_9 = arith.constant 0.797884583 : f32
    %23 = vector.broadcast %cst_9 : f32 to vector<32x256xf32>
    %24 = arith.mulf %23, %22 : vector<32x256xf32>
    %25 = math.tanh %24 : vector<32x256xf32>
    %cst_10 = arith.constant 1.000000e+00 : f32
    %26 = vector.broadcast %cst_10 : f32 to vector<32x256xf32>
    %27 = arith.addf %26, %25 : vector<32x256xf32>
    %cst_11 = arith.constant 5.000000e-01 : f32
    %28 = vector.broadcast %cst_11 : f32 to vector<32x256xf32>
    %29 = arith.mulf %28, %27 : vector<32x256xf32>
    %30 = arith.mulf %17, %29 : vector<32x256xf32>
    %31 = arith.truncf %30 : vector<32x256xf32> to vector<32x256xbf16>
    %c0_12 = arith.constant 0 : index
    %c0_13 = arith.constant 0 : index
    %32 = vector.load %arg5[%c0_12, %c0_13] : memref<32x256xbf16, #tpu.memory_space<vmem>>, vector<32x256xbf16>
    tpu.vector_store %arg5[%c0_12, %c0_13], %31 {strides = array<i32>} : memref<32x256xbf16, #tpu.memory_space<vmem>>, vector<32x256xbf16>,
    return
  }
  func.func @transform_0(%arg0: i32, %arg1: i32) -> (i32, i32) {
    %c0_i32 = arith.constant 0 : i32
    %c0_i32_0 = arith.constant 0 : i32
    return %arg0, %c0_i32 : i32, i32
  }
  func.func @transform_1(%arg0: i32, %arg1: i32) -> (i32, i32) {
    %c0_i32 = arith.constant 0 : i32
    %c0_i32_0 = arith.constant 0 : i32
    %c0_i32_1 = arith.constant 0 : i32
    return %c0_i32, %c0_i32_0 : i32, i32
  }
  func.func @transform_2(%arg0: i32, %arg1: i32) -> (i32, i32) {
    %c0_i32 = arith.constant 0 : i32
    %c0_i32_0 = arith.constant 0 : i32
    return %c0_i32, %arg1 : i32, i32
  }
  func.func @transform_3(%arg0: i32, %arg1: i32) -> (i32, i32) {
    %c0_i32 = arith.constant 0 : i32
    return %arg0, %arg1 : i32, i32
  }
}

module attributes {stable_mosaic.version = 11 : i64} {
  func.func @_matmul_residual_kernel(%arg0: i32, %arg1: i32, %arg2: i32, %arg3: memref<32x256xbf16, #tpu.memory_space<vmem>>, %arg4: memref<256x128xbf16, #tpu.memory_space<vmem>>, %arg5: memref<32x128xbf16, #tpu.memory_space<vmem>>, %arg6: memref<32x128xbf16, #tpu.memory_space<vmem>>, %arg7: memref<32x128xf32, #tpu.memory_space<vmem>>) attributes {dimension_semantics = [#tpu.dimension_semantics<parallel>, #tpu.dimension_semantics<parallel>, #tpu.dimension_semantics<arbitrary>], iteration_bounds = array<i64: 1, 1, 1>, scalar_prefetch = 0 : i64, scratch_operands = 1 : i64, tpu.core_type = #tpu.core_type<tc>, window_params = [{transform_indices = @transform_0, window_bounds = array<i64: 32, 256>}, {transform_indices = @transform_1, window_bounds = array<i64: 256, 128>}, {transform_indices = @transform_2, window_bounds = array<i64: 32, 128>}, {transform_indices = @transform_3, window_bounds = array<i64: 32, 128>}]} {
    %c0_i32 = arith.constant 0 : i32
    %0 = arith.cmpi eq, %arg2, %c0_i32 : i32
    %1 = arith.extui %0 : i1 to i32
    %c0_i32_0 = arith.constant 0 : i32
    %2 = arith.cmpi ne, %1, %c0_i32_0 : i32
    scf.if %2 {
      %cst_10 = arith.constant 0.000000e+00 : f32
      %12 = vector.broadcast %cst_10 : f32 to vector<32x128xf32>
      %c0_11 = arith.constant 0 : index
      %c0_12 = arith.constant 0 : index
      %13 = vector.load %arg7[%c0_11, %c0_12] : memref<32x128xf32, #tpu.memory_space<vmem>>, vector<32x128xf32>
      tpu.vector_store %arg7[%c0_11, %c0_12], %12 {strides = array<i32>} : memref<32x128xf32, #tpu.memory_space<vmem>>, vector<32x128xf32>,
    } else {
    }
    %c0 = arith.constant 0 : index
    %c0_1 = arith.constant 0 : index
    %3 = vector.load %arg7[%c0, %c0_1] : memref<32x128xf32, #tpu.memory_space<vmem>>, vector<32x128xf32>
    %c0_2 = arith.constant 0 : index
    %c0_3 = arith.constant 0 : index
    %4 = vector.load %arg3[%c0_2, %c0_3] : memref<32x256xbf16, #tpu.memory_space<vmem>>, vector<32x256xbf16>
    %c0_4 = arith.constant 0 : index
    %c0_5 = arith.constant 0 : index
    %5 = vector.load %arg4[%c0_4, %c0_5] : memref<256x128xbf16, #tpu.memory_space<vmem>>, vector<256x128xbf16>
    %cst = arith.constant dense<0.000000e+00> : vector<32x128xf32>
    %6 = tpu.matmul %4, %5, %cst {dimension_numbers = #tpu.dot_dimension_numbers<[1], [0], [0], [1], [0, 0, 1, 1], [], []>} : vector<32x256xbf16>, vector<256x128xbf16>, vector<32x128xf32> -> vector<32x128xf32>
    %7 = arith.addf %3, %6 : vector<32x128xf32>
    %c0_6 = arith.constant 0 : index
    %c0_7 = arith.constant 0 : index
    %8 = vector.load %arg7[%c0_6, %c0_7] : memref<32x128xf32, #tpu.memory_space<vmem>>, vector<32x128xf32>
    tpu.vector_store %arg7[%c0_6, %c0_7], %7 {strides = array<i32>} : memref<32x128xf32, #tpu.memory_space<vmem>>, vector<32x128xf32>,
    %c0_i32_8 = arith.constant 0 : i32
    %9 = arith.cmpi eq, %arg2, %c0_i32_8 : i32
    %10 = arith.extui %9 : i1 to i32
    %c0_i32_9 = arith.constant 0 : i32
    %11 = arith.cmpi ne, %10, %c0_i32_9 : i32
    scf.if %11 {
      %c0_10 = arith.constant 0 : index
      %c0_11 = arith.constant 0 : index
      %12 = vector.load %arg7[%c0_10, %c0_11] : memref<32x128xf32, #tpu.memory_space<vmem>>, vector<32x128xf32>
      %c0_12 = arith.constant 0 : index
      %c0_13 = arith.constant 0 : index
      %13 = vector.load %arg5[%c0_12, %c0_13] : memref<32x128xbf16, #tpu.memory_space<vmem>>, vector<32x128xbf16>
      %14 = arith.extf %13 : vector<32x128xbf16> to vector<32x128xf32>
      %15 = arith.addf %12, %14 : vector<32x128xf32>
      %16 = arith.truncf %15 : vector<32x128xf32> to vector<32x128xbf16>
      %c0_14 = arith.constant 0 : index
      %c0_15 = arith.constant 0 : index
      %17 = vector.load %arg6[%c0_14, %c0_15] : memref<32x128xbf16, #tpu.memory_space<vmem>>, vector<32x128xbf16>
      tpu.vector_store %arg6[%c0_14, %c0_15], %16 {strides = array<i32>} : memref<32x128xbf16, #tpu.memory_space<vmem>>, vector<32x128xbf16>,
    } else {
    }
    return
  }
  func.func @transform_0(%arg0: i32, %arg1: i32, %arg2: i32) -> (i32, i32) {
    %c0_i32 = arith.constant 0 : i32
    return %arg0, %arg2 : i32, i32
  }
  func.func @transform_1(%arg0: i32, %arg1: i32, %arg2: i32) -> (i32, i32) {
    %c0_i32 = arith.constant 0 : i32
    return %arg2, %arg1 : i32, i32
  }
  func.func @transform_2(%arg0: i32, %arg1: i32, %arg2: i32) -> (i32, i32) {
    %c0_i32 = arith.constant 0 : i32
    return %arg0, %arg1 : i32, i32
  }
  func.func @transform_3(%arg0: i32, %arg1: i32, %arg2: i32) -> (i32, i32) {
    %c0_i32 = arith.constant 0 : i32
    return %arg0, %arg1 : i32, i32
  }
}

module attributes {stable_mosaic.version = 11 : i64} {
  func.func @_rmsnorm_matmul_kernel(%arg0: i32, %arg1: i32, %arg2: memref<32x128xbf16, #tpu.memory_space<vmem>>, %arg3: memref<1x128xf32, #tpu.memory_space<vmem>>, %arg4: memref<128x128xbf16, #tpu.memory_space<vmem>>, %arg5: memref<32x128xbf16, #tpu.memory_space<vmem>>) attributes {dimension_semantics = [#tpu.dimension_semantics<parallel>, #tpu.dimension_semantics<parallel>], iteration_bounds = array<i64: 1, 3>, scalar_prefetch = 0 : i64, scratch_operands = 0 : i64, tpu.core_type = #tpu.core_type<tc>, window_params = [{transform_indices = @transform_0, window_bounds = array<i64: 32, 128>}, {pipeline_mode = #tpu.pipeline_mode<synchronous>, transform_indices = @transform_1, window_bounds = array<i64: 1, 128>}, {transform_indices = @transform_2, window_bounds = array<i64: 128, 128>}, {transform_indices = @transform_3, window_bounds = array<i64: 32, 128>}]} {
    %c0 = arith.constant 0 : index
    %c0_0 = arith.constant 0 : index
    %0 = vector.load %arg2[%c0, %c0_0] : memref<32x128xbf16, #tpu.memory_space<vmem>>, vector<32x128xbf16>
    %1 = arith.extf %0 : vector<32x128xbf16> to vector<32x128xf32>
    %2 = arith.mulf %1, %1 : vector<32x128xf32>
    %cst = arith.constant dense<0.000000e+00> : vector<32xf32>
    %3 = vector.multi_reduction <add>, %2, %cst [1] : vector<32x128xf32> to vector<32xf32>
    %4 = vector.shape_cast %3 : vector<32xf32> to vector<32x1xf32>
    %cst_1 = arith.constant 1.280000e+02 : f32
    %5 = vector.broadcast %cst_1 : f32 to vector<32x1xf32>
    %6 = arith.divf %4, %5 : vector<32x1xf32>
    %cst_2 = arith.constant 9.99999997E-7 : f32
    %7 = vector.broadcast %cst_2 : f32 to vector<32x1xf32>
    %8 = arith.addf %6, %7 : vector<32x1xf32>
    %9 = math.rsqrt %8 : vector<32x1xf32>
    %10 = vector.broadcast %9 : vector<32x1xf32> to vector<32x128xf32>
    %11 = arith.mulf %1, %10 : vector<32x128xf32>
    %c0_3 = arith.constant 0 : index
    %c0_4 = arith.constant 0 : index
    %12 = vector.load %arg3[%c0_3, %c0_4] : memref<1x128xf32, #tpu.memory_space<vmem>>, vector<1x128xf32>
    %13 = vector.broadcast %12 : vector<1x128xf32> to vector<32x128xf32>
    %14 = arith.mulf %11, %13 : vector<32x128xf32>
    %15 = arith.truncf %14 : vector<32x128xf32> to vector<32x128xbf16>
    %c0_5 = arith.constant 0 : index
    %c0_6 = arith.constant 0 : index
    %16 = vector.load %arg4[%c0_5, %c0_6] : memref<128x128xbf16, #tpu.memory_space<vmem>>, vector<128x128xbf16>
    %cst_7 = arith.constant dense<0.000000e+00> : vector<32x128xf32>
    %17 = tpu.matmul %15, %16, %cst_7 {dimension_numbers = #tpu.dot_dimension_numbers<[1], [0], [0], [1], [0, 0, 1, 1], [], []>} : vector<32x128xbf16>, vector<128x128xbf16>, vector<32x128xf32> -> vector<32x128xf32>
    %18 = arith.truncf %17 : vector<32x128xf32> to vector<32x128xbf16>
    %c0_8 = arith.constant 0 : index
    %c0_9 = arith.constant 0 : index
    %19 = vector.load %arg5[%c0_8, %c0_9] : memref<32x128xbf16, #tpu.memory_space<vmem>>, vector<32x128xbf16>
    tpu.vector_store %arg5[%c0_8, %c0_9], %18 {strides = array<i32>} : memref<32x128xbf16, #tpu.memory_space<vmem>>, vector<32x128xbf16>,
    return
  }
  func.func @transform_0(%arg0: i32, %arg1: i32) -> (i32, i32) {
    %c0_i32 = arith.constant 0 : i32
    %c0_i32_0 = arith.constant 0 : i32
    return %arg0, %c0_i32 : i32, i32
  }
  func.func @transform_1(%arg0: i32, %arg1: i32) -> (i32, i32) {
    %c0_i32 = arith.constant 0 : i32
    %c0_i32_0 = arith.constant 0 : i32
    %c0_i32_1 = arith.constant 0 : i32
    return %c0_i32, %c0_i32_0 : i32, i32
  }
  func.func @transform_2(%arg0: i32, %arg1: i32) -> (i32, i32) {
    %c0_i32 = arith.constant 0 : i32
    %c0_i32_0 = arith.constant 0 : i32
    return %c0_i32, %arg1 : i32, i32
  }
  func.func @transform_3(%arg0: i32, %arg1: i32) -> (i32, i32) {
    %c0_i32 = arith.constant 0 : i32
    return %arg0, %arg1 : i32, i32
  }
}

module attributes {stable_mosaic.version = 11 : i64} {
  func.func @_ce_kernel(%arg0: i32, %arg1: memref<30x256xf32, #tpu.memory_space<vmem>>, %arg2: memref<30x1xi32, #tpu.memory_space<vmem>>, %arg3: memref<1x1xf32, #tpu.memory_space<vmem>>, %arg4: memref<1x1xf32, #tpu.memory_space<vmem>>) attributes {dimension_semantics = [#tpu.dimension_semantics<arbitrary>], iteration_bounds = array<i64: 1>, scalar_prefetch = 0 : i64, scratch_operands = 0 : i64, tpu.core_type = #tpu.core_type<tc>, window_params = [{transform_indices = @transform_0, window_bounds = array<i64: 30, 256>}, {transform_indices = @transform_1, window_bounds = array<i64: 30, 1>}, {pipeline_mode = #tpu.pipeline_mode<synchronous>, transform_indices = @transform_2, window_bounds = array<i64: 1, 1>}, {pipeline_mode = #tpu.pipeline_mode<synchronous>, transform_indices = @transform_3, window_bounds = array<i64: 1, 1>}]} {
    %c0_i32 = arith.constant 0 : i32
    %0 = arith.cmpi eq, %arg0, %c0_i32 : i32
    %1 = arith.extui %0 : i1 to i32
    %c0_i32_0 = arith.constant 0 : i32
    %2 = arith.cmpi ne, %1, %c0_i32_0 : i32
    scf.if %2 {
      %cst_17 = arith.constant 0.000000e+00 : f32
      %37 = vector.broadcast %cst_17 : f32 to vector<1x1xf32>
      %c0_18 = arith.constant 0 : index
      %c0_19 = arith.constant 0 : index
      %38 = vector.load %arg3[%c0_18, %c0_19] : memref<1x1xf32, #tpu.memory_space<vmem>>, vector<1x1xf32>
      tpu.vector_store %arg3[%c0_18, %c0_19], %37 {strides = array<i32>} : memref<1x1xf32, #tpu.memory_space<vmem>>, vector<1x1xf32>,
      %cst_20 = arith.constant 0.000000e+00 : f32
      %39 = vector.broadcast %cst_20 : f32 to vector<1x1xf32>
      %c0_21 = arith.constant 0 : index
      %c0_22 = arith.constant 0 : index
      %40 = vector.load %arg4[%c0_21, %c0_22] : memref<1x1xf32, #tpu.memory_space<vmem>>, vector<1x1xf32>
      tpu.vector_store %arg4[%c0_21, %c0_22], %39 {strides = array<i32>} : memref<1x1xf32, #tpu.memory_space<vmem>>, vector<1x1xf32>,
    } else {
    }
    %c0 = arith.constant 0 : index
    %c0_1 = arith.constant 0 : index
    %3 = vector.load %arg1[%c0, %c0_1] : memref<30x256xf32, #tpu.memory_space<vmem>>, vector<30x256xf32>
    %c0_2 = arith.constant 0 : index
    %c0_3 = arith.constant 0 : index
    %4 = vector.load %arg2[%c0_2, %c0_3] : memref<30x1xi32, #tpu.memory_space<vmem>>, vector<30x1xi32>
    %cst = arith.constant dense<0xFF800000> : vector<30xf32>
    %5 = vector.multi_reduction <maximumf>, %3, %cst [1] : vector<30x256xf32> to vector<30xf32>
    %6 = vector.shape_cast %5 : vector<30xf32> to vector<30x1xf32>
    %7 = vector.broadcast %6 : vector<30x1xf32> to vector<30x256xf32>
    %8 = arith.subf %3, %7 : vector<30x256xf32>
    %9 = math.exp %8 : vector<30x256xf32>
    %cst_4 = arith.constant dense<0.000000e+00> : vector<30xf32>
    %10 = vector.multi_reduction <add>, %9, %cst_4 [1] : vector<30x256xf32> to vector<30xf32>
    %11 = vector.shape_cast %10 : vector<30xf32> to vector<30x1xf32>
    %12 = math.log %11 : vector<30x1xf32>
    %13 = arith.addf %12, %6 : vector<30x1xf32>
    %14 = tpu.iota {dimensions = array<i32: 1>} : vector<30x256xi32>
    %15 = vector.broadcast %4 : vector<30x1xi32> to vector<30x256xi32>
    %16 = arith.cmpi eq, %14, %15 : vector<30x256xi32>
    %cst_5 = arith.constant 0.000000e+00 : f32
    %17 = vector.broadcast %cst_5 : f32 to vector<30x256xf32>
    %18 = arith.select %16, %3, %17 : vector<30x256xi1>, vector<30x256xf32>
    %cst_6 = arith.constant dense<0.000000e+00> : vector<30xf32>
    %19 = vector.multi_reduction <add>, %18, %cst_6 [1] : vector<30x256xf32> to vector<30xf32>
    %20 = vector.shape_cast %19 : vector<30xf32> to vector<30x1xf32>
    %c-100_i32 = arith.constant -100 : i32
    %21 = vector.broadcast %c-100_i32 : i32 to vector<30x1xi32>
    %22 = arith.cmpi ne, %4, %21 : vector<30x1xi32>
    %23 = arith.extui %22 : vector<30x1xi1> to vector<30x1xi32>
    %24 = arith.sitofp %23 : vector<30x1xi32> to vector<30x1xf32>
    %25 = arith.subf %13, %20 : vector<30x1xf32>
    %26 = arith.mulf %25, %24 : vector<30x1xf32>
    %c0_7 = arith.constant 0 : index
    %c0_8 = arith.constant 0 : index
    %27 = vector.load %arg3[%c0_7, %c0_8] : memref<1x1xf32, #tpu.memory_space<vmem>>, vector<1x1xf32>
    %cst_9 = arith.constant dense<0.000000e+00> : vector<1xf32>
    %28 = vector.multi_reduction <add>, %26, %cst_9 [0] : vector<30x1xf32> to vector<1xf32>
    %29 = vector.shape_cast %28 : vector<1xf32> to vector<1x1xf32>
    %30 = arith.addf %27, %29 : vector<1x1xf32>
    %c0_10 = arith.constant 0 : index
    %c0_11 = arith.constant 0 : index
    %31 = vector.load %arg3[%c0_10, %c0_11] : memref<1x1xf32, #tpu.memory_space<vmem>>, vector<1x1xf32>
    tpu.vector_store %arg3[%c0_10, %c0_11], %30 {strides = array<i32>} : memref<1x1xf32, #tpu.memory_space<vmem>>, vector<1x1xf32>,
    %c0_12 = arith.constant 0 : index
    %c0_13 = arith.constant 0 : index
    %32 = vector.load %arg4[%c0_12, %c0_13] : memref<1x1xf32, #tpu.memory_space<vmem>>, vector<1x1xf32>
    %cst_14 = arith.constant dense<0.000000e+00> : vector<1xf32>
    %33 = vector.multi_reduction <add>, %24, %cst_14 [0] : vector<30x1xf32> to vector<1xf32>
    %34 = vector.shape_cast %33 : vector<1xf32> to vector<1x1xf32>
    %35 = arith.addf %32, %34 : vector<1x1xf32>
    %c0_15 = arith.constant 0 : index
    %c0_16 = arith.constant 0 : index
    %36 = vector.load %arg4[%c0_15, %c0_16] : memref<1x1xf32, #tpu.memory_space<vmem>>, vector<1x1xf32>
    tpu.vector_store %arg4[%c0_15, %c0_16], %35 {strides = array<i32>} : memref<1x1xf32, #tpu.memory_space<vmem>>, vector<1x1xf32>,
    return
  }
  func.func @transform_0(%arg0: i32) -> (i32, i32) {
    %c0_i32 = arith.constant 0 : i32
    %c0_i32_0 = arith.constant 0 : i32
    return %arg0, %c0_i32 : i32, i32
  }
  func.func @transform_1(%arg0: i32) -> (i32, i32) {
    %c0_i32 = arith.constant 0 : i32
    %c0_i32_0 = arith.constant 0 : i32
    return %arg0, %c0_i32 : i32, i32
  }
  func.func @transform_2(%arg0: i32) -> (i32, i32) {
    %c0_i32 = arith.constant 0 : i32
    %c0_i32_0 = arith.constant 0 : i32
    %c0_i32_1 = arith.constant 0 : i32
    return %c0_i32, %c0_i32_0 : i32, i32
  }
  func.func @transform_3(%arg0: i32) -> (i32, i32) {
    %c0_i32 = arith.constant 0 : i32
    %c0_i32_0 = arith.constant 0 : i32
    %c0_i32_1 = arith.constant 0 : i32
    return %c0_i32, %c0_i32_0 : i32, i32
  }
}

module attributes {stable_mosaic.version = 11 : i64} {
  func.func @_rmsnorm_matmul_kernel(%arg0: i32, %arg1: i32, %arg2: memref<32x128xbf16, #tpu.memory_space<vmem>>, %arg3: memref<1x128xf32, #tpu.memory_space<vmem>>, %arg4: memref<128x256xbf16, #tpu.memory_space<vmem>>, %arg5: memref<32x256xf32, #tpu.memory_space<vmem>>) attributes {dimension_semantics = [#tpu.dimension_semantics<parallel>, #tpu.dimension_semantics<parallel>], iteration_bounds = array<i64: 1, 1>, scalar_prefetch = 0 : i64, scratch_operands = 0 : i64, tpu.core_type = #tpu.core_type<tc>, window_params = [{transform_indices = @transform_0, window_bounds = array<i64: 32, 128>}, {pipeline_mode = #tpu.pipeline_mode<synchronous>, transform_indices = @transform_1, window_bounds = array<i64: 1, 128>}, {transform_indices = @transform_2, window_bounds = array<i64: 128, 256>}, {transform_indices = @transform_3, window_bounds = array<i64: 32, 256>}]} {
    %c0 = arith.constant 0 : index
    %c0_0 = arith.constant 0 : index
    %0 = vector.load %arg2[%c0, %c0_0] : memref<32x128xbf16, #tpu.memory_space<vmem>>, vector<32x128xbf16>
    %1 = arith.extf %0 : vector<32x128xbf16> to vector<32x128xf32>
    %2 = arith.mulf %1, %1 : vector<32x128xf32>
    %cst = arith.constant dense<0.000000e+00> : vector<32xf32>
    %3 = vector.multi_reduction <add>, %2, %cst [1] : vector<32x128xf32> to vector<32xf32>
    %4 = vector.shape_cast %3 : vector<32xf32> to vector<32x1xf32>
    %cst_1 = arith.constant 1.280000e+02 : f32
    %5 = vector.broadcast %cst_1 : f32 to vector<32x1xf32>
    %6 = arith.divf %4, %5 : vector<32x1xf32>
    %cst_2 = arith.constant 9.99999997E-7 : f32
    %7 = vector.broadcast %cst_2 : f32 to vector<32x1xf32>
    %8 = arith.addf %6, %7 : vector<32x1xf32>
    %9 = math.rsqrt %8 : vector<32x1xf32>
    %10 = vector.broadcast %9 : vector<32x1xf32> to vector<32x128xf32>
    %11 = arith.mulf %1, %10 : vector<32x128xf32>
    %c0_3 = arith.constant 0 : index
    %c0_4 = arith.constant 0 : index
    %12 = vector.load %arg3[%c0_3, %c0_4] : memref<1x128xf32, #tpu.memory_space<vmem>>, vector<1x128xf32>
    %13 = vector.broadcast %12 : vector<1x128xf32> to vector<32x128xf32>
    %14 = arith.mulf %11, %13 : vector<32x128xf32>
    %15 = arith.truncf %14 : vector<32x128xf32> to vector<32x128xbf16>
    %c0_5 = arith.constant 0 : index
    %c0_6 = arith.constant 0 : index
    %16 = vector.load %arg4[%c0_5, %c0_6] : memref<128x256xbf16, #tpu.memory_space<vmem>>, vector<128x256xbf16>
    %cst_7 = arith.constant dense<0.000000e+00> : vector<32x256xf32>
    %17 = tpu.matmul %15, %16, %cst_7 {dimension_numbers = #tpu.dot_dimension_numbers<[1], [0], [0], [1], [0, 0, 1, 1], [], []>} : vector<32x128xbf16>, vector<128x256xbf16>, vector<32x256xf32> -> vector<32x256xf32>
    %c0_8 = arith.constant 0 : index
    %c0_9 = arith.constant 0 : index
    %18 = vector.load %arg5[%c0_8, %c0_9] : memref<32x256xf32, #tpu.memory_space<vmem>>, vector<32x256xf32>
    tpu.vector_store %arg5[%c0_8, %c0_9], %17 {strides = array<i32>} : memref<32x256xf32, #tpu.memory_space<vmem>>, vector<32x256xf32>,
    return
  }
  func.func @transform_0(%arg0: i32, %arg1: i32) -> (i32, i32) {
    %c0_i32 = arith.constant 0 : i32
    %c0_i32_0 = arith.constant 0 : i32
    return %arg0, %c0_i32 : i32, i32
  }
  func.func @transform_1(%arg0: i32, %arg1: i32) -> (i32, i32) {
    %c0_i32 = arith.constant 0 : i32
    %c0_i32_0 = arith.constant 0 : i32
    %c0_i32_1 = arith.constant 0 : i32
    return %c0_i32, %c0_i32_0 : i32, i32
  }
  func.func @transform_2(%arg0: i32, %arg1: i32) -> (i32, i32) {
    %c0_i32 = arith.constant 0 : i32
    %c0_i32_0 = arith.constant 0 : i32
    return %c0_i32, %arg1 : i32, i32
  }
  func.func @transform_3(%arg0: i32, %arg1: i32) -> (i32, i32) {
    %c0_i32 = arith.constant 0 : i32
    return %arg0, %arg1 : i32, i32
  }
}

</mosaic_0001>

<llo_original>
// kernel: inv_decoder_forward.12
$region0: #{inv_decoder_forward.12}
  #allocation0 [shape = 'u32[]', space=smem, size = 0x4, offset = 0x4, fixed_abs, tag = 'smem constant byte address 0x4 - core index']
  #allocation1 [shape = 'u32[144,128]{1,0:T(1,128)}', space=vmem, size = 0x12000, scoped, tag = 'internal scratch']
  %s0 = inlined_call_operand.vmem [shape: bf16[32,128], index: 0, kind: input, shape index: {}]
  %s1 = inlined_call_operand.vmem [shape: f32[1,128], index: 1, kind: input, shape index: {}]
  %s2 = inlined_call_operand.hbm [shape: bf16[128,384], index: 2, kind: input, shape index: {}]
  %s3 = inlined_call_operand.vmem [shape: bf16[32,384], index: 3, kind: output, shape index: {}]
  %s4 = sld [smem:[#allocation0]]
  $region86: #{inv_decoder_forward.12} parent=0
    _
  %s6 = ssub.s32 1, %s4
  %s7 = scalar_select 0, %s6, %s4
  $region1: #{inv_decoder_forward.12} parent=0
    #allocation2 [shape = 'u8[65536]{0}', space=vmem, size = 0x10000, scoped, tag = 'input window, operand 2']
    #allocation3 [shape = 's32[2]{0}', space=sflag, size = 0x8, scoped, tag = 'scoped memory for inv_decoder_forward.12']
    #allocation4 [shape = 'u8[16384]{0}', space=vmem, size = 0x4000, scoped, tag = 'output window, operand 0']
    %8 = vsyncpa [#allocation3], 0
    %s9 = scalar_lea.sflag [#allocation3], 1
    %10 = vsyncpa %s9, 0
    loop: start=0, step=1, limit=5
    $region2: #{inv_decoder_forward.12} parent=1 // loop_pre_header
      _
    $region3: #{inv_decoder_forward.12} parent=1 // loop_header
      %s12 = sphi 0, %s16
      %p13 = scmp.ge.s32.totalorder %s12, 5
      %s19 = sphi 0, %s31
      %s20 = sphi 0, %s27
      %s21 = sphi 0, %s19
      %s22 = sphi 0, %s20
      %s23 = sphi 0, %s21
      %s24 = sphi 0, %s22
      %s34 = sphi 0, %s36
      %s37 = sphi 0, %s34
      %s38 = sphi 0, %s37
      %s54 = sphi 0, %s38
      %s58 = sphi 0, %s58
      %s60 = sphi 0, %s58
      %s61 = sphi 0, %s60
      %s75 = sphi 0, %s61
      %s81 = sphi 0, %s83
      %s84 = sphi 0, %s81
      %s85 = sphi 0, %s84
      %s101 = sphi 0, %s85
      %s109 = sphi 0, %s111
      %s112 = sphi 0, %s109
      %s113 = sphi 0, %s112
      %s129 = sphi 0, %s113
    $region4: #{inv_decoder_forward.12} parent=1 // loop_header_branch
      %15 = sbr.rel (%p13) target = $region8
    $region5: #{inv_decoder_forward.12} parent=1 // loop_body
      %s17 = ssub.s32 %s12, 1
      %s18 = ssub.s32 %s12, 2
      %s25 = sadd.s32 1, %s20
      %p26 = scmp.ge.s32.totalorder %s25, 3
      %s27 = scalar_select %p26, 0, %s25
      %s28 = sadd.s32 1, %s19
      %s29 = scalar_select %p26, %s28, %s19
      %p30 = scmp.ge.s32.totalorder %s29, 1
      %s31 = scalar_select %p30, 0, %s29
      %s32 = ssub.s32 %s19, %s31
      %p33 = scmp.eq.s32.totalorder %s32, 0
      %s35 = sadd.s32 %s34, 1
      %s36 = scalar_select %p33, %s34, %s35
      %p39 = pneg %p33
      %p40 = scmp.eq.s32.totalorder %s12, 2
      %p41 = por %p39, %p40
      %p42 = scmp.ne.s32.totalorder %s34, %s37
      %p43 = scmp.eq.s32.totalorder %s12, 0
      %p44 = por %p42, %p43
      %p45 = scmp.ne.s32.totalorder %s34, %s37
      %p46 = scmp.eq.s32.totalorder %s17, 2
      %p47 = por %p45, %p46
      %p48 = scmp.ne.s32.totalorder %s37, %s38
      %p49 = scmp.eq.s32.totalorder %s17, 0
      %p50 = por %p48, %p49
      %p51 = scmp.ne.s32.totalorder %s37, %s38
      %p52 = scmp.eq.s32.totalorder %s18, 2
      %p53 = por %p51, %p52
      %p55 = scmp.ne.s32.totalorder %s38, %s54
      %p56 = scmp.eq.s32.totalorder %s18, 0
      %p57 = por %p55, %p56
      %s59 = sadd.s32 %s58, 1
      %p62 = scmp.eq.s32.totalorder %s12, 2
      %p63 = scmp.ne.s32.totalorder %s58, %s60
      %p64 = scmp.eq.s32.totalorder %s12, 0
      %p65 = por %p63, %p64
      %p66 = scmp.ne.s32.totalorder %s58, %s60
      %p67 = scmp.eq.s32.totalorder %s17, 2
      %p68 = por %p66, %p67
      %p69 = scmp.ne.s32.totalorder %s60, %s61
      %p70 = scmp.eq.s32.totalorder %s17, 0
      %p71 = por %p69, %p70
      %p72 = scmp.ne.s32.totalorder %s60, %s61
      %p73 = scmp.eq.s32.totalorder %s18, 2
      %p74 = por %p72, %p73
      %p76 = scmp.ne.s32.totalorder %s61, %s75
      %p77 = scmp.eq.s32.totalorder %s18, 0
      %p78 = por %p76, %p77
      %s79 = ssub.s32 %s20, %s27
      %p80 = scmp.eq.s32.totalorder %s79, 0
      %s82 = sadd.s32 %s81, 1
      %s83 = scalar_select %p80, %s81, %s82
      %p86 = pneg %p80
      %p87 = scmp.eq.s32.totalorder %s12, 2
      %p88 = por %p86, %p87
      %p89 = scmp.ne.s32.totalorder %s81, %s84
      %p90 = scmp.eq.s32.totalorder %s12, 0
      %p91 = por %p89, %p90
      %p92 = scmp.ne.s32.totalorder %s81, %s84
      %p93 = scmp.eq.s32.totalorder %s17, 2
      %p94 = por %p92, %p93
      %p95 = scmp.ne.s32.totalorder %s84, %s85
      %p96 = scmp.eq.s32.totalorder %s17, 0
      %p97 = por %p95, %p96
      %p98 = scmp.ne.s32.totalorder %s84, %s85
      %p99 = scmp.eq.s32.totalorder %s18, 2
      %p100 = por %p98, %p99
      %p102 = scmp.ne.s32.totalorder %s85, %s101
      %p103 = scmp.eq.s32.totalorder %s18, 0
      %p104 = por %p102, %p103
      %s105 = ssub.s32 %s19, %s31
      %s106 = ssub.s32 %s20, %s27
      %s107 = sor.u32 %s105, %s106
      %p108 = scmp.eq.s32.totalorder %s107, 0
      %s110 = sadd.s32 %s109, 1
      %s111 = scalar_select %p108, %s109, %s110
      %p114 = pneg %p108
      %p115 = scmp.eq.s32.totalorder %s12, 2
      %p116 = por %p114, %p115
      %p117 = scmp.ne.s32.totalorder %s109, %s112
      %p118 = scmp.eq.s32.totalorder %s12, 0
      %p119 = por %p117, %p118
      %p120 = scmp.ne.s32.totalorder %s109, %s112
      %p121 = scmp.eq.s32.totalorder %s17, 2
      %p122 = por %p120, %p121
      %p123 = scmp.ne.s32.totalorder %s112, %s113
      %p124 = scmp.eq.s32.totalorder %s17, 0
      %p125 = por %p123, %p124
      %p126 = scmp.ne.s32.totalorder %s112, %s113
      %p127 = scmp.eq.s32.totalorder %s18, 2
      %p128 = por %p126, %p127
      %p130 = scmp.ne.s32.totalorder %s113, %s129
      %p131 = scmp.eq.s32.totalorder %s18, 0
      %p132 = por %p130, %p131
      %p133 = scmp.le.s32.totalorder 1, %s12
      %p134 = scmp.lt.s32.totalorder %s12, 4
      %p135 = pnand %p133, %p134
      %p136 = pneg %p135
      // Predicated region
      $region9: #{inv_decoder_forward.12} parent=5 // pred_check
        _
      $region10: #{inv_decoder_forward.12} parent=5 // pred_check_branch
        %138 = sbr.rel (%p135) target = $region12
      $region11: #{inv_decoder_forward.12} parent=5 // pred_region
        %s139 = ssub.s32 %s12, 1
        // Predicated region
        $region13: #{inv_decoder_forward.12} parent=11 // pred_check
          %p140 = pneg %p50
        $region14: #{inv_decoder_forward.12} parent=11 // pred_check_branch
          %142 = sbr.rel (%p140) target = $region16
        $region15: #{inv_decoder_forward.12} parent=11 // pred_region
          %s143 = smul.u32 4, %s21
          %p144 = scmp.lt.s32.totalorder %s143, 3
          %s145 = scalar_select %p144, %s143, 3
          %s146 = smul.addr %s145, 4
          %s147 = scalar_lea.vmem %s0, %s146
          %s148 = smul.u32 4, %s21
        $region16: #{inv_decoder_forward.12} parent=11 // pred_fallthru
          _
        // Predicated region
        $region17: #{inv_decoder_forward.12} parent=11 // pred_check
          %p149 = pneg %p71
        $region18: #{inv_decoder_forward.12} parent=11 // pred_check_branch
          %151 = sbr.rel (%p149) target = $region20
        $region19: #{inv_decoder_forward.12} parent=11 // pred_region
          _
        $region20: #{inv_decoder_forward.12} parent=11 // pred_fallthru
          _
      $region12: #{inv_decoder_forward.12} parent=5 // pred_fallthru
        _
      %p152 = scmp.lt.s32.totalorder %s12, 3
      // Predicated region
      $region21: #{inv_decoder_forward.12} parent=5 // pred_check
        %p153 = pneg %p152
      $region22: #{inv_decoder_forward.12} parent=5 // pred_check_branch
        %155 = sbr.rel (%p153) target = $region24
      $region23: #{inv_decoder_forward.12} parent=5 // pred_region
        // Predicated region
        $region25: #{inv_decoder_forward.12} parent=23 // pred_check
          %p156 = pneg %p91
        $region26: #{inv_decoder_forward.12} parent=23 // pred_check_branch
          %158 = sbr.rel (%p156) target = $region28
        $region27: #{inv_decoder_forward.12} parent=23 // pred_region
          %s159 = sand.u32 %s81, 1
          %s160 = scalar_lea.sflag [#allocation3], %s159
          %s161 = sand.u32 %s81, 1
          %s162 = smul.addr %s161, 64
          %s163 = scalar_lea.vmem [#allocation2], %s162
          %s165 = ssub.s32 1024, 1024
          %166 = vsyncadd %s160, %s165
          %s167 = smul.addr %s20, 64
          %s168 = scalar_lea.hbm %s2, %s167
          %s169 = sshll.u32 %s163, 4
          %s170 = int_to_ptr.vmem [resolvable:$true] %s169
          %175 = dma.hbm_to_vmem [thread:$0]  %s168, 1024, %s170, %s160, 192, 64, 4
        $region28: #{inv_decoder_forward.12} parent=23 // pred_fallthru
          _
      $region24: #{inv_decoder_forward.12} parent=5 // pred_fallthru
        _
      %p176 = scmp.le.s32.totalorder 1, %s12
      %p177 = scmp.lt.s32.totalorder %s12, 4
      %p178 = pnand %p176, %p177
      %p179 = pneg %p178
      // Predicated region
      $region29: #{inv_decoder_forward.12} parent=5 // pred_check
        _
      $region30: #{inv_decoder_forward.12} parent=5 // pred_check_branch
        %181 = sbr.rel (%p178) target = $region32
      $region31: #{inv_decoder_forward.12} parent=5 // pred_region
        %s182 = ssub.s32 %s12, 1
        %s183 = sand.u32 %s84, 1
        %s184 = scalar_lea.sflag [#allocation3], %s183
        %s185 = sand.u32 %s84, 1
        %s186 = smul.addr %s185, 64
        %s187 = scalar_lea.vmem [#allocation2], %s186
        // Predicated region
        $region33: #{inv_decoder_forward.12} parent=31 // pred_check
          %p188 = pneg %p97
        $region34: #{inv_decoder_forward.12} parent=31 // pred_check_branch
          %190 = sbr.rel (%p188) target = $region36
        $region35: #{inv_decoder_forward.12} parent=31 // pred_region
          %191 = dma.done %s184, 1024
        $region36: #{inv_decoder_forward.12} parent=31 // pred_fallthru
          _
        %s192 = smul.u32 4, %s21
        %p193 = scmp.lt.s32.totalorder %s192, 3
        %s194 = scalar_select %p193, %s192, 3
        %s195 = smul.addr %s194, 4
        %s196 = scalar_lea.vmem %s0, %s195
        %p197 = pneg %p50
        %p198 = pneg %p47
        %p199 = pneg %p71
        %p200 = pneg %p68
        %s201 = sand.u32 %s84, 1
        %s202 = scalar_lea.sflag [#allocation3], %s201
        %s203 = sand.u32 %s84, 1
        %s204 = smul.addr %s203, 64
        %s205 = scalar_lea.vmem [#allocation2], %s204
        %p206 = pneg %p97
        %p207 = pneg %p94
        %p208 = pneg %p125
        %p209 = pneg %p122
        %s210 = sand.u32 %s112, 1
        %s211 = sand.u32 %s112, 1
        %s212 = smul.addr %s211, 16
        %s213 = scalar_lea.vmem [#allocation4], %s212
        %s214 = smul.u32 4, %s21
        %p215 = scmp.lt.s32.totalorder %s214, 3
        %s216 = scalar_select %p215, %s214, 3
        %s217 = smul.addr %s216, 4
        %s218 = scalar_lea.vmem %s0, %s217
        %s219 = smul.u32 4, %s21
        %s220 = smul.u32 4, %s21
        %v222 = vld [vmem:[%s218] sm:$0xf]
        %v223 = vld [vmem:[%s218 + $0x4] sm:$0xf]
        %v224 = vld [vmem:[%s218 + $0x8] sm:$0xf]
        %v225 = vld [vmem:[%s218 + $0xc] sm:$0xf]
        %v226 = vunpack.c.l.bf16 %v222
        %v227 = vunpack.c.l.bf16 %v223
        %v228 = vunpack.c.l.bf16 %v224
        %v229 = vunpack.c.l.bf16 %v225
        %v230 = vmul.f32 %v226, %v226
        %v231 = vmul.f32 %v227, %v227
        %v232 = vmul.f32 %v228, %v228
        %v233 = vmul.f32 %v229, %v229
        %234 = vadd.xlane.f32.xlu0 %v230
        %v235 = vpop.xlane.xlu0 %234
        %236 = vadd.xlane.f32.xlu0 %v231
        %v237 = vpop.xlane.xlu0 %236
        %238 = vadd.xlane.f32.xlu0 %v232
        %v239 = vpop.xlane.xlu0 %238
        %240 = vadd.xlane.f32.xlu0 %v233
        %v241 = vpop.xlane.xlu0 %240
        %v242 = vrcp.pop 128.0
        %v243 = vmul.f32 %v235, %v242
        %v244 = vmul.f32 %v237, %v242
        %v245 = vmul.f32 %v239, %v242
        %v246 = vmul.f32 %v241, %v242
        %v247 = vadd.f32 %v243, 1e-06
        %v248 = vadd.f32 %v244, 1e-06
        %v249 = vadd.f32 %v245, 1e-06
        %v250 = vadd.f32 %v246, 1e-06
        %v251 = vrsqrt.pop %v247
        %v252 = vrsqrt.pop %v248
        %v253 = vrsqrt.pop %v249
        %v254 = vrsqrt.pop %v250
        %v255 = vmul.f32 %v226, %v251
        %v256 = vmul.f32 %v227, %v252
        %v257 = vmul.f32 %v228, %v253
        %v258 = vmul.f32 %v229, %v254
        %v259 = vld [vmem:[%s1] sm:$0x1]
        %v261 = vlaneseq
        %v262 = vshrl.u32 %v261, 7
        %v263 = vsub.s32 0, %v262
        %v264 = vrot.slane %v259, %v263
        %v266 = vmul.f32 %v255, %v264
        %v267 = vmul.f32 %v256, %v264
        %v268 = vmul.f32 %v257, %v264
        %v269 = vmul.f32 %v258, %v264
        %v270 = vpack.c.bf16 %v267, %v266
        %v271 = vpack.c.bf16 %v269, %v268
        %v272 = vld [vmem:[%s187] sm:$0xf]
        %v273 = vld [vmem:[%s187 + $0x4] sm:$0xf]
        %v274 = vld [vmem:[%s187 + $0x8] sm:$0xf]
        %v275 = vld [vmem:[%s187 + $0xc] sm:$0xf]
        %v276 = vld [vmem:[%s187 + $0x10] sm:$0xf]
        %v277 = vld [vmem:[%s187 + $0x14] sm:$0xf]
        %v278 = vld [vmem:[%s187 + $0x18] sm:$0xf]
        %v279 = vld [vmem:[%s187 + $0x1c] sm:$0xf]
        %v280 = vld [vmem:[%s187 + $0x20] sm:$0xf]
        %v281 = vld [vmem:[%s187 + $0x24] sm:$0xf]
        %v282 = vld [vmem:[%s187 + $0x28] sm:$0xf]
        %v283 = vld [vmem:[%s187 + $0x2c] sm:$0xf]
        %v284 = vld [vmem:[%s187 + $0x30] sm:$0xf]
        %v285 = vld [vmem:[%s187 + $0x34] sm:$0xf]
        %v286 = vld [vmem:[%s187 + $0x38] sm:$0xf]
        %v287 = vld [vmem:[%s187 + $0x3c] sm:$0xf]
        %v304 = vunpack.c.l.b16 %v272
        %v305 = vunpack.c.l.b16 %v273
        %v306 = vunpack.c.l.b16 %v274
        %v307 = vunpack.c.l.b16 %v275
        %v308 = vunpack.c.l.b16 %v276
        %v309 = vunpack.c.l.b16 %v277
        %v310 = vunpack.c.l.b16 %v278
        %v311 = vunpack.c.l.b16 %v279
        %v312 = vunpack.c.l.b16 %v280
        %v313 = vunpack.c.l.b16 %v281
        %v314 = vunpack.c.l.b16 %v282
        %v315 = vunpack.c.l.b16 %v283
        %v316 = vunpack.c.l.b16 %v284
        %v317 = vunpack.c.l.b16 %v285
        %v318 = vunpack.c.l.b16 %v286
        %v319 = vunpack.c.l.b16 %v287
        %v320 = vpack.c.b16 %v305, %v304
        %v321 = vpack.c.b16 %v307, %v306
        %v322 = vpack.c.b16 %v309, %v308
        %v323 = vpack.c.b16 %v311, %v310
        %v324 = vpack.c.b16 %v313, %v312
        %v325 = vpack.c.b16 %v315, %v314
        %v326 = vpack.c.b16 %v317, %v316
        %v327 = vpack.c.b16 %v319, %v318
        %336 = vmatprep.subr.bf16.mxu0 0
        %337 = vmatpush1.bf16.msra.mxu0 %v327
        %338 = vmatprep.subr.bf16.mxu0 0
        %339 = vmatpush1.bf16.msra.mxu0 %v326
        %340 = vmatprep.subr.bf16.mxu0 0
        %341 = vmatpush1.bf16.msra.mxu0 %v325
        %342 = vmatprep.subr.bf16.mxu0 0
        %343 = vmatpush1.bf16.msra.mxu0 %v324
        %344 = vmatprep.subr.bf16.mxu0 0
        %345 = vmatpush1.bf16.msra.mxu0 %v323
        %346 = vmatprep.subr.bf16.mxu0 0
        %347 = vmatpush1.bf16.msra.mxu0 %v322
        %348 = vmatprep.subr.bf16.mxu0 0
        %349 = vmatpush1.bf16.msra.mxu0 %v321
        %350 = vmatprep.subr.bf16.mxu0 0
        %351 = vmatpush1.bf16.msra.mxu0 %v320
        %352 = vmatprep.subr.bf16.mxu0 0
        %353 = vmatpush2.bf16.msra.mxu0 0
        %354 = vmatprep.subr.bf16.mxu0 0
        %355 = vmatpush2.bf16.msra.mxu0 0
        %356 = vmatprep.subr.bf16.mxu0 0
        %357 = vmatpush2.bf16.msra.mxu0 0
        %358 = vmatprep.subr.bf16.mxu0 0
        %359 = vmatpush2.bf16.msra.mxu0 0
        %360 = vmatprep.subr.bf16.mxu0 0
        %361 = vmatpush2.bf16.msra.mxu0 0
        %362 = vmatprep.subr.bf16.mxu0 0
        %363 = vmatpush2.bf16.msra.mxu0 0
        %364 = vmatprep.subr.bf16.mxu0 0
        %365 = vmatpush2.bf16.msra.mxu0 0
        %366 = vmatprep.subr.bf16.mxu0 0
        %367 = vmatpush2.bf16.msra.mxu0 0
        %368 = vmatprep.mubr.bf16.mxu0 0
        %369 = vmatmul.mubr.bf16.gmra.mxu0 %v270
        %v370 = vpop.f32.mrf.mxu0
        %v371 = vadd.f32 0.0, %v370
        %v372 = vpop.f32.mrf.mxu0
        %v373 = vpop.f32.mrf.mxu0
        %v374 = vadd.f32 0.0, %v373
        %v375 = vpop.f32.mrf.mxu0
        %376 = vmatprep.mubr.bf16.mxu0 0
        %377 = vmatmul.mubr.bf16.gmra.mxu0 %v271
        %v378 = vpop.f32.mrf.mxu0
        %v379 = vadd.f32 0.0, %v378
        %v380 = vpop.f32.mrf.mxu0
        %v381 = vpop.f32.mrf.mxu0
        %v382 = vadd.f32 0.0, %v381
        %v383 = vpop.f32.mrf.mxu0
        %384 = vdwg.mxu0
        %v385 = vpack.c.bf16 %v374, %v371
        %v386 = vpack.c.bf16 %v382, %v379
        %v389 = vunpack.c.l.b16 %v385
        %v390 = vunpack.c.h.b16 %v385
        %v391 = vunpack.c.l.b16 %v386
        %v392 = vunpack.c.h.b16 %v386
        %v393 = vpack.c.b16 %v389, %v389
        %v394 = vpack.c.b16 %v390, %v390
        %v395 = vpack.c.b16 %v391, %v391
        %v396 = vpack.c.b16 %v392, %v392
        %401 = vst [vmem:[%s213] sm:$0xf] %v393
        %402 = vst [vmem:[%s213 + $0x4] sm:$0xf] %v394
        %403 = vst [vmem:[%s213 + $0x8] sm:$0xf] %v395
        %404 = vst [vmem:[%s213 + $0xc] sm:$0xf] %v396
        %s405 = sand.u32 %s112, 1
        %s406 = sand.u32 %s112, 1
        %s407 = smul.addr %s406, 16
        %s408 = scalar_lea.vmem [#allocation4], %s407
        // Predicated region
        $region37: #{inv_decoder_forward.12} parent=31 // pred_check
          %p409 = pneg %p122
        $region38: #{inv_decoder_forward.12} parent=31 // pred_check_branch
          %411 = sbr.rel (%p409) target = $region40
        $region39: #{inv_decoder_forward.12} parent=31 // pred_region
          %s412 = smul.u32 4, %s21
          %s413 = smul.addr %s412, 3
          %s414 = sadd.s32 %s22, %s413
          %s415 = smul.addr %s414, 4
          %s416 = scalar_lea.vmem %s3, %s415
          // Predicated region
          $region41: #{inv_decoder_forward.12} parent=39 // pred_check
            _
          $region42: #{inv_decoder_forward.12} parent=39 // pred_check_branch
            %418 = sbr.rel (0) target = $region44
          $region43: #{inv_decoder_forward.12} parent=39 // pred_region
            // Predicated region
            $region45: #{inv_decoder_forward.12} parent=43 // pred_check
              _
            $region46: #{inv_decoder_forward.12} parent=43 // pred_check_branch
              %420 = sbr.rel target = $region48
            $region47: #{inv_decoder_forward.12} parent=43 // pred_region
              // Predicated region
              $region60: #{inv_decoder_forward.12} parent=47 // pred_check
                _
              $region61: #{inv_decoder_forward.12} parent=47 // pred_check_branch
                %442 = sbr.rel (0) target = $region63
              $region62: #{inv_decoder_forward.12} parent=47 // pred_region
                loop: start=0, step=1, limit=1
                $region64: #{inv_decoder_forward.12} parent=62 // loop_pre_header
                  _
                $region65: #{inv_decoder_forward.12} parent=62 // loop_header
                  %s444 = sphi 0, %s448
                  %p445 = scmp.ge.s32.totalorder %s444, 1
                  %s449 = sphi %s408, %s408
                  %s450 = sphi %s416, %s416
                $region66: #{inv_decoder_forward.12} parent=62 // loop_header_branch
                  %447 = sbr.rel (%p445) target = $region70
                $region67: #{inv_decoder_forward.12} parent=62 // loop_body
                  _
                $region68: #{inv_decoder_forward.12} parent=62 // loop_footer
                  %s448 = sadd.s32 1, %s444
                $region69: #{inv_decoder_forward.12} parent=62 // loop_footer_branch
                  %443 = sbr.rel target = $region65
                $region70: #{inv_decoder_forward.12} parent=62 // loop_exit
                  _
                %s452 = ssub.s32 16, 1
                loop: start=0, step=1, limit=1
                $region71: #{inv_decoder_forward.12} parent=62 // loop_pre_header
                  _
                $region72: #{inv_decoder_forward.12} parent=62 // loop_header
                  %s454 = sphi 0, %s458
                  %p455 = scmp.ge.s32.totalorder %s454, 1
                  %s459 = sphi %s408, %s408
                  %s460 = sphi %s416, %s416
                $region73: #{inv_decoder_forward.12} parent=62 // loop_header_branch
                  %457 = sbr.rel (%p455) target = $region77
                $region74: #{inv_decoder_forward.12} parent=62 // loop_body
                  %v461 = vld [vmem:[%s459] sm:%s452]
                  %462 = vst [vmem:[%s460] sm:%s452] %v461
                  %v463 = vld [vmem:[%s459 + $0x4] sm:%s452]
                  %464 = vst [vmem:[%s460 + $0xc] sm:%s452] %v463
                  %v465 = vld [vmem:[%s459 + $0x8] sm:%s452]
                  %466 = vst [vmem:[%s460 + $0x18] sm:%s452] %v465
                  %v467 = vld [vmem:[%s459 + $0xc] sm:%s452]
                  %468 = vst [vmem:[%s460 + $0x24] sm:%s452] %v467
                $region75: #{inv_decoder_forward.12} parent=62 // loop_footer
                  %s458 = sadd.s32 1, %s454
                $region76: #{inv_decoder_forward.12} parent=62 // loop_footer_branch
                  %453 = sbr.rel target = $region72
                $region77: #{inv_decoder_forward.12} parent=62 // loop_exit
                  _
              $region63: #{inv_decoder_forward.12} parent=47 // pred_fallthru
                _
            $region48: #{inv_decoder_forward.12} parent=43 // pred_fallthru
              _
            // Predicated region
            $region49: #{inv_decoder_forward.12} parent=43 // pred_check
              _
            $region50: #{inv_decoder_forward.12} parent=43 // pred_check_branch
              %422 = sbr.rel (0) target = $region52
            $region51: #{inv_decoder_forward.12} parent=43 // pred_region
              %s424 = ssub.s32 16, 1
              loop: start=0, step=1, limit=1
              $region53: #{inv_decoder_forward.12} parent=51 // loop_pre_header
                _
              $region54: #{inv_decoder_forward.12} parent=51 // loop_header
                %s426 = sphi 0, %s430
                %p427 = scmp.ge.s32.totalorder %s426, 1
                %s431 = sphi %s408, %s408
                %s432 = sphi %s416, %s416
              $region55: #{inv_decoder_forward.12} parent=51 // loop_header_branch
                %429 = sbr.rel (%p427) target = $region59
              $region56: #{inv_decoder_forward.12} parent=51 // loop_body
                %v433 = vld [vmem:[%s431] sm:%s424]
                %434 = vst [vmem:[%s432] sm:%s424] %v433
                %v435 = vld [vmem:[%s431 + $0x4] sm:%s424]
                %436 = vst [vmem:[%s432 + $0xc] sm:%s424] %v435
                %v437 = vld [vmem:[%s431 + $0x8] sm:%s424]
                %438 = vst [vmem:[%s432 + $0x18] sm:%s424] %v437
                %v439 = vld [vmem:[%s431 + $0xc] sm:%s424]
                %440 = vst [vmem:[%s432 + $0x24] sm:%s424] %v439
              $region57: #{inv_decoder_forward.12} parent=51 // loop_footer
                %s430 = sadd.s32 1, %s426
              $region58: #{inv_decoder_forward.12} parent=51 // loop_footer_branch
                %425 = sbr.rel target = $region54
              $region59: #{inv_decoder_forward.12} parent=51 // loop_exit
                _
            $region52: #{inv_decoder_forward.12} parent=43 // pred_fallthru
              _
          $region44: #{inv_decoder_forward.12} parent=39 // pred_fallthru
            _
          %469 = vnop
        $region40: #{inv_decoder_forward.12} parent=31 // pred_fallthru
          _
      $region32: #{inv_decoder_forward.12} parent=5 // pred_fallthru
        _
      %p470 = scmp.le.s32.totalorder 2, %s12
      // Predicated region
      $region78: #{inv_decoder_forward.12} parent=5 // pred_check
        %p471 = pneg %p470
      $region79: #{inv_decoder_forward.12} parent=5 // pred_check_branch
        %473 = sbr.rel (%p471) target = $region81
      $region80: #{inv_decoder_forward.12} parent=5 // pred_region
        %s474 = ssub.s32 %s12, 2
        // Predicated region
        $region82: #{inv_decoder_forward.12} parent=80 // pred_check
          %p475 = pneg %p128
        $region83: #{inv_decoder_forward.12} parent=80 // pred_check_branch
          %477 = sbr.rel (%p475) target = $region85
        $region84: #{inv_decoder_forward.12} parent=80 // pred_region
          %s478 = sand.u32 %s113, 1
          %s479 = sand.u32 %s113, 1
          %s480 = smul.addr %s479, 16
          %s481 = scalar_lea.vmem [#allocation4], %s480
        $region85: #{inv_decoder_forward.12} parent=80 // pred_fallthru
          _
      $region81: #{inv_decoder_forward.12} parent=5 // pred_fallthru
        _
    $region6: #{inv_decoder_forward.12} parent=1 // loop_footer
      %s16 = sadd.s32 1, %s12
    $region7: #{inv_decoder_forward.12} parent=1 // loop_footer_branch
      %11 = sbr.rel target = $region3
    $region8: #{inv_decoder_forward.12} parent=1 // loop_exit
      _
    %482 = vsyncpa [#allocation3], 1
    %s483 = scalar_lea.sflag [#allocation3], 1
    %484 = vsyncpa %s483, 1

// kernel: inv_decoder_forward.14
$region0: #{inv_decoder_forward.14}
  #allocation0 [shape = 'u32[]', space=smem, size = 0x4, offset = 0x4, fixed_abs, tag = 'smem constant byte address 0x4 - core index']
  #allocation1 [shape = 'u32[144,128]{1,0:T(1,128)}', space=vmem, size = 0x12000, scoped, tag = 'internal scratch']
  #allocation2 [shape = 'f32[32,128]{1,0:T(8,128)}', space=vmem, size = 0x4000, scoped, tag = 'scratch operand']
  %s0 = inlined_call_operand.vmem [shape: bf16[32,128], index: 0, kind: input, shape index: {}]
  %s1 = inlined_call_operand.vmem [shape: bf16[128,128], index: 1, kind: input, shape index: {}]
  %s2 = inlined_call_operand.vmem [shape: bf16[32,128], index: 2, kind: input, shape index: {}]
  %s3 = inlined_call_operand.vmem [shape: bf16[32,128], index: 3, kind: output, shape index: {}]
  %s4 = sld [smem:[#allocation0]]
  $region30: #{inv_decoder_forward.14} parent=0
    _
  %s6 = ssub.s32 1, %s4
  %s7 = scalar_select 0, %s6, %s4
  // Predicated region
  $region2: #{inv_decoder_forward.14} parent=0 // pred_check
    _
  $region3: #{inv_decoder_forward.14} parent=0 // pred_check_branch
    %9 = sbr.rel (0) target = $region5
  $region4: #{inv_decoder_forward.14} parent=0 // pred_region
    _
  $region5: #{inv_decoder_forward.14} parent=0 // pred_fallthru
    _
  // Predicated region
  $region6: #{inv_decoder_forward.14} parent=0 // pred_check
    _
  $region7: #{inv_decoder_forward.14} parent=0 // pred_check_branch
    %11 = sbr.rel (0) target = $region9
  $region8: #{inv_decoder_forward.14} parent=0 // pred_region
    _
  $region9: #{inv_decoder_forward.14} parent=0 // pred_fallthru
    _
  // Predicated region
  $region10: #{inv_decoder_forward.14} parent=0 // pred_check
    _
  $region11: #{inv_decoder_forward.14} parent=0 // pred_check_branch
    %13 = sbr.rel (0) target = $region13
  $region12: #{inv_decoder_forward.14} parent=0 // pred_region
    _
  $region13: #{inv_decoder_forward.14} parent=0 // pred_fallthru
    _
  %p15 = scmp.eq.s32.totalorder 0, 0
  // Predicated region
  $region14: #{inv_decoder_forward.14} parent=0 // pred_check
    %p16 = pneg %p15
  $region15: #{inv_decoder_forward.14} parent=0 // pred_check_branch
    %18 = sbr.rel (%p16) target = $region17
  $region16: #{inv_decoder_forward.14} parent=0 // pred_region
    %19 = vst [vmem:[#allocation2] sm:$0xff] 0.0
    %20 = vst [vmem:[#allocation2 + $0x8] sm:$0xff] 0.0
    %21 = vst [vmem:[#allocation2 + $0x10] sm:$0xff] 0.0
    %22 = vst [vmem:[#allocation2 + $0x18] sm:$0xff] 0.0
  $region17: #{inv_decoder_forward.14} parent=0 // pred_fallthru
    _
  %v23 = vld [vmem:[#allocation2] sm:$0xff]
  %v24 = vld [vmem:[#allocation2 + $0x8] sm:$0xff]
  %v25 = vld [vmem:[#allocation2 + $0x10] sm:$0xff]
  %v26 = vld [vmem:[#allocation2 + $0x18] sm:$0xff]
  %v27 = vld [vmem:[%s0] sm:$0xf]
  %v28 = vld [vmem:[%s0 + $0x4] sm:$0xf]
  %v29 = vld [vmem:[%s0 + $0x8] sm:$0xf]
  %v30 = vld [vmem:[%s0 + $0xc] sm:$0xf]
  %v31 = vld [vmem:[%s1] sm:$0xf]
  %v32 = vld [vmem:[%s1 + $0x4] sm:$0xf]
  %v33 = vld [vmem:[%s1 + $0x8] sm:$0xf]
  %v34 = vld [vmem:[%s1 + $0xc] sm:$0xf]
  %v35 = vld [vmem:[%s1 + $0x10] sm:$0xf]
  %v36 = vld [vmem:[%s1 + $0x14] sm:$0xf]
  %v37 = vld [vmem:[%s1 + $0x18] sm:$0xf]
  %v38 = vld [vmem:[%s1 + $0x1c] sm:$0xf]
  %v39 = vld [vmem:[%s1 + $0x20] sm:$0xf]
  %v40 = vld [vmem:[%s1 + $0x24] sm:$0xf]
  %v41 = vld [vmem:[%s1 + $0x28] sm:$0xf]
  %v42 = vld [vmem:[%s1 + $0x2c] sm:$0xf]
  %v43 = vld [vmem:[%s1 + $0x30] sm:$0xf]
  %v44 = vld [vmem:[%s1 + $0x34] sm:$0xf]
  %v45 = vld [vmem:[%s1 + $0x38] sm:$0xf]
  %v46 = vld [vmem:[%s1 + $0x3c] sm:$0xf]
  %v51 = vunpack.c.l.b16 %v27
  %v52 = vunpack.c.l.b16 %v28
  %v53 = vunpack.c.l.b16 %v29
  %v54 = vunpack.c.l.b16 %v30
  %v55 = vpack.c.b16 %v52, %v51
  %v56 = vpack.c.b16 %v54, %v53
  %v75 = vunpack.c.l.b16 %v31
  %v76 = vunpack.c.l.b16 %v32
  %v77 = vunpack.c.l.b16 %v33
  %v78 = vunpack.c.l.b16 %v34
  %v79 = vunpack.c.l.b16 %v35
  %v80 = vunpack.c.l.b16 %v36
  %v81 = vunpack.c.l.b16 %v37
  %v82 = vunpack.c.l.b16 %v38
  %v83 = vunpack.c.l.b16 %v39
  %v84 = vunpack.c.l.b16 %v40
  %v85 = vunpack.c.l.b16 %v41
  %v86 = vunpack.c.l.b16 %v42
  %v87 = vunpack.c.l.b16 %v43
  %v88 = vunpack.c.l.b16 %v44
  %v89 = vunpack.c.l.b16 %v45
  %v90 = vunpack.c.l.b16 %v46
  %v91 = vpack.c.b16 %v76, %v75
  %v92 = vpack.c.b16 %v78, %v77
  %v93 = vpack.c.b16 %v80, %v79
  %v94 = vpack.c.b16 %v82, %v81
  %v95 = vpack.c.b16 %v84, %v83
  %v96 = vpack.c.b16 %v86, %v85
  %v97 = vpack.c.b16 %v88, %v87
  %v98 = vpack.c.b16 %v90, %v89
  %107 = vmatprep.subr.bf16.mxu0 0
  %108 = vmatpush1.bf16.msra.mxu0 %v98
  %109 = vmatprep.subr.bf16.mxu0 0
  %110 = vmatpush1.bf16.msra.mxu0 %v97
  %111 = vmatprep.subr.bf16.mxu0 0
  %112 = vmatpush1.bf16.msra.mxu0 %v96
  %113 = vmatprep.subr.bf16.mxu0 0
  %114 = vmatpush1.bf16.msra.mxu0 %v95
  %115 = vmatprep.subr.bf16.mxu0 0
  %116 = vmatpush1.bf16.msra.mxu0 %v94
  %117 = vmatprep.subr.bf16.mxu0 0
  %118 = vmatpush1.bf16.msra.mxu0 %v93
  %119 = vmatprep.subr.bf16.mxu0 0
  %120 = vmatpush1.bf16.msra.mxu0 %v92
  %121 = vmatprep.subr.bf16.mxu0 0
  %122 = vmatpush1.bf16.msra.mxu0 %v91
  %123 = vmatprep.subr.bf16.mxu0 0
  %124 = vmatpush2.bf16.msra.mxu0 0
  %125 = vmatprep.subr.bf16.mxu0 0
  %126 = vmatpush2.bf16.msra.mxu0 0
  %127 = vmatprep.subr.bf16.mxu0 0
  %128 = vmatpush2.bf16.msra.mxu0 0
  %129 = vmatprep.subr.bf16.mxu0 0
  %130 = vmatpush2.bf16.msra.mxu0 0
  %131 = vmatprep.subr.bf16.mxu0 0
  %132 = vmatpush2.bf16.msra.mxu0 0
  %133 = vmatprep.subr.bf16.mxu0 0
  %134 = vmatpush2.bf16.msra.mxu0 0
  %135 = vmatprep.subr.bf16.mxu0 0
  %136 = vmatpush2.bf16.msra.mxu0 0
  %137 = vmatprep.subr.bf16.mxu0 0
  %138 = vmatpush2.bf16.msra.mxu0 0
  %139 = vmatprep.mubr.bf16.mxu0 0
  %140 = vmatmul.mubr.bf16.gmra.mxu0 %v55
  %v141 = vpop.f32.mrf.mxu0
  %v142 = vadd.f32 0.0, %v141
  %v143 = vpop.f32.mrf.mxu0
  %v144 = vpop.f32.mrf.mxu0
  %v145 = vadd.f32 0.0, %v144
  %v146 = vpop.f32.mrf.mxu0
  %147 = vmatprep.mubr.bf16.mxu0 0
  %148 = vmatmul.mubr.bf16.gmra.mxu0 %v56
  %v149 = vpop.f32.mrf.mxu0
  %v150 = vadd.f32 0.0, %v149
  %v151 = vpop.f32.mrf.mxu0
  %v152 = vpop.f32.mrf.mxu0
  %v153 = vadd.f32 0.0, %v152
  %v154 = vpop.f32.mrf.mxu0
  %155 = vdwg.mxu0
  %v156 = vadd.f32 %v23, %v142
  %v157 = vadd.f32 %v24, %v145
  %v158 = vadd.f32 %v25, %v150
  %v159 = vadd.f32 %v26, %v153
  %160 = vst [vmem:[#allocation2] sm:$0xff] %v156
  %161 = vst [vmem:[#allocation2 + $0x8] sm:$0xff] %v157
  %162 = vst [vmem:[#allocation2 + $0x10] sm:$0xff] %v158
  %163 = vst [vmem:[#allocation2 + $0x18] sm:$0xff] %v159
  // Predicated region
  $region18: #{inv_decoder_forward.14} parent=0 // pred_check
    %p164 = pneg %p15
  $region19: #{inv_decoder_forward.14} parent=0 // pred_check_branch
    %166 = sbr.rel (%p164) target = $region21
  $region20: #{inv_decoder_forward.14} parent=0 // pred_region
    %v167 = vld [vmem:[#allocation2] sm:$0xff]
    %v168 = vld [vmem:[#allocation2 + $0x8] sm:$0xff]
    %v169 = vld [vmem:[#allocation2 + $0x10] sm:$0xff]
    %v170 = vld [vmem:[#allocation2 + $0x18] sm:$0xff]
    %v171 = vld [vmem:[%s2] sm:$0xf]
    %v172 = vld [vmem:[%s2 + $0x4] sm:$0xf]
    %v173 = vld [vmem:[%s2 + $0x8] sm:$0xf]
    %v174 = vld [vmem:[%s2 + $0xc] sm:$0xf]
    %v175 = vunpack.c.l.bf16 %v171
    %v176 = vunpack.c.l.bf16 %v172
    %v177 = vunpack.c.l.bf16 %v173
    %v178 = vunpack.c.l.bf16 %v174
    %v179 = vadd.f32 %v167, %v175
    %v180 = vadd.f32 %v168, %v176
    %v181 = vadd.f32 %v169, %v177
    %v182 = vadd.f32 %v170, %v178
    %v183 = vpack.c.bf16 %v180, %v179
    %v184 = vpack.c.bf16 %v182, %v181
    %v187 = vunpack.c.l.b16 %v183
    %v188 = vunpack.c.h.b16 %v183
    %v189 = vunpack.c.l.b16 %v184
    %v190 = vunpack.c.h.b16 %v184
    %v191 = vpack.c.b16 %v187, %v187
    %v192 = vpack.c.b16 %v188, %v188
    %v193 = vpack.c.b16 %v189, %v189
    %v194 = vpack.c.b16 %v190, %v190
    %199 = vst [vmem:[%s3] sm:$0xf] %v191
    %200 = vst [vmem:[%s3 + $0x4] sm:$0xf] %v192
    %201 = vst [vmem:[%s3 + $0x8] sm:$0xf] %v193
    %202 = vst [vmem:[%s3 + $0xc] sm:$0xf] %v194
  $region21: #{inv_decoder_forward.14} parent=0 // pred_fallthru
    _
  // Predicated region
  $region22: #{inv_decoder_forward.14} parent=0 // pred_check
    _
  $region23: #{inv_decoder_forward.14} parent=0 // pred_check_branch
    %204 = sbr.rel (0) target = $region25
  $region24: #{inv_decoder_forward.14} parent=0 // pred_region
    _
  $region25: #{inv_decoder_forward.14} parent=0 // pred_fallthru
    _
  // Predicated region
  $region26: #{inv_decoder_forward.14} parent=0 // pred_check
    _
  $region27: #{inv_decoder_forward.14} parent=0 // pred_check_branch
    %206 = sbr.rel (0) target = $region29
  $region28: #{inv_decoder_forward.14} parent=0 // pred_region
    _
  $region29: #{inv_decoder_forward.14} parent=0 // pred_fallthru
    _

// kernel: inv_decoder_forward.13
$region0: #{inv_decoder_forward.13}
  #allocation0 [shape = 'u32[]', space=smem, size = 0x4, offset = 0x4, fixed_abs, tag = 'smem constant byte address 0x4 - core index']
  #allocation1 [shape = 'u32[144,128]{1,0:T(1,128)}', space=vmem, size = 0x12000, scoped, tag = 'internal scratch']
  #allocation2 [shape = 'f32[16,1]{1,0:T(8,128)}', space=vmem, size = 0x2000, scoped, tag = 'scratch operand']
  #allocation3 [shape = 'f32[16,1]{1,0:T(8,128)}', space=vmem, size = 0x2000, scoped, tag = 'scratch operand']
  #allocation4 [shape = 'f32[16,32]{1,0:T(8,128)}', space=vmem, size = 0x2000, scoped, tag = 'scratch operand']
  %s0 = inlined_call_operand.vmem [shape: bf16[2,4,16,32], index: 0, kind: input, shape index: {}]
  %s1 = inlined_call_operand.vmem [shape: bf16[2,4,16,32], index: 1, kind: input, shape index: {}]
  %s2 = inlined_call_operand.vmem [shape: bf16[2,4,16,32], index: 2, kind: input, shape index: {}]
  %s3 = inlined_call_operand.vmem [shape: f32[2,1,16], index: 3, kind: input, shape index: {}]
  %s4 = inlined_call_operand.vmem [shape: bf16[2,4,16,32], index: 4, kind: output, shape index: {}]
  %s5 = sld [smem:[#allocation0]]
  $region57: #{inv_decoder_forward.13} parent=0
    _
  %s7 = ssub.s32 1, %s5
  %s8 = scalar_select 0, %s7, %s5
  loop: start=0, step=1, limit=10
  $region2: #{inv_decoder_forward.13} parent=0 // loop_pre_header
    _
  $region3: #{inv_decoder_forward.13} parent=0 // loop_header
    %s10 = sphi 0, %s14
    %p11 = scmp.ge.s32.totalorder %s10, 10
    %s17 = sphi 0, %s43
    %s18 = sphi 0, %s39
    %s19 = sphi 0, %s35
    %s20 = sphi 0, %s31
    %s21 = sphi 0, %s17
    %s22 = sphi 0, %s18
    %s23 = sphi 0, %s19
    %s24 = sphi 0, %s20
    %s25 = sphi 0, %s21
    %s26 = sphi 0, %s22
    %s27 = sphi 0, %s23
    %s28 = sphi 0, %s24
    %s50 = sphi 0, %s52
    %s53 = sphi 0, %s50
    %s54 = sphi 0, %s53
    %s70 = sphi 0, %s54
    %s80 = sphi 0, %s82
    %s83 = sphi 0, %s80
    %s84 = sphi 0, %s83
    %s100 = sphi 0, %s84
    %s110 = sphi 0, %s112
    %s113 = sphi 0, %s110
    %s114 = sphi 0, %s113
    %s130 = sphi 0, %s114
    %s138 = sphi 0, %s140
    %s141 = sphi 0, %s138
    %s142 = sphi 0, %s141
    %s158 = sphi 0, %s142
    %s168 = sphi 0, %s170
    %s171 = sphi 0, %s168
    %s172 = sphi 0, %s171
    %s188 = sphi 0, %s172
  $region4: #{inv_decoder_forward.13} parent=0 // loop_header_branch
    %13 = sbr.rel (%p11) target = $region8
  $region5: #{inv_decoder_forward.13} parent=0 // loop_body
    %s15 = ssub.s32 %s10, 1
    %s16 = ssub.s32 %s10, 2
    %s29 = sadd.s32 1, %s20
    %p30 = scmp.ge.s32.totalorder %s29, 1
    %s31 = scalar_select %p30, 0, %s29
    %s32 = sadd.s32 1, %s19
    %s33 = scalar_select %p30, %s32, %s19
    %p34 = scmp.ge.s32.totalorder %s33, 1
    %s35 = scalar_select %p34, 0, %s33
    %s36 = sadd.s32 1, %s18
    %s37 = scalar_select %p34, %s36, %s18
    %p38 = scmp.ge.s32.totalorder %s37, 4
    %s39 = scalar_select %p38, 0, %s37
    %s40 = sadd.s32 1, %s17
    %s41 = scalar_select %p38, %s40, %s17
    %p42 = scmp.ge.s32.totalorder %s41, 2
    %s43 = scalar_select %p42, 0, %s41
    %s44 = ssub.s32 %s17, %s43
    %s45 = ssub.s32 %s18, %s39
    %s46 = sor.u32 %s44, %s45
    %s47 = ssub.s32 %s19, %s35
    %s48 = sor.u32 %s46, %s47
    %p49 = scmp.eq.s32.totalorder %s48, 0
    %s51 = sadd.s32 %s50, 1
    %s52 = scalar_select %p49, %s50, %s51
    %p55 = pneg %p49
    %p56 = scmp.eq.s32.totalorder %s10, 7
    %p57 = por %p55, %p56
    %p58 = scmp.ne.s32.totalorder %s50, %s53
    %p59 = scmp.eq.s32.totalorder %s10, 0
    %p60 = por %p58, %p59
    %p61 = scmp.ne.s32.totalorder %s50, %s53
    %p62 = scmp.eq.s32.totalorder %s15, 7
    %p63 = por %p61, %p62
    %p64 = scmp.ne.s32.totalorder %s53, %s54
    %p65 = scmp.eq.s32.totalorder %s15, 0
    %p66 = por %p64, %p65
    %p67 = scmp.ne.s32.totalorder %s53, %s54
    %p68 = scmp.eq.s32.totalorder %s16, 7
    %p69 = por %p67, %p68
    %p71 = scmp.ne.s32.totalorder %s54, %s70
    %p72 = scmp.eq.s32.totalorder %s16, 0
    %p73 = por %p71, %p72
    %s74 = ssub.s32 %s17, %s43
    %s75 = ssub.s32 %s18, %s39
    %s76 = sor.u32 %s74, %s75
    %s77 = ssub.s32 %s20, %s31
    %s78 = sor.u32 %s76, %s77
    %p79 = scmp.eq.s32.totalorder %s78, 0
    %s81 = sadd.s32 %s80, 1
    %s82 = scalar_select %p79, %s80, %s81
    %p85 = pneg %p79
    %p86 = scmp.eq.s32.totalorder %s10, 7
    %p87 = por %p85, %p86
    %p88 = scmp.ne.s32.totalorder %s80, %s83
    %p89 = scmp.eq.s32.totalorder %s10, 0
    %p90 = por %p88, %p89
    %p91 = scmp.ne.s32.totalorder %s80, %s83
    %p92 = scmp.eq.s32.totalorder %s15, 7
    %p93 = por %p91, %p92
    %p94 = scmp.ne.s32.totalorder %s83, %s84
    %p95 = scmp.eq.s32.totalorder %s15, 0
    %p96 = por %p94, %p95
    %p97 = scmp.ne.s32.totalorder %s83, %s84
    %p98 = scmp.eq.s32.totalorder %s16, 7
    %p99 = por %p97, %p98
    %p101 = scmp.ne.s32.totalorder %s84, %s100
    %p102 = scmp.eq.s32.totalorder %s16, 0
    %p103 = por %p101, %p102
    %s104 = ssub.s32 %s17, %s43
    %s105 = ssub.s32 %s18, %s39
    %s106 = sor.u32 %s104, %s105
    %s107 = ssub.s32 %s20, %s31
    %s108 = sor.u32 %s106, %s107
    %p109 = scmp.eq.s32.totalorder %s108, 0
    %s111 = sadd.s32 %s110, 1
    %s112 = scalar_select %p109, %s110, %s111
    %p115 = pneg %p109
    %p116 = scmp.eq.s32.totalorder %s10, 7
    %p117 = por %p115, %p116
    %p118 = scmp.ne.s32.totalorder %s110, %s113
    %p119 = scmp.eq.s32.totalorder %s10, 0
    %p120 = por %p118, %p119
    %p121 = scmp.ne.s32.totalorder %s110, %s113
    %p122 = scmp.eq.s32.totalorder %s15, 7
    %p123 = por %p121, %p122
    %p124 = scmp.ne.s32.totalorder %s113, %s114
    %p125 = scmp.eq.s32.totalorder %s15, 0
    %p126 = por %p124, %p125
    %p127 = scmp.ne.s32.totalorder %s113, %s114
    %p128 = scmp.eq.s32.totalorder %s16, 7
    %p129 = por %p127, %p128
    %p131 = scmp.ne.s32.totalorder %s114, %s130
    %p132 = scmp.eq.s32.totalorder %s16, 0
    %p133 = por %p131, %p132
    %s134 = ssub.s32 %s17, %s43
    %s135 = ssub.s32 %s20, %s31
    %s136 = sor.u32 %s134, %s135
    %p137 = scmp.eq.s32.totalorder %s136, 0
    %s139 = sadd.s32 %s138, 1
    %s140 = scalar_select %p137, %s138, %s139
    %p143 = pneg %p137
    %p144 = scmp.eq.s32.totalorder %s10, 7
    %p145 = por %p143, %p144
    %p146 = scmp.ne.s32.totalorder %s138, %s141
    %p147 = scmp.eq.s32.totalorder %s10, 0
    %p148 = por %p146, %p147
    %p149 = scmp.ne.s32.totalorder %s138, %s141
    %p150 = scmp.eq.s32.totalorder %s15, 7
    %p151 = por %p149, %p150
    %p152 = scmp.ne.s32.totalorder %s141, %s142
    %p153 = scmp.eq.s32.totalorder %s15, 0
    %p154 = por %p152, %p153
    %p155 = scmp.ne.s32.totalorder %s141, %s142
    %p156 = scmp.eq.s32.totalorder %s16, 7
    %p157 = por %p155, %p156
    %p159 = scmp.ne.s32.totalorder %s142, %s158
    %p160 = scmp.eq.s32.totalorder %s16, 0
    %p161 = por %p159, %p160
    %s162 = ssub.s32 %s17, %s43
    %s163 = ssub.s32 %s18, %s39
    %s164 = sor.u32 %s162, %s163
    %s165 = ssub.s32 %s19, %s35
    %s166 = sor.u32 %s164, %s165
    %p167 = scmp.eq.s32.totalorder %s166, 0
    %s169 = sadd.s32 %s168, 1
    %s170 = scalar_select %p167, %s168, %s169
    %p173 = pneg %p167
    %p174 = scmp.eq.s32.totalorder %s10, 7
    %p175 = por %p173, %p174
    %p176 = scmp.ne.s32.totalorder %s168, %s171
    %p177 = scmp.eq.s32.totalorder %s10, 0
    %p178 = por %p176, %p177
    %p179 = scmp.ne.s32.totalorder %s168, %s171
    %p180 = scmp.eq.s32.totalorder %s15, 7
    %p181 = por %p179, %p180
    %p182 = scmp.ne.s32.totalorder %s171, %s172
    %p183 = scmp.eq.s32.totalorder %s15, 0
    %p184 = por %p182, %p183
    %p185 = scmp.ne.s32.totalorder %s171, %s172
    %p186 = scmp.eq.s32.totalorder %s16, 7
    %p187 = por %p185, %p186
    %p189 = scmp.ne.s32.totalorder %s172, %s188
    %p190 = scmp.eq.s32.totalorder %s16, 0
    %p191 = por %p189, %p190
    %p192 = scmp.le.s32.totalorder 1, %s10
    %p193 = scmp.lt.s32.totalorder %s10, 9
    %p194 = pnand %p192, %p193
    %p195 = pneg %p194
    // Predicated region
    $region9: #{inv_decoder_forward.13} parent=5 // pred_check
      _
    $region10: #{inv_decoder_forward.13} parent=5 // pred_check_branch
      %197 = sbr.rel (%p194) target = $region12
    $region11: #{inv_decoder_forward.13} parent=5 // pred_region
      %s198 = ssub.s32 %s10, 1
    $region12: #{inv_decoder_forward.13} parent=5 // pred_fallthru
      _
    %p199 = scmp.lt.s32.totalorder %s10, 8
    // Predicated region
    $region13: #{inv_decoder_forward.13} parent=5 // pred_check
      %p200 = pneg %p199
    $region14: #{inv_decoder_forward.13} parent=5 // pred_check_branch
      %202 = sbr.rel (%p200) target = $region16
    $region15: #{inv_decoder_forward.13} parent=5 // pred_region
      // Predicated region
      $region17: #{inv_decoder_forward.13} parent=15 // pred_check
        %p203 = pneg %p60
      $region18: #{inv_decoder_forward.13} parent=15 // pred_check_branch
        %205 = sbr.rel (%p203) target = $region20
      $region19: #{inv_decoder_forward.13} parent=15 // pred_region
        %s206 = smul.u32 2, %s19
        %p207 = scmp.lt.s32.totalorder %s17, 1
        %s208 = scalar_select %p207, %s17, 1
        %p209 = scmp.lt.s32.totalorder %s18, 3
        %s210 = scalar_select %p209, %s18, 3
        %p211 = scmp.lt.s32.totalorder %s206, 1
        %s212 = scalar_select %p211, %s206, 1
        %s213 = smul.addr %s210, 2
        %s214 = sadd.s32 %s212, %s213
        %s215 = smul.addr %s208, 8
        %s216 = sadd.s32 %s214, %s215
        %s217 = smul.addr %s216, 4
        %s218 = scalar_lea.vmem %s0, %s217
        %s219 = smul.u32 2, %s19
      $region20: #{inv_decoder_forward.13} parent=15 // pred_fallthru
        _
      // Predicated region
      $region21: #{inv_decoder_forward.13} parent=15 // pred_check
        %p220 = pneg %p90
      $region22: #{inv_decoder_forward.13} parent=15 // pred_check_branch
        %222 = sbr.rel (%p220) target = $region24
      $region23: #{inv_decoder_forward.13} parent=15 // pred_region
        %s223 = smul.u32 2, %s20
        %p224 = scmp.lt.s32.totalorder %s17, 1
        %s225 = scalar_select %p224, %s17, 1
        %p226 = scmp.lt.s32.totalorder %s18, 3
        %s227 = scalar_select %p226, %s18, 3
        %p228 = scmp.lt.s32.totalorder %s223, 1
        %s229 = scalar_select %p228, %s223, 1
        %s230 = smul.addr %s227, 2
        %s231 = sadd.s32 %s229, %s230
        %s232 = smul.addr %s225, 8
        %s233 = sadd.s32 %s231, %s232
        %s234 = smul.addr %s233, 4
        %s235 = scalar_lea.vmem %s1, %s234
        %s236 = smul.u32 2, %s20
      $region24: #{inv_decoder_forward.13} parent=15 // pred_fallthru
        _
      // Predicated region
      $region25: #{inv_decoder_forward.13} parent=15 // pred_check
        %p237 = pneg %p120
      $region26: #{inv_decoder_forward.13} parent=15 // pred_check_branch
        %239 = sbr.rel (%p237) target = $region28
      $region27: #{inv_decoder_forward.13} parent=15 // pred_region
        %s240 = smul.u32 2, %s20
        %p241 = scmp.lt.s32.totalorder %s17, 1
        %s242 = scalar_select %p241, %s17, 1
        %p243 = scmp.lt.s32.totalorder %s18, 3
        %s244 = scalar_select %p243, %s18, 3
        %p245 = scmp.lt.s32.totalorder %s240, 1
        %s246 = scalar_select %p245, %s240, 1
        %s247 = smul.addr %s244, 2
        %s248 = sadd.s32 %s246, %s247
        %s249 = smul.addr %s242, 8
        %s250 = sadd.s32 %s248, %s249
        %s251 = smul.addr %s250, 4
        %s252 = scalar_lea.vmem %s2, %s251
        %s253 = smul.u32 2, %s20
      $region28: #{inv_decoder_forward.13} parent=15 // pred_fallthru
        _
      // Predicated region
      $region29: #{inv_decoder_forward.13} parent=15 // pred_check
        %p254 = pneg %p148
      $region30: #{inv_decoder_forward.13} parent=15 // pred_check_branch
        %256 = sbr.rel (%p254) target = $region32
      $region31: #{inv_decoder_forward.13} parent=15 // pred_region
        %p257 = scmp.lt.s32.totalorder %s17, 1
        %s258 = scalar_select %p257, %s17, 1
        %p259 = scmp.lt.s32.totalorder %s20, 0
        %s260 = scalar_select %p259, %s20, 0
        %s261 = sadd.s32 %s260, %s258
        %s262 = scalar_lea.vmem %s3, %s261
      $region32: #{inv_decoder_forward.13} parent=15 // pred_fallthru
        _
    $region16: #{inv_decoder_forward.13} parent=5 // pred_fallthru
      _
    %p263 = scmp.le.s32.totalorder 1, %s10
    %p264 = scmp.lt.s32.totalorder %s10, 9
    %p265 = pnand %p263, %p264
    %p266 = pneg %p265
    // Predicated region
    $region33: #{inv_decoder_forward.13} parent=5 // pred_check
      _
    $region34: #{inv_decoder_forward.13} parent=5 // pred_check_branch
      %268 = sbr.rel (%p265) target = $region36
    $region35: #{inv_decoder_forward.13} parent=5 // pred_region
      %s269 = ssub.s32 %s10, 1
      %s270 = smul.u32 2, %s23
      %p271 = scmp.lt.s32.totalorder %s21, 1
      %s272 = scalar_select %p271, %s21, 1
      %p273 = scmp.lt.s32.totalorder %s22, 3
      %s274 = scalar_select %p273, %s22, 3
      %p275 = scmp.lt.s32.totalorder %s270, 1
      %s276 = scalar_select %p275, %s270, 1
      %s277 = smul.addr %s274, 2
      %s278 = sadd.s32 %s276, %s277
      %s279 = smul.addr %s272, 8
      %s280 = sadd.s32 %s278, %s279
      %s281 = smul.addr %s280, 4
      %s282 = scalar_lea.vmem %s0, %s281
      %p283 = pneg %p66
      %p284 = pneg %p63
      %s285 = smul.u32 2, %s24
      %p286 = scmp.lt.s32.totalorder %s21, 1
      %s287 = scalar_select %p286, %s21, 1
      %p288 = scmp.lt.s32.totalorder %s22, 3
      %s289 = scalar_select %p288, %s22, 3
      %p290 = scmp.lt.s32.totalorder %s285, 1
      %s291 = scalar_select %p290, %s285, 1
      %s292 = smul.addr %s289, 2
      %s293 = sadd.s32 %s291, %s292
      %s294 = smul.addr %s287, 8
      %s295 = sadd.s32 %s293, %s294
      %s296 = smul.addr %s295, 4
      %s297 = scalar_lea.vmem %s1, %s296
      %p298 = pneg %p96
      %p299 = pneg %p93
      %s300 = smul.u32 2, %s24
      %p301 = scmp.lt.s32.totalorder %s21, 1
      %s302 = scalar_select %p301, %s21, 1
      %p303 = scmp.lt.s32.totalorder %s22, 3
      %s304 = scalar_select %p303, %s22, 3
      %p305 = scmp.lt.s32.totalorder %s300, 1
      %s306 = scalar_select %p305, %s300, 1
      %s307 = smul.addr %s304, 2
      %s308 = sadd.s32 %s306, %s307
      %s309 = smul.addr %s302, 8
      %s310 = sadd.s32 %s308, %s309
      %s311 = smul.addr %s310, 4
      %s312 = scalar_lea.vmem %s2, %s311
      %p313 = pneg %p126
      %p314 = pneg %p123
      %p315 = scmp.lt.s32.totalorder %s21, 1
      %s316 = scalar_select %p315, %s21, 1
      %p317 = scmp.lt.s32.totalorder %s24, 0
      %s318 = scalar_select %p317, %s24, 0
      %s319 = sadd.s32 %s318, %s316
      %s320 = scalar_lea.vmem %s3, %s319
      %p321 = pneg %p154
      %p322 = pneg %p151
      %p323 = pneg %p184
      %p324 = pneg %p181
      %s325 = smul.u32 2, %s23
      %p326 = scmp.lt.s32.totalorder %s21, 1
      %s327 = scalar_select %p326, %s21, 1
      %p328 = scmp.lt.s32.totalorder %s22, 3
      %s329 = scalar_select %p328, %s22, 3
      %p330 = scmp.lt.s32.totalorder %s325, 1
      %s331 = scalar_select %p330, %s325, 1
      %s332 = smul.addr %s329, 2
      %s333 = sadd.s32 %s331, %s332
      %s334 = smul.addr %s327, 8
      %s335 = sadd.s32 %s333, %s334
      %s336 = smul.addr %s335, 4
      %s337 = scalar_lea.vmem %s4, %s336
      %s338 = smul.u32 2, %s23
      %p339 = scmp.lt.s32.totalorder %s21, 1
      %s340 = scalar_select %p339, %s21, 1
      %p341 = scmp.lt.s32.totalorder %s22, 3
      %s342 = scalar_select %p341, %s22, 3
      %p343 = scmp.lt.s32.totalorder %s338, 1
      %s344 = scalar_select %p343, %s338, 1
      %s345 = smul.addr %s342, 2
      %s346 = sadd.s32 %s344, %s345
      %s347 = smul.addr %s340, 8
      %s348 = sadd.s32 %s346, %s347
      %s349 = smul.addr %s348, 4
      %s350 = scalar_lea.vmem %s0, %s349
      %s351 = smul.u32 2, %s23
      %s352 = smul.u32 2, %s24
      %p353 = scmp.lt.s32.totalorder %s21, 1
      %s354 = scalar_select %p353, %s21, 1
      %p355 = scmp.lt.s32.totalorder %s22, 3
      %s356 = scalar_select %p355, %s22, 3
      %p357 = scmp.lt.s32.totalorder %s352, 1
      %s358 = scalar_select %p357, %s352, 1
      %s359 = smul.addr %s356, 2
      %s360 = sadd.s32 %s358, %s359
      %s361 = smul.addr %s354, 8
      %s362 = sadd.s32 %s360, %s361
      %s363 = smul.addr %s362, 4
      %s364 = scalar_lea.vmem %s1, %s363
      %s365 = smul.u32 2, %s24
      %s366 = smul.u32 2, %s24
      %p367 = scmp.lt.s32.totalorder %s21, 1
      %s368 = scalar_select %p367, %s21, 1
      %p369 = scmp.lt.s32.totalorder %s22, 3
      %s370 = scalar_select %p369, %s22, 3
      %p371 = scmp.lt.s32.totalorder %s366, 1
      %s372 = scalar_select %p371, %s366, 1
      %s373 = smul.addr %s370, 2
      %s374 = sadd.s32 %s372, %s373
      %s375 = smul.addr %s368, 8
      %s376 = sadd.s32 %s374, %s375
      %s377 = smul.addr %s376, 4
      %s378 = scalar_lea.vmem %s2, %s377
      %s379 = smul.u32 2, %s24
      %p380 = scmp.lt.s32.totalorder %s21, 1
      %s381 = scalar_select %p380, %s21, 1
      %p382 = scmp.lt.s32.totalorder %s24, 0
      %s383 = scalar_select %p382, %s24, 0
      %s384 = sadd.s32 %s383, %s381
      %s385 = scalar_lea.vmem %s3, %s384
      %s386 = smul.u32 2, %s23
      %p387 = scmp.lt.s32.totalorder %s21, 1
      %s388 = scalar_select %p387, %s21, 1
      %p389 = scmp.lt.s32.totalorder %s22, 3
      %s390 = scalar_select %p389, %s22, 3
      %p391 = scmp.lt.s32.totalorder %s386, 1
      %s392 = scalar_select %p391, %s386, 1
      %s393 = smul.addr %s390, 2
      %s394 = sadd.s32 %s392, %s393
      %s395 = smul.addr %s388, 8
      %s396 = sadd.s32 %s394, %s395
      %s397 = smul.addr %s396, 4
      %s398 = scalar_lea.vmem %s4, %s397
      %s399 = smul.u32 2, %s23
      %p401 = scmp.eq.s32.totalorder %s24, 0
      // Predicated region
      $region37: #{inv_decoder_forward.13} parent=35 // pred_check
        %p402 = pneg %p401
      $region38: #{inv_decoder_forward.13} parent=35 // pred_check_branch
        %404 = sbr.rel (%p402) target = $region40
      $region39: #{inv_decoder_forward.13} parent=35 // pred_region
        %vm405 = vcmask 7168
        %406 = vst.msk [vmem:[#allocation2] sm:$0xff] %vm405, -inf
        %407 = vst.msk [vmem:[#allocation2 + $0x8] sm:$0xff] %vm405, -inf
        %408 = vst.msk [vmem:[#allocation3] sm:$0xff] %vm405, 0.0
        %409 = vst.msk [vmem:[#allocation3 + $0x8] sm:$0xff] %vm405, 0.0
        %vm410 = vcmask 261120
        %411 = vst.msk [vmem:[#allocation4] sm:$0xff] %vm410, 0.0
        %412 = vst.msk [vmem:[#allocation4 + $0x8] sm:$0xff] %vm410, 0.0
      $region40: #{inv_decoder_forward.13} parent=35 // pred_fallthru
        _
      %v413 = vld [vmem:[%s350] sm:$0xf]
      %v414 = vld [vmem:[%s350 + $0x4] sm:$0xf]
      %v415 = vld [vmem:[%s364] sm:$0xf]
      %v416 = vld [vmem:[%s364 + $0x4] sm:$0xf]
      %v417 = vld [vmem:[%s378] sm:$0xf]
      %v418 = vld [vmem:[%s378 + $0x4] sm:$0xf]
      %v421 = vunpack.c.l.b16 %v413
      %v422 = vunpack.c.l.b16 %v414
      %v423 = vpack.c.b16 %v422, %v421
      %v426 = vunpack.c.l.b16 %v415
      %v427 = vunpack.c.l.b16 %v416
      %v428 = vpack.c.b16 %v427, %v426
      %vm429 = vcmask 261120
      %v431 = vsel %vm429, %v423, 0
      %v434 = vsel %vm429, %v428, 0
      %436 = vmatprep.subr.bf16.mxu0 0
      %437 = vmatpush1.bf16.xpose.msra.mxu0 0
      %438 = vmatprep.subr.bf16.mxu0 0
      %439 = vmatpush1.bf16.xpose.msra.mxu0 0
      %440 = vmatprep.subr.bf16.mxu0 0
      %441 = vmatpush1.bf16.xpose.msra.mxu0 0
      %442 = vmatprep.subr.bf16.mxu0 0
      %443 = vmatpush1.bf16.xpose.msra.mxu0 0
      %444 = vmatprep.subr.bf16.mxu0 0
      %445 = vmatpush1.bf16.xpose.msra.mxu0 0
      %446 = vmatprep.subr.bf16.mxu0 0
      %447 = vmatpush1.bf16.xpose.msra.mxu0 0
      %448 = vmatprep.subr.bf16.mxu0 0
      %449 = vmatpush1.bf16.xpose.msra.mxu0 0
      %450 = vmatprep.subr.bf16.mxu0 0
      %451 = vmatpush1.bf16.xpose.msra.mxu0 %v434
      %452 = vmatprep.subr.bf16.mxu0 0
      %453 = vmatpush2.bf16.xpose.msra.mxu0 0
      %454 = vmatprep.subr.bf16.mxu0 0
      %455 = vmatpush2.bf16.xpose.msra.mxu0 0
      %456 = vmatprep.subr.bf16.mxu0 0
      %457 = vmatpush2.bf16.xpose.msra.mxu0 0
      %458 = vmatprep.subr.bf16.mxu0 0
      %459 = vmatpush2.bf16.xpose.msra.mxu0 0
      %460 = vmatprep.subr.bf16.mxu0 0
      %461 = vmatpush2.bf16.xpose.msra.mxu0 0
      %462 = vmatprep.subr.bf16.mxu0 0
      %463 = vmatpush2.bf16.xpose.msra.mxu0 0
      %464 = vmatprep.subr.bf16.mxu0 0
      %465 = vmatpush2.bf16.xpose.msra.mxu0 0
      %466 = vmatprep.subr.bf16.mxu0 0
      %467 = vmatpush2.bf16.xpose.msra.mxu0 0
      %468 = vmatprep.mubr.bf16.mxu0 0
      %469 = vmatmul.mubr.bf16.gmra.mxu0 %v431
      %v470 = vpop.f32.mrf.mxu0
      %v471 = vadd.f32 0.0, %v470
      %v472 = vpop.f32.mrf.mxu0
      %v473 = vpop.f32.mrf.mxu0
      %v474 = vadd.f32 0.0, %v473
      %v475 = vpop.f32.mrf.mxu0
      %476 = vdwg.mxu0
      %v477 = vmul.f32 %v471, 0.17677669
      %v478 = vmul.f32 %v474, 0.17677669
      %v479 = vld [vmem:[%s385] sm:$0x1]
      %v481 = vlaneseq
      %v482 = vshrl.u32 %v481, 7
      %v483 = vsub.s32 0, %v482
      %v484 = vrot.slane %v479, %v483
      %v486 = vadd.f32 %v477, %v484
      %v487 = vadd.f32 %v478, %v484
      %s488 = smul.u32 %s23, 16
      %v489 = vlaneseq
      %v490 = vshrl.u32 %v489, 7
      %v491 = vadd.s32 %v490, 8
      %v492 = vstv %s488
      %v493 = vadd.s32 %v492, %v490
      %v494 = vadd.s32 %v492, %v491
      %s495 = smul.u32 %s24, 16
      %v496 = vlaneseq
      %v497 = vand.u32 %v496, 127
      %v498 = vstv %s495
      %v499 = vadd.s32 %v498, %v497
      %vm500 = vcmp.ge.s32.totalorder %v493, %v499
      %vm501 = vcmp.ge.s32.totalorder %v494, %v499
      %v502 = vsel %vm500, %v486, -1e+30
      %v503 = vsel %vm501, %v487, -1e+30
      %v504 = vld [vmem:[#allocation2] sm:$0xff]
      %v505 = vld [vmem:[#allocation2 + $0x8] sm:$0xff]
      %vm506 = vcmask 130048
      %v507 = vsel %vm506, %v502, -inf
      %508 = vmax.xlane.f32.xlu0 %v507
      %v509 = vpop.xlane.xlu0 %508
      %v510 = vsel %vm506, %v503, -inf
      %511 = vmax.xlane.f32.xlu0 %v510
      %v512 = vpop.xlane.xlu0 %511
      %v513 = vmax.f32 %v504, %v509
      %v514 = vmax.f32 %v505, %v512
      %v515 = vsub.f32 %v504, %v513
      %v516 = vsub.f32 %v505, %v514
      %v517 = vmul.f32 %v515, 1.442695
      %v518 = vpow.pop %v517
      %v519 = vmul.f32 %v516, 1.442695
      %v520 = vpow.pop %v519
      %522 = vset.pattern.permute.xlu0 0
      %523 = vperm.xlu0 %522, %v513
      %v524 = vpop.permute.xlu0 %523
      %527 = vset.pattern.permute.xlu0 0
      %528 = vperm.xlu0 %527, %v514
      %v529 = vpop.permute.xlu0 %528
      %v531 = vsub.f32 %v502, %v524
      %v532 = vsub.f32 %v503, %v529
      %v533 = vmul.f32 %v531, 1.442695
      %v534 = vpow.pop %v533
      %v535 = vmul.f32 %v532, 1.442695
      %v536 = vpow.pop %v535
      %v537 = vld [vmem:[#allocation3] sm:$0xff]
      %v538 = vld [vmem:[#allocation3 + $0x8] sm:$0xff]
      %v539 = vmul.f32 %v518, %v537
      %v540 = vmul.f32 %v520, %v538
      %v541 = vsel %vm506, %v534, 0.0
      %542 = vadd.xlane.f32.xlu0 %v541
      %v543 = vpop.xlane.xlu0 %542
      %v544 = vsel %vm506, %v536, 0.0
      %545 = vadd.xlane.f32.xlu0 %v544
      %v546 = vpop.xlane.xlu0 %545
      %v547 = vadd.f32 %v539, %v543
      %v548 = vadd.f32 %v540, %v546
      %vm549 = vcmask 7168
      %550 = vst.msk [vmem:[#allocation3] sm:$0xff] %vm549, %v547
      %551 = vst.msk [vmem:[#allocation3 + $0x8] sm:$0xff] %vm549, %v548
      %v552 = vld [vmem:[#allocation4] sm:$0xff]
      %v553 = vld [vmem:[#allocation4 + $0x8] sm:$0xff]
      %555 = vset.pattern.permute.xlu0 0
      %556 = vperm.xlu0 %555, %v518
      %v557 = vpop.permute.xlu0 %556
      %560 = vset.pattern.permute.xlu0 0
      %561 = vperm.xlu0 %560, %v520
      %v562 = vpop.permute.xlu0 %561
      %v564 = vmul.f32 %v557, %v552
      %v565 = vmul.f32 %v562, %v553
      %v566 = vpack.c.bf16 %v536, %v534
      %v569 = vunpack.c.l.b16 %v417
      %v570 = vunpack.c.l.b16 %v418
      %v571 = vpack.c.b16 %v570, %v569
      %v574 = vsel %vm506, %v566, 0
      %576 = vmatprep.subr.bf16.mxu0 0
      %577 = vmatpush1.bf16.msra.mxu0 0
      %578 = vmatprep.subr.bf16.mxu0 0
      %579 = vmatpush1.bf16.msra.mxu0 0
      %580 = vmatprep.subr.bf16.mxu0 0
      %581 = vmatpush1.bf16.msra.mxu0 0
      %582 = vmatprep.subr.bf16.mxu0 0
      %583 = vmatpush1.bf16.msra.mxu0 0
      %584 = vmatprep.subr.bf16.mxu0 0
      %585 = vmatpush1.bf16.msra.mxu0 0
      %586 = vmatprep.subr.bf16.mxu0 0
      %587 = vmatpush1.bf16.msra.mxu0 0
      %588 = vmatprep.subr.bf16.mxu0 0
      %589 = vmatpush1.bf16.msra.mxu0 0
      %590 = vmatprep.subr.bf16.mxu0 0
      %591 = vmatpush1.bf16.msra.mxu0 %v571
      %592 = vmatprep.subr.bf16.mxu0 0
      %593 = vmatpush2.bf16.msra.mxu0 0
      %594 = vmatprep.subr.bf16.mxu0 0
      %595 = vmatpush2.bf16.msra.mxu0 0
      %596 = vmatprep.subr.bf16.mxu0 0
      %597 = vmatpush2.bf16.msra.mxu0 0
      %598 = vmatprep.subr.bf16.mxu0 0
      %599 = vmatpush2.bf16.msra.mxu0 0
      %600 = vmatprep.subr.bf16.mxu0 0
      %601 = vmatpush2.bf16.msra.mxu0 0
      %602 = vmatprep.subr.bf16.mxu0 0
      %603 = vmatpush2.bf16.msra.mxu0 0
      %604 = vmatprep.subr.bf16.mxu0 0
      %605 = vmatpush2.bf16.msra.mxu0 0
      %606 = vmatprep.subr.bf16.mxu0 0
      %607 = vmatpush2.bf16.msra.mxu0 0
      %608 = vmatprep.mubr.bf16.mxu0 0
      %609 = vmatmul.mubr.bf16.gmra.mxu0 %v574
      %v610 = vpop.f32.mrf.mxu0
      %v611 = vadd.f32 0.0, %v610
      %v612 = vpop.f32.mrf.mxu0
      %v613 = vpop.f32.mrf.mxu0
      %v614 = vadd.f32 0.0, %v613
      %v615 = vpop.f32.mrf.mxu0
      %616 = vdwg.mxu0
      %v617 = vadd.f32 %v564, %v611
      %v618 = vadd.f32 %v565, %v614
      %619 = vst.msk [vmem:[#allocation4] sm:$0xff] %vm429, %v617
      %620 = vst.msk [vmem:[#allocation4 + $0x8] sm:$0xff] %vm429, %v618
      %621 = vst.msk [vmem:[#allocation2] sm:$0xff] %vm549, %v513
      %622 = vst.msk [vmem:[#allocation2 + $0x8] sm:$0xff] %vm549, %v514
      // Predicated region
      $region41: #{inv_decoder_forward.13} parent=35 // pred_check
        %p623 = pneg %p401
      $region42: #{inv_decoder_forward.13} parent=35 // pred_check_branch
        %625 = sbr.rel (%p623) target = $region44
      $region43: #{inv_decoder_forward.13} parent=35 // pred_region
        %v626 = vld [vmem:[#allocation4] sm:$0xff]
        %v627 = vld [vmem:[#allocation4 + $0x8] sm:$0xff]
        %v628 = vld [vmem:[#allocation3] sm:$0xff]
        %v629 = vld [vmem:[#allocation3 + $0x8] sm:$0xff]
        %v630 = vrcp.pop %v628
        %v631 = vrcp.pop %v629
        %633 = vset.pattern.permute.xlu0 0
        %634 = vperm.xlu0 %633, %v630
        %v635 = vpop.permute.xlu0 %634
        %638 = vset.pattern.permute.xlu0 0
        %639 = vperm.xlu0 %638, %v631
        %v640 = vpop.permute.xlu0 %639
        %v642 = vmul.f32 %v626, %v635
        %v643 = vmul.f32 %v627, %v640
        %v644 = vpack.c.bf16 %v643, %v642
        %v646 = vunpack.c.l.b16 %v644
        %v647 = vunpack.c.h.b16 %v644
        %v648 = vpack.c.b16 %v646, %v646
        %v649 = vpack.c.b16 %v647, %v647
        %vm652 = vcmask 257024
        %653 = vst.msk [vmem:[%s398] sm:$0xf] %vm652, %v648
        %654 = vst.msk [vmem:[%s398 + $0x4] sm:$0xf] %vm652, %v649
      $region44: #{inv_decoder_forward.13} parent=35 // pred_fallthru
        _
      %s655 = smul.u32 2, %s23
      %p656 = scmp.lt.s32.totalorder %s21, 1
      %s657 = scalar_select %p656, %s21, 1
      %p658 = scmp.lt.s32.totalorder %s22, 3
      %s659 = scalar_select %p658, %s22, 3
      %p660 = scmp.lt.s32.totalorder %s655, 1
      %s661 = scalar_select %p660, %s655, 1
      %s662 = smul.addr %s659, 2
      %s663 = sadd.s32 %s661, %s662
      %s664 = smul.addr %s657, 8
      %s665 = sadd.s32 %s663, %s664
      %s666 = smul.addr %s665, 4
      %s667 = scalar_lea.vmem %s4, %s666
      // Predicated region
      $region45: #{inv_decoder_forward.13} parent=35 // pred_check
        %p668 = pneg %p181
      $region46: #{inv_decoder_forward.13} parent=35 // pred_check_branch
        %670 = sbr.rel (%p668) target = $region48
      $region47: #{inv_decoder_forward.13} parent=35 // pred_region
        %s671 = smul.u32 2, %s23
      $region48: #{inv_decoder_forward.13} parent=35 // pred_fallthru
        _
    $region36: #{inv_decoder_forward.13} parent=5 // pred_fallthru
      _
    %p672 = scmp.le.s32.totalorder 2, %s10
    // Predicated region
    $region49: #{inv_decoder_forward.13} parent=5 // pred_check
      %p673 = pneg %p672
    $region50: #{inv_decoder_forward.13} parent=5 // pred_check_branch
      %675 = sbr.rel (%p673) target = $region52
    $region51: #{inv_decoder_forward.13} parent=5 // pred_region
      %s676 = ssub.s32 %s10, 2
      // Predicated region
      $region53: #{inv_decoder_forward.13} parent=51 // pred_check
        %p677 = pneg %p187
      $region54: #{inv_decoder_forward.13} parent=51 // pred_check_branch
        %679 = sbr.rel (%p677) target = $region56
      $region55: #{inv_decoder_forward.13} parent=51 // pred_region
        %s680 = smul.u32 2, %s27
        %p681 = scmp.lt.s32.totalorder %s25, 1
        %s682 = scalar_select %p681, %s25, 1
        %p683 = scmp.lt.s32.totalorder %s26, 3
        %s684 = scalar_select %p683, %s26, 3
        %p685 = scmp.lt.s32.totalorder %s680, 1
        %s686 = scalar_select %p685, %s680, 1
        %s687 = smul.addr %s684, 2
        %s688 = sadd.s32 %s686, %s687
        %s689 = smul.addr %s682, 8
        %s690 = sadd.s32 %s688, %s689
        %s691 = smul.addr %s690, 4
        %s692 = scalar_lea.vmem %s4, %s691
      $region56: #{inv_decoder_forward.13} parent=51 // pred_fallthru
        _
    $region52: #{inv_decoder_forward.13} parent=5 // pred_fallthru
      _
  $region6: #{inv_decoder_forward.13} parent=0 // loop_footer
    %s14 = sadd.s32 1, %s10
  $region7: #{inv_decoder_forward.13} parent=0 // loop_footer_branch
    %9 = sbr.rel target = $region3
  $region8: #{inv_decoder_forward.13} parent=0 // loop_exit
    _

// kernel: inv_decoder_forward.15
$region0: #{inv_decoder_forward.15}
  #allocation0 [shape = 'u32[]', space=smem, size = 0x4, offset = 0x4, fixed_abs, tag = 'smem constant byte address 0x4 - core index']
  #allocation1 [shape = 'u32[144,128]{1,0:T(1,128)}', space=vmem, size = 0x12000, scoped, tag = 'internal scratch']
  %s0 = inlined_call_operand.vmem [shape: bf16[32,128], index: 0, kind: input, shape index: {}]
  %s1 = inlined_call_operand.vmem [shape: f32[1,128], index: 1, kind: input, shape index: {}]
  %s2 = inlined_call_operand.vmem [shape: bf16[128,256], index: 2, kind: input, shape index: {}]
  %s3 = inlined_call_operand.vmem [shape: bf16[32,256], index: 3, kind: output, shape index: {}]
  %s4 = sld [smem:[#allocation0]]
  $region22: #{inv_decoder_forward.15} parent=0
    _
  %s6 = ssub.s32 1, %s4
  %s7 = scalar_select 0, %s6, %s4
  // Predicated region
  $region2: #{inv_decoder_forward.15} parent=0 // pred_check
    _
  $region3: #{inv_decoder_forward.15} parent=0 // pred_check_branch
    %9 = sbr.rel (0) target = $region5
  $region4: #{inv_decoder_forward.15} parent=0 // pred_region
    _
  $region5: #{inv_decoder_forward.15} parent=0 // pred_fallthru
    _
  // Predicated region
  $region6: #{inv_decoder_forward.15} parent=0 // pred_check
    _
  $region7: #{inv_decoder_forward.15} parent=0 // pred_check_branch
    %11 = sbr.rel (0) target = $region9
  $region8: #{inv_decoder_forward.15} parent=0 // pred_region
    _
  $region9: #{inv_decoder_forward.15} parent=0 // pred_fallthru
    _
  // Predicated region
  $region10: #{inv_decoder_forward.15} parent=0 // pred_check
    _
  $region11: #{inv_decoder_forward.15} parent=0 // pred_check_branch
    %13 = sbr.rel (0) target = $region13
  $region12: #{inv_decoder_forward.15} parent=0 // pred_region
    _
  $region13: #{inv_decoder_forward.15} parent=0 // pred_fallthru
    _
  %v15 = vld [vmem:[%s0] sm:$0xf]
  %v16 = vld [vmem:[%s0 + $0x4] sm:$0xf]
  %v17 = vld [vmem:[%s0 + $0x8] sm:$0xf]
  %v18 = vld [vmem:[%s0 + $0xc] sm:$0xf]
  %v19 = vunpack.c.l.bf16 %v15
  %v20 = vunpack.c.l.bf16 %v16
  %v21 = vunpack.c.l.bf16 %v17
  %v22 = vunpack.c.l.bf16 %v18
  %v23 = vmul.f32 %v19, %v19
  %v24 = vmul.f32 %v20, %v20
  %v25 = vmul.f32 %v21, %v21
  %v26 = vmul.f32 %v22, %v22
  %27 = vadd.xlane.f32.xlu0 %v23
  %v28 = vpop.xlane.xlu0 %27
  %29 = vadd.xlane.f32.xlu0 %v24
  %v30 = vpop.xlane.xlu0 %29
  %31 = vadd.xlane.f32.xlu0 %v25
  %v32 = vpop.xlane.xlu0 %31
  %33 = vadd.xlane.f32.xlu0 %v26
  %v34 = vpop.xlane.xlu0 %33
  %v35 = vrcp.pop 128.0
  %v36 = vmul.f32 %v28, %v35
  %v37 = vmul.f32 %v30, %v35
  %v38 = vmul.f32 %v32, %v35
  %v39 = vmul.f32 %v34, %v35
  %v40 = vadd.f32 %v36, 1e-06
  %v41 = vadd.f32 %v37, 1e-06
  %v42 = vadd.f32 %v38, 1e-06
  %v43 = vadd.f32 %v39, 1e-06
  %v44 = vrsqrt.pop %v40
  %v45 = vrsqrt.pop %v41
  %v46 = vrsqrt.pop %v42
  %v47 = vrsqrt.pop %v43
  %v48 = vmul.f32 %v19, %v44
  %v49 = vmul.f32 %v20, %v45
  %v50 = vmul.f32 %v21, %v46
  %v51 = vmul.f32 %v22, %v47
  %v52 = vld [vmem:[%s1] sm:$0x1]
  %v54 = vlaneseq
  %v55 = vshrl.u32 %v54, 7
  %v56 = vsub.s32 0, %v55
  %v57 = vrot.slane %v52, %v56
  %v59 = vmul.f32 %v48, %v57
  %v60 = vmul.f32 %v49, %v57
  %v61 = vmul.f32 %v50, %v57
  %v62 = vmul.f32 %v51, %v57
  %v63 = vpack.c.bf16 %v60, %v59
  %v64 = vpack.c.bf16 %v62, %v61
  %v65 = vld [vmem:[%s2] sm:$0xff]
  %v66 = vld [vmem:[%s2 + $0x8] sm:$0xff]
  %v67 = vld [vmem:[%s2 + $0x10] sm:$0xff]
  %v68 = vld [vmem:[%s2 + $0x18] sm:$0xff]
  %v69 = vld [vmem:[%s2 + $0x20] sm:$0xff]
  %v70 = vld [vmem:[%s2 + $0x28] sm:$0xff]
  %v71 = vld [vmem:[%s2 + $0x30] sm:$0xff]
  %v72 = vld [vmem:[%s2 + $0x38] sm:$0xff]
  %v73 = vld [vmem:[%s2 + $0x40] sm:$0xff]
  %v74 = vld [vmem:[%s2 + $0x48] sm:$0xff]
  %v75 = vld [vmem:[%s2 + $0x50] sm:$0xff]
  %v76 = vld [vmem:[%s2 + $0x58] sm:$0xff]
  %v77 = vld [vmem:[%s2 + $0x60] sm:$0xff]
  %v78 = vld [vmem:[%s2 + $0x68] sm:$0xff]
  %v79 = vld [vmem:[%s2 + $0x70] sm:$0xff]
  %v80 = vld [vmem:[%s2 + $0x78] sm:$0xff]
  %v97 = vunpack.c.l.b16 %v65
  %v98 = vunpack.c.h.b16 %v65
  %v99 = vunpack.c.l.b16 %v66
  %v100 = vunpack.c.h.b16 %v66
  %v101 = vunpack.c.l.b16 %v67
  %v102 = vunpack.c.h.b16 %v67
  %v103 = vunpack.c.l.b16 %v68
  %v104 = vunpack.c.h.b16 %v68
  %v105 = vunpack.c.l.b16 %v69
  %v106 = vunpack.c.h.b16 %v69
  %v107 = vunpack.c.l.b16 %v70
  %v108 = vunpack.c.h.b16 %v70
  %v109 = vunpack.c.l.b16 %v71
  %v110 = vunpack.c.h.b16 %v71
  %v111 = vunpack.c.l.b16 %v72
  %v112 = vunpack.c.h.b16 %v72
  %v113 = vunpack.c.l.b16 %v73
  %v114 = vunpack.c.h.b16 %v73
  %v115 = vunpack.c.l.b16 %v74
  %v116 = vunpack.c.h.b16 %v74
  %v117 = vunpack.c.l.b16 %v75
  %v118 = vunpack.c.h.b16 %v75
  %v119 = vunpack.c.l.b16 %v76
  %v120 = vunpack.c.h.b16 %v76
  %v121 = vunpack.c.l.b16 %v77
  %v122 = vunpack.c.h.b16 %v77
  %v123 = vunpack.c.l.b16 %v78
  %v124 = vunpack.c.h.b16 %v78
  %v125 = vunpack.c.l.b16 %v79
  %v126 = vunpack.c.h.b16 %v79
  %v127 = vunpack.c.l.b16 %v80
  %v128 = vunpack.c.h.b16 %v80
  %v129 = vpack.c.b16 %v99, %v97
  %v130 = vpack.c.b16 %v100, %v98
  %v131 = vpack.c.b16 %v103, %v101
  %v132 = vpack.c.b16 %v104, %v102
  %v133 = vpack.c.b16 %v107, %v105
  %v134 = vpack.c.b16 %v108, %v106
  %v135 = vpack.c.b16 %v111, %v109
  %v136 = vpack.c.b16 %v112, %v110
  %v137 = vpack.c.b16 %v115, %v113
  %v138 = vpack.c.b16 %v116, %v114
  %v139 = vpack.c.b16 %v119, %v117
  %v140 = vpack.c.b16 %v120, %v118
  %v141 = vpack.c.b16 %v123, %v121
  %v142 = vpack.c.b16 %v124, %v122
  %v143 = vpack.c.b16 %v127, %v125
  %v144 = vpack.c.b16 %v128, %v126
  %161 = vmatprep.subr.bf16.mxu0 %v144
  %162 = vmatpush1.bf16.msra.mxu0 %v143
  %163 = vmatprep.subr.bf16.mxu0 %v142
  %164 = vmatpush1.bf16.msra.mxu0 %v141
  %165 = vmatprep.subr.bf16.mxu0 %v140
  %166 = vmatpush1.bf16.msra.mxu0 %v139
  %167 = vmatprep.subr.bf16.mxu0 %v138
  %168 = vmatpush1.bf16.msra.mxu0 %v137
  %169 = vmatprep.subr.bf16.mxu0 %v136
  %170 = vmatpush1.bf16.msra.mxu0 %v135
  %171 = vmatprep.subr.bf16.mxu0 %v134
  %172 = vmatpush1.bf16.msra.mxu0 %v133
  %173 = vmatprep.subr.bf16.mxu0 %v132
  %174 = vmatpush1.bf16.msra.mxu0 %v131
  %175 = vmatprep.subr.bf16.mxu0 %v130
  %176 = vmatpush1.bf16.msra.mxu0 %v129
  %177 = vmatprep.subr.bf16.mxu0 0
  %178 = vmatpush2.bf16.msra.mxu0 0
  %179 = vmatprep.subr.bf16.mxu0 0
  %180 = vmatpush2.bf16.msra.mxu0 0
  %181 = vmatprep.subr.bf16.mxu0 0
  %182 = vmatpush2.bf16.msra.mxu0 0
  %183 = vmatprep.subr.bf16.mxu0 0
  %184 = vmatpush2.bf16.msra.mxu0 0
  %185 = vmatprep.subr.bf16.mxu0 0
  %186 = vmatpush2.bf16.msra.mxu0 0
  %187 = vmatprep.subr.bf16.mxu0 0
  %188 = vmatpush2.bf16.msra.mxu0 0
  %189 = vmatprep.subr.bf16.mxu0 0
  %190 = vmatpush2.bf16.msra.mxu0 0
  %191 = vmatprep.subr.bf16.mxu0 0
  %192 = vmatpush2.bf16.msra.mxu0 0
  %193 = vmatprep.mubr.bf16.mxu0 0
  %194 = vmatmul.mubr.bf16.gmra.mxu0 %v63
  %v195 = vpop.f32.mrf.mxu0
  %v196 = vadd.f32 0.0, %v195
  %v197 = vpop.f32.mrf.mxu0
  %v198 = vadd.f32 0.0, %v197
  %v199 = vpop.f32.mrf.mxu0
  %v200 = vadd.f32 0.0, %v199
  %v201 = vpop.f32.mrf.mxu0
  %v202 = vadd.f32 0.0, %v201
  %203 = vmatprep.mubr.bf16.mxu0 0
  %204 = vmatmul.mubr.bf16.gmra.mxu0 %v64
  %v205 = vpop.f32.mrf.mxu0
  %v206 = vadd.f32 0.0, %v205
  %v207 = vpop.f32.mrf.mxu0
  %v208 = vadd.f32 0.0, %v207
  %v209 = vpop.f32.mrf.mxu0
  %v210 = vadd.f32 0.0, %v209
  %v211 = vpop.f32.mrf.mxu0
  %v212 = vadd.f32 0.0, %v211
  %213 = vdwg.mxu0
  %v214 = vmul.f32 %v196, %v196
  %v215 = vmul.f32 %v198, %v198
  %v216 = vmul.f32 %v200, %v200
  %v217 = vmul.f32 %v202, %v202
  %v218 = vmul.f32 %v206, %v206
  %v219 = vmul.f32 %v208, %v208
  %v220 = vmul.f32 %v210, %v210
  %v221 = vmul.f32 %v212, %v212
  %v222 = vmul.f32 %v196, %v214
  %v223 = vmul.f32 %v198, %v215
  %v224 = vmul.f32 %v200, %v216
  %v225 = vmul.f32 %v202, %v217
  %v226 = vmul.f32 %v206, %v218
  %v227 = vmul.f32 %v208, %v219
  %v228 = vmul.f32 %v210, %v220
  %v229 = vmul.f32 %v212, %v221
  %v230 = vmul.f32 %v222, 0.044715
  %v231 = vmul.f32 %v223, 0.044715
  %v232 = vmul.f32 %v224, 0.044715
  %v233 = vmul.f32 %v225, 0.044715
  %v234 = vmul.f32 %v226, 0.044715
  %v235 = vmul.f32 %v227, 0.044715
  %v236 = vmul.f32 %v228, 0.044715
  %v237 = vmul.f32 %v229, 0.044715
  %v238 = vadd.f32 %v196, %v230
  %v239 = vadd.f32 %v198, %v231
  %v240 = vadd.f32 %v200, %v232
  %v241 = vadd.f32 %v202, %v233
  %v242 = vadd.f32 %v206, %v234
  %v243 = vadd.f32 %v208, %v235
  %v244 = vadd.f32 %v210, %v236
  %v245 = vadd.f32 %v212, %v237
  %v246 = vmul.f32 %v238, 0.7978846
  %v247 = vmul.f32 %v239, 0.7978846
  %v248 = vmul.f32 %v240, 0.7978846
  %v249 = vmul.f32 %v241, 0.7978846
  %v250 = vmul.f32 %v242, 0.7978846
  %v251 = vmul.f32 %v243, 0.7978846
  %v252 = vmul.f32 %v244, 0.7978846
  %v253 = vmul.f32 %v245, 0.7978846
  %v254 = vtanh.pop %v246
  %v255 = vtanh.pop %v247
  %v256 = vtanh.pop %v248
  %v257 = vtanh.pop %v249
  %v258 = vtanh.pop %v250
  %v259 = vtanh.pop %v251
  %v260 = vtanh.pop %v252
  %v261 = vtanh.pop %v253
  %v262 = vadd.f32 %v254, 1.0
  %v263 = vadd.f32 %v255, 1.0
  %v264 = vadd.f32 %v256, 1.0
  %v265 = vadd.f32 %v257, 1.0
  %v266 = vadd.f32 %v258, 1.0
  %v267 = vadd.f32 %v259, 1.0
  %v268 = vadd.f32 %v260, 1.0
  %v269 = vadd.f32 %v261, 1.0
  %v270 = vmul.f32 %v262, 0.5
  %v271 = vmul.f32 %v263, 0.5
  %v272 = vmul.f32 %v264, 0.5
  %v273 = vmul.f32 %v265, 0.5
  %v274 = vmul.f32 %v266, 0.5
  %v275 = vmul.f32 %v267, 0.5
  %v276 = vmul.f32 %v268, 0.5
  %v277 = vmul.f32 %v269, 0.5
  %v278 = vmul.f32 %v196, %v270
  %v279 = vmul.f32 %v198, %v271
  %v280 = vmul.f32 %v200, %v272
  %v281 = vmul.f32 %v202, %v273
  %v282 = vmul.f32 %v206, %v274
  %v283 = vmul.f32 %v208, %v275
  %v284 = vmul.f32 %v210, %v276
  %v285 = vmul.f32 %v212, %v277
  %v286 = vpack.c.bf16 %v280, %v278
  %v287 = vpack.c.bf16 %v281, %v279
  %v288 = vpack.c.bf16 %v284, %v282
  %v289 = vpack.c.bf16 %v285, %v283
  %v294 = vunpack.c.l.b16 %v286
  %v295 = vunpack.c.l.b16 %v287
  %v296 = vunpack.c.h.b16 %v286
  %v297 = vunpack.c.h.b16 %v287
  %v298 = vunpack.c.l.b16 %v288
  %v299 = vunpack.c.l.b16 %v289
  %v300 = vunpack.c.h.b16 %v288
  %v301 = vunpack.c.h.b16 %v289
  %v302 = vpack.c.b16 %v295, %v294
  %v303 = vpack.c.b16 %v297, %v296
  %v304 = vpack.c.b16 %v299, %v298
  %v305 = vpack.c.b16 %v301, %v300
  %310 = vst [vmem:[%s3] sm:$0xff] %v302
  %311 = vst [vmem:[%s3 + $0x8] sm:$0xff] %v303
  %312 = vst [vmem:[%s3 + $0x10] sm:$0xff] %v304
  %313 = vst [vmem:[%s3 + $0x18] sm:$0xff] %v305
  // Predicated region
  $region14: #{inv_decoder_forward.15} parent=0 // pred_check
    _
  $region15: #{inv_decoder_forward.15} parent=0 // pred_check_branch
    %315 = sbr.rel (0) target = $region17
  $region16: #{inv_decoder_forward.15} parent=0 // pred_region
    _
  $region17: #{inv_decoder_forward.15} parent=0 // pred_fallthru
    _
  // Predicated region
  $region18: #{inv_decoder_forward.15} parent=0 // pred_check
    _
  $region19: #{inv_decoder_forward.15} parent=0 // pred_check_branch
    %317 = sbr.rel (0) target = $region21
  $region20: #{inv_decoder_forward.15} parent=0 // pred_region
    _
  $region21: #{inv_decoder_forward.15} parent=0 // pred_fallthru
    _

// kernel: inv_decoder_forward.17
$region0: #{inv_decoder_forward.17}
  #allocation0 [shape = 'u32[]', space=smem, size = 0x4, offset = 0x4, fixed_abs, tag = 'smem constant byte address 0x4 - core index']
  #allocation1 [shape = 'u32[144,128]{1,0:T(1,128)}', space=vmem, size = 0x12000, scoped, tag = 'internal scratch']
  %s0 = inlined_call_operand.vmem [shape: bf16[32,128], index: 0, kind: input, shape index: {}]
  %s1 = inlined_call_operand.vmem [shape: f32[1,128], index: 1, kind: input, shape index: {}]
  %s2 = inlined_call_operand.vmem [shape: bf16[128,384], index: 2, kind: input, shape index: {}]
  %s3 = inlined_call_operand.vmem [shape: bf16[32,384], index: 3, kind: output, shape index: {}]
  %s4 = sld [smem:[#allocation0]]
  $region123: #{inv_decoder_forward.17} parent=0
    _
  %s6 = ssub.s32 1, %s4
  %s7 = scalar_select 0, %s6, %s4
  $region1: #{inv_decoder_forward.17} parent=0
    #allocation2 [shape = 'u8[65536]{0}', space=vmem, size = 0x10000, scoped, tag = 'input window, operand 2']
    #allocation3 [shape = 'u8[16384]{0}', space=vmem, size = 0x4000, scoped, tag = 'output window, operand 0']
    loop: start=0, step=1, limit=5
    $region2: #{inv_decoder_forward.17} parent=1 // loop_pre_header
      _
    $region3: #{inv_decoder_forward.17} parent=1 // loop_header
      %s9 = sphi 0, %s13
      %p10 = scmp.ge.s32.totalorder %s9, 5
      %s16 = sphi 0, %s28
      %s17 = sphi 0, %s24
      %s18 = sphi 0, %s16
      %s19 = sphi 0, %s17
      %s20 = sphi 0, %s18
      %s21 = sphi 0, %s19
      %s31 = sphi 0, %s33
      %s34 = sphi 0, %s31
      %s35 = sphi 0, %s34
      %s51 = sphi 0, %s35
      %s55 = sphi 0, %s55
      %s57 = sphi 0, %s55
      %s58 = sphi 0, %s57
      %s72 = sphi 0, %s58
      %s78 = sphi 0, %s80
      %s81 = sphi 0, %s78
      %s82 = sphi 0, %s81
      %s98 = sphi 0, %s82
      %s106 = sphi 0, %s108
      %s109 = sphi 0, %s106
      %s110 = sphi 0, %s109
      %s126 = sphi 0, %s110
    $region4: #{inv_decoder_forward.17} parent=1 // loop_header_branch
      %12 = sbr.rel (%p10) target = $region8
    $region5: #{inv_decoder_forward.17} parent=1 // loop_body
      %s14 = ssub.s32 %s9, 1
      %s15 = ssub.s32 %s9, 2
      %s22 = sadd.s32 1, %s17
      %p23 = scmp.ge.s32.totalorder %s22, 3
      %s24 = scalar_select %p23, 0, %s22
      %s25 = sadd.s32 1, %s16
      %s26 = scalar_select %p23, %s25, %s16
      %p27 = scmp.ge.s32.totalorder %s26, 1
      %s28 = scalar_select %p27, 0, %s26
      %s29 = ssub.s32 %s16, %s28
      %p30 = scmp.eq.s32.totalorder %s29, 0
      %s32 = sadd.s32 %s31, 1
      %s33 = scalar_select %p30, %s31, %s32
      %p36 = pneg %p30
      %p37 = scmp.eq.s32.totalorder %s9, 2
      %p38 = por %p36, %p37
      %p39 = scmp.ne.s32.totalorder %s31, %s34
      %p40 = scmp.eq.s32.totalorder %s9, 0
      %p41 = por %p39, %p40
      %p42 = scmp.ne.s32.totalorder %s31, %s34
      %p43 = scmp.eq.s32.totalorder %s14, 2
      %p44 = por %p42, %p43
      %p45 = scmp.ne.s32.totalorder %s34, %s35
      %p46 = scmp.eq.s32.totalorder %s14, 0
      %p47 = por %p45, %p46
      %p48 = scmp.ne.s32.totalorder %s34, %s35
      %p49 = scmp.eq.s32.totalorder %s15, 2
      %p50 = por %p48, %p49
      %p52 = scmp.ne.s32.totalorder %s35, %s51
      %p53 = scmp.eq.s32.totalorder %s15, 0
      %p54 = por %p52, %p53
      %s56 = sadd.s32 %s55, 1
      %p59 = scmp.eq.s32.totalorder %s9, 2
      %p60 = scmp.ne.s32.totalorder %s55, %s57
      %p61 = scmp.eq.s32.totalorder %s9, 0
      %p62 = por %p60, %p61
      %p63 = scmp.ne.s32.totalorder %s55, %s57
      %p64 = scmp.eq.s32.totalorder %s14, 2
      %p65 = por %p63, %p64
      %p66 = scmp.ne.s32.totalorder %s57, %s58
      %p67 = scmp.eq.s32.totalorder %s14, 0
      %p68 = por %p66, %p67
      %p69 = scmp.ne.s32.totalorder %s57, %s58
      %p70 = scmp.eq.s32.totalorder %s15, 2
      %p71 = por %p69, %p70
      %p73 = scmp.ne.s32.totalorder %s58, %s72
      %p74 = scmp.eq.s32.totalorder %s15, 0
      %p75 = por %p73, %p74
      %s76 = ssub.s32 %s17, %s24
      %p77 = scmp.eq.s32.totalorder %s76, 0
      %s79 = sadd.s32 %s78, 1
      %s80 = scalar_select %p77, %s78, %s79
      %p83 = pneg %p77
      %p84 = scmp.eq.s32.totalorder %s9, 2
      %p85 = por %p83, %p84
      %p86 = scmp.ne.s32.totalorder %s78, %s81
      %p87 = scmp.eq.s32.totalorder %s9, 0
      %p88 = por %p86, %p87
      %p89 = scmp.ne.s32.totalorder %s78, %s81
      %p90 = scmp.eq.s32.totalorder %s14, 2
      %p91 = por %p89, %p90
      %p92 = scmp.ne.s32.totalorder %s81, %s82
      %p93 = scmp.eq.s32.totalorder %s14, 0
      %p94 = por %p92, %p93
      %p95 = scmp.ne.s32.totalorder %s81, %s82
      %p96 = scmp.eq.s32.totalorder %s15, 2
      %p97 = por %p95, %p96
      %p99 = scmp.ne.s32.totalorder %s82, %s98
      %p100 = scmp.eq.s32.totalorder %s15, 0
      %p101 = por %p99, %p100
      %s102 = ssub.s32 %s16, %s28
      %s103 = ssub.s32 %s17, %s24
      %s104 = sor.u32 %s102, %s103
      %p105 = scmp.eq.s32.totalorder %s104, 0
      %s107 = sadd.s32 %s106, 1
      %s108 = scalar_select %p105, %s106, %s107
      %p111 = pneg %p105
      %p112 = scmp.eq.s32.totalorder %s9, 2
      %p113 = por %p111, %p112
      %p114 = scmp.ne.s32.totalorder %s106, %s109
      %p115 = scmp.eq.s32.totalorder %s9, 0
      %p116 = por %p114, %p115
      %p117 = scmp.ne.s32.totalorder %s106, %s109
      %p118 = scmp.eq.s32.totalorder %s14, 2
      %p119 = por %p117, %p118
      %p120 = scmp.ne.s32.totalorder %s109, %s110
      %p121 = scmp.eq.s32.totalorder %s14, 0
      %p122 = por %p120, %p121
      %p123 = scmp.ne.s32.totalorder %s109, %s110
      %p124 = scmp.eq.s32.totalorder %s15, 2
      %p125 = por %p123, %p124
      %p127 = scmp.ne.s32.totalorder %s110, %s126
      %p128 = scmp.eq.s32.totalorder %s15, 0
      %p129 = por %p127, %p128
      %p130 = scmp.le.s32.totalorder 1, %s9
      %p131 = scmp.lt.s32.totalorder %s9, 4
      %p132 = pnand %p130, %p131
      %p133 = pneg %p132
      // Predicated region
      $region9: #{inv_decoder_forward.17} parent=5 // pred_check
        _
      $region10: #{inv_decoder_forward.17} parent=5 // pred_check_branch
        %135 = sbr.rel (%p132) target = $region12
      $region11: #{inv_decoder_forward.17} parent=5 // pred_region
        %s136 = ssub.s32 %s9, 1
        // Predicated region
        $region13: #{inv_decoder_forward.17} parent=11 // pred_check
          %p137 = pneg %p47
        $region14: #{inv_decoder_forward.17} parent=11 // pred_check_branch
          %139 = sbr.rel (%p137) target = $region16
        $region15: #{inv_decoder_forward.17} parent=11 // pred_region
          %s140 = smul.u32 4, %s18
          %p141 = scmp.lt.s32.totalorder %s140, 3
          %s142 = scalar_select %p141, %s140, 3
          %s143 = smul.addr %s142, 4
          %s144 = scalar_lea.vmem %s0, %s143
          %s145 = smul.u32 4, %s18
        $region16: #{inv_decoder_forward.17} parent=11 // pred_fallthru
          _
        // Predicated region
        $region17: #{inv_decoder_forward.17} parent=11 // pred_check
          %p146 = pneg %p68
        $region18: #{inv_decoder_forward.17} parent=11 // pred_check_branch
          %148 = sbr.rel (%p146) target = $region20
        $region19: #{inv_decoder_forward.17} parent=11 // pred_region
          _
        $region20: #{inv_decoder_forward.17} parent=11 // pred_fallthru
          _
      $region12: #{inv_decoder_forward.17} parent=5 // pred_fallthru
        _
      %p149 = scmp.lt.s32.totalorder %s9, 3
      // Predicated region
      $region21: #{inv_decoder_forward.17} parent=5 // pred_check
        %p150 = pneg %p149
      $region22: #{inv_decoder_forward.17} parent=5 // pred_check_branch
        %152 = sbr.rel (%p150) target = $region24
      $region23: #{inv_decoder_forward.17} parent=5 // pred_region
        // Predicated region
        $region25: #{inv_decoder_forward.17} parent=23 // pred_check
          %p153 = pneg %p88
        $region26: #{inv_decoder_forward.17} parent=23 // pred_check_branch
          %155 = sbr.rel (%p153) target = $region28
        $region27: #{inv_decoder_forward.17} parent=23 // pred_region
          %s156 = sand.u32 %s78, 1
          %s157 = sand.u32 %s78, 1
          %s158 = smul.addr %s157, 64
          %s159 = scalar_lea.vmem [#allocation2], %s158
          %s160 = smul.addr %s17, 4
          %s161 = scalar_lea.vmem %s2, %s160
          // Predicated region
          $region29: #{inv_decoder_forward.17} parent=27 // pred_check
            _
          $region30: #{inv_decoder_forward.17} parent=27 // pred_check_branch
            %163 = sbr.rel (0) target = $region32
          $region31: #{inv_decoder_forward.17} parent=27 // pred_region
            // Predicated region
            $region33: #{inv_decoder_forward.17} parent=31 // pred_check
              _
            $region34: #{inv_decoder_forward.17} parent=31 // pred_check_branch
              %165 = sbr.rel target = $region36
            $region35: #{inv_decoder_forward.17} parent=31 // pred_region
              // Predicated region
              $region48: #{inv_decoder_forward.17} parent=35 // pred_check
                _
              $region49: #{inv_decoder_forward.17} parent=35 // pred_check_branch
                %211 = sbr.rel (0) target = $region51
              $region50: #{inv_decoder_forward.17} parent=35 // pred_region
                loop: start=0, step=1, limit=1
                $region52: #{inv_decoder_forward.17} parent=50 // loop_pre_header
                  _
                $region53: #{inv_decoder_forward.17} parent=50 // loop_header
                  %s213 = sphi 0, %s217
                  %p214 = scmp.ge.s32.totalorder %s213, 1
                  %s218 = sphi %s161, %s161
                  %s219 = sphi %s159, %s159
                $region54: #{inv_decoder_forward.17} parent=50 // loop_header_branch
                  %216 = sbr.rel (%p214) target = $region58
                $region55: #{inv_decoder_forward.17} parent=50 // loop_body
                  _
                $region56: #{inv_decoder_forward.17} parent=50 // loop_footer
                  %s217 = sadd.s32 1, %s213
                $region57: #{inv_decoder_forward.17} parent=50 // loop_footer_branch
                  %212 = sbr.rel target = $region53
                $region58: #{inv_decoder_forward.17} parent=50 // loop_exit
                  _
                %s221 = ssub.s32 16, 1
                loop: start=0, step=1, limit=1
                $region59: #{inv_decoder_forward.17} parent=50 // loop_pre_header
                  _
                $region60: #{inv_decoder_forward.17} parent=50 // loop_header
                  %s223 = sphi 0, %s227
                  %p224 = scmp.ge.s32.totalorder %s223, 1
                  %s228 = sphi %s161, %s161
                  %s229 = sphi %s159, %s159
                $region61: #{inv_decoder_forward.17} parent=50 // loop_header_branch
                  %226 = sbr.rel (%p224) target = $region65
                $region62: #{inv_decoder_forward.17} parent=50 // loop_body
                  %v230 = vld [vmem:[%s228] sm:%s221]
                  %231 = vst [vmem:[%s229] sm:%s221] %v230
                  %v232 = vld [vmem:[%s228 + $0xc] sm:%s221]
                  %233 = vst [vmem:[%s229 + $0x4] sm:%s221] %v232
                  %v234 = vld [vmem:[%s228 + $0x18] sm:%s221]
                  %235 = vst [vmem:[%s229 + $0x8] sm:%s221] %v234
                  %v236 = vld [vmem:[%s228 + $0x24] sm:%s221]
                  %237 = vst [vmem:[%s229 + $0xc] sm:%s221] %v236
                  %v238 = vld [vmem:[%s228 + $0x30] sm:%s221]
                  %239 = vst [vmem:[%s229 + $0x10] sm:%s221] %v238
                  %v240 = vld [vmem:[%s228 + $0x3c] sm:%s221]
                  %241 = vst [vmem:[%s229 + $0x14] sm:%s221] %v240
                  %v242 = vld [vmem:[%s228 + $0x48] sm:%s221]
                  %243 = vst [vmem:[%s229 + $0x18] sm:%s221] %v242
                  %v244 = vld [vmem:[%s228 + $0x54] sm:%s221]
                  %245 = vst [vmem:[%s229 + $0x1c] sm:%s221] %v244
                  %v246 = vld [vmem:[%s228 + $0x60] sm:%s221]
                  %247 = vst [vmem:[%s229 + $0x20] sm:%s221] %v246
                  %v248 = vld [vmem:[%s228 + $0x6c] sm:%s221]
                  %249 = vst [vmem:[%s229 + $0x24] sm:%s221] %v248
                  %v250 = vld [vmem:[%s228 + $0x78] sm:%s221]
                  %251 = vst [vmem:[%s229 + $0x28] sm:%s221] %v250
                  %v252 = vld [vmem:[%s228 + $0x84] sm:%s221]
                  %253 = vst [vmem:[%s229 + $0x2c] sm:%s221] %v252
                  %v254 = vld [vmem:[%s228 + $0x90] sm:%s221]
                  %255 = vst [vmem:[%s229 + $0x30] sm:%s221] %v254
                  %v256 = vld [vmem:[%s228 + $0x9c] sm:%s221]
                  %257 = vst [vmem:[%s229 + $0x34] sm:%s221] %v256
                  %v258 = vld [vmem:[%s228 + $0xa8] sm:%s221]
                  %259 = vst [vmem:[%s229 + $0x38] sm:%s221] %v258
                  %v260 = vld [vmem:[%s228 + $0xb4] sm:%s221]
                  %261 = vst [vmem:[%s229 + $0x3c] sm:%s221] %v260
                $region63: #{inv_decoder_forward.17} parent=50 // loop_footer
                  %s227 = sadd.s32 1, %s223
                $region64: #{inv_decoder_forward.17} parent=50 // loop_footer_branch
                  %222 = sbr.rel target = $region60
                $region65: #{inv_decoder_forward.17} parent=50 // loop_exit
                  _
              $region51: #{inv_decoder_forward.17} parent=35 // pred_fallthru
                _
            $region36: #{inv_decoder_forward.17} parent=31 // pred_fallthru
              _
            // Predicated region
            $region37: #{inv_decoder_forward.17} parent=31 // pred_check
              _
            $region38: #{inv_decoder_forward.17} parent=31 // pred_check_branch
              %167 = sbr.rel (0) target = $region40
            $region39: #{inv_decoder_forward.17} parent=31 // pred_region
              %s169 = ssub.s32 16, 1
              loop: start=0, step=1, limit=1
              $region41: #{inv_decoder_forward.17} parent=39 // loop_pre_header
                _
              $region42: #{inv_decoder_forward.17} parent=39 // loop_header
                %s171 = sphi 0, %s175
                %p172 = scmp.ge.s32.totalorder %s171, 1
                %s176 = sphi %s161, %s161
                %s177 = sphi %s159, %s159
              $region43: #{inv_decoder_forward.17} parent=39 // loop_header_branch
                %174 = sbr.rel (%p172) target = $region47
              $region44: #{inv_decoder_forward.17} parent=39 // loop_body
                %v178 = vld [vmem:[%s176] sm:%s169]
                %179 = vst [vmem:[%s177] sm:%s169] %v178
                %v180 = vld [vmem:[%s176 + $0xc] sm:%s169]
                %181 = vst [vmem:[%s177 + $0x4] sm:%s169] %v180
                %v182 = vld [vmem:[%s176 + $0x18] sm:%s169]
                %183 = vst [vmem:[%s177 + $0x8] sm:%s169] %v182
                %v184 = vld [vmem:[%s176 + $0x24] sm:%s169]
                %185 = vst [vmem:[%s177 + $0xc] sm:%s169] %v184
                %v186 = vld [vmem:[%s176 + $0x30] sm:%s169]
                %187 = vst [vmem:[%s177 + $0x10] sm:%s169] %v186
                %v188 = vld [vmem:[%s176 + $0x3c] sm:%s169]
                %189 = vst [vmem:[%s177 + $0x14] sm:%s169] %v188
                %v190 = vld [vmem:[%s176 + $0x48] sm:%s169]
                %191 = vst [vmem:[%s177 + $0x18] sm:%s169] %v190
                %v192 = vld [vmem:[%s176 + $0x54] sm:%s169]
                %193 = vst [vmem:[%s177 + $0x1c] sm:%s169] %v192
                %v194 = vld [vmem:[%s176 + $0x60] sm:%s169]
                %195 = vst [vmem:[%s177 + $0x20] sm:%s169] %v194
                %v196 = vld [vmem:[%s176 + $0x6c] sm:%s169]
                %197 = vst [vmem:[%s177 + $0x24] sm:%s169] %v196
                %v198 = vld [vmem:[%s176 + $0x78] sm:%s169]
                %199 = vst [vmem:[%s177 + $0x28] sm:%s169] %v198
                %v200 = vld [vmem:[%s176 + $0x84] sm:%s169]
                %201 = vst [vmem:[%s177 + $0x2c] sm:%s169] %v200
                %v202 = vld [vmem:[%s176 + $0x90] sm:%s169]
                %203 = vst [vmem:[%s177 + $0x30] sm:%s169] %v202
                %v204 = vld [vmem:[%s176 + $0x9c] sm:%s169]
                %205 = vst [vmem:[%s177 + $0x34] sm:%s169] %v204
                %v206 = vld [vmem:[%s176 + $0xa8] sm:%s169]
                %207 = vst [vmem:[%s177 + $0x38] sm:%s169] %v206
                %v208 = vld [vmem:[%s176 + $0xb4] sm:%s169]
                %209 = vst [vmem:[%s177 + $0x3c] sm:%s169] %v208
              $region45: #{inv_decoder_forward.17} parent=39 // loop_footer
                %s175 = sadd.s32 1, %s171
              $region46: #{inv_decoder_forward.17} parent=39 // loop_footer_branch
                %170 = sbr.rel target = $region42
              $region47: #{inv_decoder_forward.17} parent=39 // loop_exit
                _
            $region40: #{inv_decoder_forward.17} parent=31 // pred_fallthru
              _
          $region32: #{inv_decoder_forward.17} parent=27 // pred_fallthru
            _
          %262 = vnop
        $region28: #{inv_decoder_forward.17} parent=23 // pred_fallthru
          _
      $region24: #{inv_decoder_forward.17} parent=5 // pred_fallthru
        _
      %p263 = scmp.le.s32.totalorder 1, %s9
      %p264 = scmp.lt.s32.totalorder %s9, 4
      %p265 = pnand %p263, %p264
      %p266 = pneg %p265
      // Predicated region
      $region66: #{inv_decoder_forward.17} parent=5 // pred_check
        _
      $region67: #{inv_decoder_forward.17} parent=5 // pred_check_branch
        %268 = sbr.rel (%p265) target = $region69
      $region68: #{inv_decoder_forward.17} parent=5 // pred_region
        %s269 = ssub.s32 %s9, 1
        %s270 = sand.u32 %s81, 1
        %s271 = sand.u32 %s81, 1
        %s272 = smul.addr %s271, 64
        %s273 = scalar_lea.vmem [#allocation2], %s272
        // Predicated region
        $region70: #{inv_decoder_forward.17} parent=68 // pred_check
          %p274 = pneg %p94
        $region71: #{inv_decoder_forward.17} parent=68 // pred_check_branch
          %276 = sbr.rel (%p274) target = $region73
        $region72: #{inv_decoder_forward.17} parent=68 // pred_region
          _
        $region73: #{inv_decoder_forward.17} parent=68 // pred_fallthru
          _
        %s277 = smul.u32 4, %s18
        %p278 = scmp.lt.s32.totalorder %s277, 3
        %s279 = scalar_select %p278, %s277, 3
        %s280 = smul.addr %s279, 4
        %s281 = scalar_lea.vmem %s0, %s280
        %p282 = pneg %p47
        %p283 = pneg %p44
        %p284 = pneg %p68
        %p285 = pneg %p65
        %s286 = sand.u32 %s81, 1
        %s287 = sand.u32 %s81, 1
        %s288 = smul.addr %s287, 64
        %s289 = scalar_lea.vmem [#allocation2], %s288
        %p290 = pneg %p94
        %p291 = pneg %p91
        %p292 = pneg %p122
        %p293 = pneg %p119
        %s294 = sand.u32 %s109, 1
        %s295 = sand.u32 %s109, 1
        %s296 = smul.addr %s295, 16
        %s297 = scalar_lea.vmem [#allocation3], %s296
        %s298 = smul.u32 4, %s18
        %p299 = scmp.lt.s32.totalorder %s298, 3
        %s300 = scalar_select %p299, %s298, 3
        %s301 = smul.addr %s300, 4
        %s302 = scalar_lea.vmem %s0, %s301
        %s303 = smul.u32 4, %s18
        %s304 = smul.u32 4, %s18
        %v306 = vld [vmem:[%s302] sm:$0xf]
        %v307 = vld [vmem:[%s302 + $0x4] sm:$0xf]
        %v308 = vld [vmem:[%s302 + $0x8] sm:$0xf]
        %v309 = vld [vmem:[%s302 + $0xc] sm:$0xf]
        %v310 = vunpack.c.l.bf16 %v306
        %v311 = vunpack.c.l.bf16 %v307
        %v312 = vunpack.c.l.bf16 %v308
        %v313 = vunpack.c.l.bf16 %v309
        %v314 = vmul.f32 %v310, %v310
        %v315 = vmul.f32 %v311, %v311
        %v316 = vmul.f32 %v312, %v312
        %v317 = vmul.f32 %v313, %v313
        %318 = vadd.xlane.f32.xlu0 %v314
        %v319 = vpop.xlane.xlu0 %318
        %320 = vadd.xlane.f32.xlu0 %v315
        %v321 = vpop.xlane.xlu0 %320
        %322 = vadd.xlane.f32.xlu0 %v316
        %v323 = vpop.xlane.xlu0 %322
        %324 = vadd.xlane.f32.xlu0 %v317
        %v325 = vpop.xlane.xlu0 %324
        %v326 = vrcp.pop 128.0
        %v327 = vmul.f32 %v319, %v326
        %v328 = vmul.f32 %v321, %v326
        %v329 = vmul.f32 %v323, %v326
        %v330 = vmul.f32 %v325, %v326
        %v331 = vadd.f32 %v327, 1e-06
        %v332 = vadd.f32 %v328, 1e-06
        %v333 = vadd.f32 %v329, 1e-06
        %v334 = vadd.f32 %v330, 1e-06
        %v335 = vrsqrt.pop %v331
        %v336 = vrsqrt.pop %v332
        %v337 = vrsqrt.pop %v333
        %v338 = vrsqrt.pop %v334
        %v339 = vmul.f32 %v310, %v335
        %v340 = vmul.f32 %v311, %v336
        %v341 = vmul.f32 %v312, %v337
        %v342 = vmul.f32 %v313, %v338
        %v343 = vld [vmem:[%s1] sm:$0x1]
        %v345 = vlaneseq
        %v346 = vshrl.u32 %v345, 7
        %v347 = vsub.s32 0, %v346
        %v348 = vrot.slane %v343, %v347
        %v350 = vmul.f32 %v339, %v348
        %v351 = vmul.f32 %v340, %v348
        %v352 = vmul.f32 %v341, %v348
        %v353 = vmul.f32 %v342, %v348
        %v354 = vpack.c.bf16 %v351, %v350
        %v355 = vpack.c.bf16 %v353, %v352
        %v356 = vld [vmem:[%s273] sm:$0xf]
        %v357 = vld [vmem:[%s273 + $0x4] sm:$0xf]
        %v358 = vld [vmem:[%s273 + $0x8] sm:$0xf]
        %v359 = vld [vmem:[%s273 + $0xc] sm:$0xf]
        %v360 = vld [vmem:[%s273 + $0x10] sm:$0xf]
        %v361 = vld [vmem:[%s273 + $0x14] sm:$0xf]
        %v362 = vld [vmem:[%s273 + $0x18] sm:$0xf]
        %v363 = vld [vmem:[%s273 + $0x1c] sm:$0xf]
        %v364 = vld [vmem:[%s273 + $0x20] sm:$0xf]
        %v365 = vld [vmem:[%s273 + $0x24] sm:$0xf]
        %v366 = vld [vmem:[%s273 + $0x28] sm:$0xf]
        %v367 = vld [vmem:[%s273 + $0x2c] sm:$0xf]
        %v368 = vld [vmem:[%s273 + $0x30] sm:$0xf]
        %v369 = vld [vmem:[%s273 + $0x34] sm:$0xf]
        %v370 = vld [vmem:[%s273 + $0x38] sm:$0xf]
        %v371 = vld [vmem:[%s273 + $0x3c] sm:$0xf]
        %v388 = vunpack.c.l.b16 %v356
        %v389 = vunpack.c.l.b16 %v357
        %v390 = vunpack.c.l.b16 %v358
        %v391 = vunpack.c.l.b16 %v359
        %v392 = vunpack.c.l.b16 %v360
        %v393 = vunpack.c.l.b16 %v361
        %v394 = vunpack.c.l.b16 %v362
        %v395 = vunpack.c.l.b16 %v363
        %v396 = vunpack.c.l.b16 %v364
        %v397 = vunpack.c.l.b16 %v365
        %v398 = vunpack.c.l.b16 %v366
        %v399 = vunpack.c.l.b16 %v367
        %v400 = vunpack.c.l.b16 %v368
        %v401 = vunpack.c.l.b16 %v369
        %v402 = vunpack.c.l.b16 %v370
        %v403 = vunpack.c.l.b16 %v371
        %v404 = vpack.c.b16 %v389, %v388
        %v405 = vpack.c.b16 %v391, %v390
        %v406 = vpack.c.b16 %v393, %v392
        %v407 = vpack.c.b16 %v395, %v394
        %v408 = vpack.c.b16 %v397, %v396
        %v409 = vpack.c.b16 %v399, %v398
        %v410 = vpack.c.b16 %v401, %v400
        %v411 = vpack.c.b16 %v403, %v402
        %420 = vmatprep.subr.bf16.mxu0 0
        %421 = vmatpush1.bf16.msra.mxu0 %v411
        %422 = vmatprep.subr.bf16.mxu0 0
        %423 = vmatpush1.bf16.msra.mxu0 %v410
        %424 = vmatprep.subr.bf16.mxu0 0
        %425 = vmatpush1.bf16.msra.mxu0 %v409
        %426 = vmatprep.subr.bf16.mxu0 0
        %427 = vmatpush1.bf16.msra.mxu0 %v408
        %428 = vmatprep.subr.bf16.mxu0 0
        %429 = vmatpush1.bf16.msra.mxu0 %v407
        %430 = vmatprep.subr.bf16.mxu0 0
        %431 = vmatpush1.bf16.msra.mxu0 %v406
        %432 = vmatprep.subr.bf16.mxu0 0
        %433 = vmatpush1.bf16.msra.mxu0 %v405
        %434 = vmatprep.subr.bf16.mxu0 0
        %435 = vmatpush1.bf16.msra.mxu0 %v404
        %436 = vmatprep.subr.bf16.mxu0 0
        %437 = vmatpush2.bf16.msra.mxu0 0
        %438 = vmatprep.subr.bf16.mxu0 0
        %439 = vmatpush2.bf16.msra.mxu0 0
        %440 = vmatprep.subr.bf16.mxu0 0
        %441 = vmatpush2.bf16.msra.mxu0 0
        %442 = vmatprep.subr.bf16.mxu0 0
        %443 = vmatpush2.bf16.msra.mxu0 0
        %444 = vmatprep.subr.bf16.mxu0 0
        %445 = vmatpush2.bf16.msra.mxu0 0
        %446 = vmatprep.subr.bf16.mxu0 0
        %447 = vmatpush2.bf16.msra.mxu0 0
        %448 = vmatprep.subr.bf16.mxu0 0
        %449 = vmatpush2.bf16.msra.mxu0 0
        %450 = vmatprep.subr.bf16.mxu0 0
        %451 = vmatpush2.bf16.msra.mxu0 0
        %452 = vmatprep.mubr.bf16.mxu0 0
        %453 = vmatmul.mubr.bf16.gmra.mxu0 %v354
        %v454 = vpop.f32.mrf.mxu0
        %v455 = vadd.f32 0.0, %v454
        %v456 = vpop.f32.mrf.mxu0
        %v457 = vpop.f32.mrf.mxu0
        %v458 = vadd.f32 0.0, %v457
        %v459 = vpop.f32.mrf.mxu0
        %460 = vmatprep.mubr.bf16.mxu0 0
        %461 = vmatmul.mubr.bf16.gmra.mxu0 %v355
        %v462 = vpop.f32.mrf.mxu0
        %v463 = vadd.f32 0.0, %v462
        %v464 = vpop.f32.mrf.mxu0
        %v465 = vpop.f32.mrf.mxu0
        %v466 = vadd.f32 0.0, %v465
        %v467 = vpop.f32.mrf.mxu0
        %468 = vdwg.mxu0
        %v469 = vpack.c.bf16 %v458, %v455
        %v470 = vpack.c.bf16 %v466, %v463
        %v473 = vunpack.c.l.b16 %v469
        %v474 = vunpack.c.h.b16 %v469
        %v475 = vunpack.c.l.b16 %v470
        %v476 = vunpack.c.h.b16 %v470
        %v477 = vpack.c.b16 %v473, %v473
        %v478 = vpack.c.b16 %v474, %v474
        %v479 = vpack.c.b16 %v475, %v475
        %v480 = vpack.c.b16 %v476, %v476
        %485 = vst [vmem:[%s297] sm:$0xf] %v477
        %486 = vst [vmem:[%s297 + $0x4] sm:$0xf] %v478
        %487 = vst [vmem:[%s297 + $0x8] sm:$0xf] %v479
        %488 = vst [vmem:[%s297 + $0xc] sm:$0xf] %v480
        %s489 = sand.u32 %s109, 1
        %s490 = sand.u32 %s109, 1
        %s491 = smul.addr %s490, 16
        %s492 = scalar_lea.vmem [#allocation3], %s491
        // Predicated region
        $region74: #{inv_decoder_forward.17} parent=68 // pred_check
          %p493 = pneg %p119
        $region75: #{inv_decoder_forward.17} parent=68 // pred_check_branch
          %495 = sbr.rel (%p493) target = $region77
        $region76: #{inv_decoder_forward.17} parent=68 // pred_region
          %s496 = smul.u32 4, %s18
          %s497 = smul.addr %s496, 3
          %s498 = sadd.s32 %s19, %s497
          %s499 = smul.addr %s498, 4
          %s500 = scalar_lea.vmem %s3, %s499
          // Predicated region
          $region78: #{inv_decoder_forward.17} parent=76 // pred_check
            _
          $region79: #{inv_decoder_forward.17} parent=76 // pred_check_branch
            %502 = sbr.rel (0) target = $region81
          $region80: #{inv_decoder_forward.17} parent=76 // pred_region
            // Predicated region
            $region82: #{inv_decoder_forward.17} parent=80 // pred_check
              _
            $region83: #{inv_decoder_forward.17} parent=80 // pred_check_branch
              %504 = sbr.rel target = $region85
            $region84: #{inv_decoder_forward.17} parent=80 // pred_region
              // Predicated region
              $region97: #{inv_decoder_forward.17} parent=84 // pred_check
                _
              $region98: #{inv_decoder_forward.17} parent=84 // pred_check_branch
                %526 = sbr.rel (0) target = $region100
              $region99: #{inv_decoder_forward.17} parent=84 // pred_region
                loop: start=0, step=1, limit=1
                $region101: #{inv_decoder_forward.17} parent=99 // loop_pre_header
                  _
                $region102: #{inv_decoder_forward.17} parent=99 // loop_header
                  %s528 = sphi 0, %s532
                  %p529 = scmp.ge.s32.totalorder %s528, 1
                  %s533 = sphi %s492, %s492
                  %s534 = sphi %s500, %s500
                $region103: #{inv_decoder_forward.17} parent=99 // loop_header_branch
                  %531 = sbr.rel (%p529) target = $region107
                $region104: #{inv_decoder_forward.17} parent=99 // loop_body
                  _
                $region105: #{inv_decoder_forward.17} parent=99 // loop_footer
                  %s532 = sadd.s32 1, %s528
                $region106: #{inv_decoder_forward.17} parent=99 // loop_footer_branch
                  %527 = sbr.rel target = $region102
                $region107: #{inv_decoder_forward.17} parent=99 // loop_exit
                  _
                %s536 = ssub.s32 16, 1
                loop: start=0, step=1, limit=1
                $region108: #{inv_decoder_forward.17} parent=99 // loop_pre_header
                  _
                $region109: #{inv_decoder_forward.17} parent=99 // loop_header
                  %s538 = sphi 0, %s542
                  %p539 = scmp.ge.s32.totalorder %s538, 1
                  %s543 = sphi %s492, %s492
                  %s544 = sphi %s500, %s500
                $region110: #{inv_decoder_forward.17} parent=99 // loop_header_branch
                  %541 = sbr.rel (%p539) target = $region114
                $region111: #{inv_decoder_forward.17} parent=99 // loop_body
                  %v545 = vld [vmem:[%s543] sm:%s536]
                  %546 = vst [vmem:[%s544] sm:%s536] %v545
                  %v547 = vld [vmem:[%s543 + $0x4] sm:%s536]
                  %548 = vst [vmem:[%s544 + $0xc] sm:%s536] %v547
                  %v549 = vld [vmem:[%s543 + $0x8] sm:%s536]
                  %550 = vst [vmem:[%s544 + $0x18] sm:%s536] %v549
                  %v551 = vld [vmem:[%s543 + $0xc] sm:%s536]
                  %552 = vst [vmem:[%s544 + $0x24] sm:%s536] %v551
                $region112: #{inv_decoder_forward.17} parent=99 // loop_footer
                  %s542 = sadd.s32 1, %s538
                $region113: #{inv_decoder_forward.17} parent=99 // loop_footer_branch
                  %537 = sbr.rel target = $region109
                $region114: #{inv_decoder_forward.17} parent=99 // loop_exit
                  _
              $region100: #{inv_decoder_forward.17} parent=84 // pred_fallthru
                _
            $region85: #{inv_decoder_forward.17} parent=80 // pred_fallthru
              _
            // Predicated region
            $region86: #{inv_decoder_forward.17} parent=80 // pred_check
              _
            $region87: #{inv_decoder_forward.17} parent=80 // pred_check_branch
              %506 = sbr.rel (0) target = $region89
            $region88: #{inv_decoder_forward.17} parent=80 // pred_region
              %s508 = ssub.s32 16, 1
              loop: start=0, step=1, limit=1
              $region90: #{inv_decoder_forward.17} parent=88 // loop_pre_header
                _
              $region91: #{inv_decoder_forward.17} parent=88 // loop_header
                %s510 = sphi 0, %s514
                %p511 = scmp.ge.s32.totalorder %s510, 1
                %s515 = sphi %s492, %s492
                %s516 = sphi %s500, %s500
              $region92: #{inv_decoder_forward.17} parent=88 // loop_header_branch
                %513 = sbr.rel (%p511) target = $region96
              $region93: #{inv_decoder_forward.17} parent=88 // loop_body
                %v517 = vld [vmem:[%s515] sm:%s508]
                %518 = vst [vmem:[%s516] sm:%s508] %v517
                %v519 = vld [vmem:[%s515 + $0x4] sm:%s508]
                %520 = vst [vmem:[%s516 + $0xc] sm:%s508] %v519
                %v521 = vld [vmem:[%s515 + $0x8] sm:%s508]
                %522 = vst [vmem:[%s516 + $0x18] sm:%s508] %v521
                %v523 = vld [vmem:[%s515 + $0xc] sm:%s508]
                %524 = vst [vmem:[%s516 + $0x24] sm:%s508] %v523
              $region94: #{inv_decoder_forward.17} parent=88 // loop_footer
                %s514 = sadd.s32 1, %s510
              $region95: #{inv_decoder_forward.17} parent=88 // loop_footer_branch
                %509 = sbr.rel target = $region91
              $region96: #{inv_decoder_forward.17} parent=88 // loop_exit
                _
            $region89: #{inv_decoder_forward.17} parent=80 // pred_fallthru
              _
          $region81: #{inv_decoder_forward.17} parent=76 // pred_fallthru
            _
          %553 = vnop
        $region77: #{inv_decoder_forward.17} parent=68 // pred_fallthru
          _
      $region69: #{inv_decoder_forward.17} parent=5 // pred_fallthru
        _
      %p554 = scmp.le.s32.totalorder 2, %s9
      // Predicated region
      $region115: #{inv_decoder_forward.17} parent=5 // pred_check
        %p555 = pneg %p554
      $region116: #{inv_decoder_forward.17} parent=5 // pred_check_branch
        %557 = sbr.rel (%p555) target = $region118
      $region117: #{inv_decoder_forward.17} parent=5 // pred_region
        %s558 = ssub.s32 %s9, 2
        // Predicated region
        $region119: #{inv_decoder_forward.17} parent=117 // pred_check
          %p559 = pneg %p125
        $region120: #{inv_decoder_forward.17} parent=117 // pred_check_branch
          %561 = sbr.rel (%p559) target = $region122
        $region121: #{inv_decoder_forward.17} parent=117 // pred_region
          %s562 = sand.u32 %s110, 1
          %s563 = sand.u32 %s110, 1
          %s564 = smul.addr %s563, 16
          %s565 = scalar_lea.vmem [#allocation3], %s564
        $region122: #{inv_decoder_forward.17} parent=117 // pred_fallthru
          _
      $region118: #{inv_decoder_forward.17} parent=5 // pred_fallthru
        _
    $region6: #{inv_decoder_forward.17} parent=1 // loop_footer
      %s13 = sadd.s32 1, %s9
    $region7: #{inv_decoder_forward.17} parent=1 // loop_footer_branch
      %8 = sbr.rel target = $region3
    $region8: #{inv_decoder_forward.17} parent=1 // loop_exit
      _

// kernel: inv_decoder_forward.16
$region0: #{inv_decoder_forward.16}
  #allocation0 [shape = 'u32[]', space=smem, size = 0x4, offset = 0x4, fixed_abs, tag = 'smem constant byte address 0x4 - core index']
  #allocation1 [shape = 'u32[144,128]{1,0:T(1,128)}', space=vmem, size = 0x12000, scoped, tag = 'internal scratch']
  #allocation2 [shape = 'f32[32,128]{1,0:T(8,128)}', space=vmem, size = 0x4000, scoped, tag = 'scratch operand']
  %s0 = inlined_call_operand.vmem [shape: bf16[32,256], index: 0, kind: input, shape index: {}]
  %s1 = inlined_call_operand.vmem [shape: bf16[256,128], index: 1, kind: input, shape index: {}]
  %s2 = inlined_call_operand.vmem [shape: bf16[32,128], index: 2, kind: input, shape index: {}]
  %s3 = inlined_call_operand.vmem [shape: bf16[32,128], index: 3, kind: output, shape index: {}]
  %s4 = sld [smem:[#allocation0]]
  $region30: #{inv_decoder_forward.16} parent=0
    _
  %s6 = ssub.s32 1, %s4
  %s7 = scalar_select 0, %s6, %s4
  // Predicated region
  $region2: #{inv_decoder_forward.16} parent=0 // pred_check
    _
  $region3: #{inv_decoder_forward.16} parent=0 // pred_check_branch
    %9 = sbr.rel (0) target = $region5
  $region4: #{inv_decoder_forward.16} parent=0 // pred_region
    _
  $region5: #{inv_decoder_forward.16} parent=0 // pred_fallthru
    _
  // Predicated region
  $region6: #{inv_decoder_forward.16} parent=0 // pred_check
    _
  $region7: #{inv_decoder_forward.16} parent=0 // pred_check_branch
    %11 = sbr.rel (0) target = $region9
  $region8: #{inv_decoder_forward.16} parent=0 // pred_region
    _
  $region9: #{inv_decoder_forward.16} parent=0 // pred_fallthru
    _
  // Predicated region
  $region10: #{inv_decoder_forward.16} parent=0 // pred_check
    _
  $region11: #{inv_decoder_forward.16} parent=0 // pred_check_branch
    %13 = sbr.rel (0) target = $region13
  $region12: #{inv_decoder_forward.16} parent=0 // pred_region
    _
  $region13: #{inv_decoder_forward.16} parent=0 // pred_fallthru
    _
  %p15 = scmp.eq.s32.totalorder 0, 0
  // Predicated region
  $region14: #{inv_decoder_forward.16} parent=0 // pred_check
    %p16 = pneg %p15
  $region15: #{inv_decoder_forward.16} parent=0 // pred_check_branch
    %18 = sbr.rel (%p16) target = $region17
  $region16: #{inv_decoder_forward.16} parent=0 // pred_region
    %19 = vst [vmem:[#allocation2] sm:$0xff] 0.0
    %20 = vst [vmem:[#allocation2 + $0x8] sm:$0xff] 0.0
    %21 = vst [vmem:[#allocation2 + $0x10] sm:$0xff] 0.0
    %22 = vst [vmem:[#allocation2 + $0x18] sm:$0xff] 0.0
  $region17: #{inv_decoder_forward.16} parent=0 // pred_fallthru
    _
  %v23 = vld [vmem:[#allocation2] sm:$0xff]
  %v24 = vld [vmem:[#allocation2 + $0x8] sm:$0xff]
  %v25 = vld [vmem:[#allocation2 + $0x10] sm:$0xff]
  %v26 = vld [vmem:[#allocation2 + $0x18] sm:$0xff]
  %v27 = vld [vmem:[%s0] sm:$0xff]
  %v28 = vld [vmem:[%s0 + $0x8] sm:$0xff]
  %v29 = vld [vmem:[%s0 + $0x10] sm:$0xff]
  %v30 = vld [vmem:[%s0 + $0x18] sm:$0xff]
  %v31 = vld [vmem:[%s1] sm:$0xf]
  %v32 = vld [vmem:[%s1 + $0x4] sm:$0xf]
  %v33 = vld [vmem:[%s1 + $0x8] sm:$0xf]
  %v34 = vld [vmem:[%s1 + $0xc] sm:$0xf]
  %v35 = vld [vmem:[%s1 + $0x10] sm:$0xf]
  %v36 = vld [vmem:[%s1 + $0x14] sm:$0xf]
  %v37 = vld [vmem:[%s1 + $0x18] sm:$0xf]
  %v38 = vld [vmem:[%s1 + $0x1c] sm:$0xf]
  %v39 = vld [vmem:[%s1 + $0x20] sm:$0xf]
  %v40 = vld [vmem:[%s1 + $0x24] sm:$0xf]
  %v41 = vld [vmem:[%s1 + $0x28] sm:$0xf]
  %v42 = vld [vmem:[%s1 + $0x2c] sm:$0xf]
  %v43 = vld [vmem:[%s1 + $0x30] sm:$0xf]
  %v44 = vld [vmem:[%s1 + $0x34] sm:$0xf]
  %v45 = vld [vmem:[%s1 + $0x38] sm:$0xf]
  %v46 = vld [vmem:[%s1 + $0x3c] sm:$0xf]
  %v47 = vld [vmem:[%s1 + $0x40] sm:$0xf]
  %v48 = vld [vmem:[%s1 + $0x44] sm:$0xf]
  %v49 = vld [vmem:[%s1 + $0x48] sm:$0xf]
  %v50 = vld [vmem:[%s1 + $0x4c] sm:$0xf]
  %v51 = vld [vmem:[%s1 + $0x50] sm:$0xf]
  %v52 = vld [vmem:[%s1 + $0x54] sm:$0xf]
  %v53 = vld [vmem:[%s1 + $0x58] sm:$0xf]
  %v54 = vld [vmem:[%s1 + $0x5c] sm:$0xf]
  %v55 = vld [vmem:[%s1 + $0x60] sm:$0xf]
  %v56 = vld [vmem:[%s1 + $0x64] sm:$0xf]
  %v57 = vld [vmem:[%s1 + $0x68] sm:$0xf]
  %v58 = vld [vmem:[%s1 + $0x6c] sm:$0xf]
  %v59 = vld [vmem:[%s1 + $0x70] sm:$0xf]
  %v60 = vld [vmem:[%s1 + $0x74] sm:$0xf]
  %v61 = vld [vmem:[%s1 + $0x78] sm:$0xf]
  %v62 = vld [vmem:[%s1 + $0x7c] sm:$0xf]
  %v67 = vunpack.c.l.b16 %v27
  %v68 = vunpack.c.h.b16 %v27
  %v69 = vunpack.c.l.b16 %v28
  %v70 = vunpack.c.h.b16 %v28
  %v71 = vunpack.c.l.b16 %v29
  %v72 = vunpack.c.h.b16 %v29
  %v73 = vunpack.c.l.b16 %v30
  %v74 = vunpack.c.h.b16 %v30
  %v75 = vpack.c.b16 %v69, %v67
  %v76 = vpack.c.b16 %v70, %v68
  %v77 = vpack.c.b16 %v73, %v71
  %v78 = vpack.c.b16 %v74, %v72
  %v115 = vunpack.c.l.b16 %v31
  %v116 = vunpack.c.l.b16 %v32
  %v117 = vunpack.c.l.b16 %v33
  %v118 = vunpack.c.l.b16 %v34
  %v119 = vunpack.c.l.b16 %v35
  %v120 = vunpack.c.l.b16 %v36
  %v121 = vunpack.c.l.b16 %v37
  %v122 = vunpack.c.l.b16 %v38
  %v123 = vunpack.c.l.b16 %v39
  %v124 = vunpack.c.l.b16 %v40
  %v125 = vunpack.c.l.b16 %v41
  %v126 = vunpack.c.l.b16 %v42
  %v127 = vunpack.c.l.b16 %v43
  %v128 = vunpack.c.l.b16 %v44
  %v129 = vunpack.c.l.b16 %v45
  %v130 = vunpack.c.l.b16 %v46
  %v131 = vunpack.c.l.b16 %v47
  %v132 = vunpack.c.l.b16 %v48
  %v133 = vunpack.c.l.b16 %v49
  %v134 = vunpack.c.l.b16 %v50
  %v135 = vunpack.c.l.b16 %v51
  %v136 = vunpack.c.l.b16 %v52
  %v137 = vunpack.c.l.b16 %v53
  %v138 = vunpack.c.l.b16 %v54
  %v139 = vunpack.c.l.b16 %v55
  %v140 = vunpack.c.l.b16 %v56
  %v141 = vunpack.c.l.b16 %v57
  %v142 = vunpack.c.l.b16 %v58
  %v143 = vunpack.c.l.b16 %v59
  %v144 = vunpack.c.l.b16 %v60
  %v145 = vunpack.c.l.b16 %v61
  %v146 = vunpack.c.l.b16 %v62
  %v147 = vpack.c.b16 %v116, %v115
  %v148 = vpack.c.b16 %v118, %v117
  %v149 = vpack.c.b16 %v120, %v119
  %v150 = vpack.c.b16 %v122, %v121
  %v151 = vpack.c.b16 %v124, %v123
  %v152 = vpack.c.b16 %v126, %v125
  %v153 = vpack.c.b16 %v128, %v127
  %v154 = vpack.c.b16 %v130, %v129
  %v155 = vpack.c.b16 %v132, %v131
  %v156 = vpack.c.b16 %v134, %v133
  %v157 = vpack.c.b16 %v136, %v135
  %v158 = vpack.c.b16 %v138, %v137
  %v159 = vpack.c.b16 %v140, %v139
  %v160 = vpack.c.b16 %v142, %v141
  %v161 = vpack.c.b16 %v144, %v143
  %v162 = vpack.c.b16 %v146, %v145
  %179 = vmatprep.subr.bf16.mxu0 0
  %180 = vmatpush1.bf16.msra.mxu0 %v154
  %181 = vmatprep.subr.bf16.mxu0 0
  %182 = vmatpush1.bf16.msra.mxu0 %v153
  %183 = vmatprep.subr.bf16.mxu0 0
  %184 = vmatpush1.bf16.msra.mxu0 %v152
  %185 = vmatprep.subr.bf16.mxu0 0
  %186 = vmatpush1.bf16.msra.mxu0 %v151
  %187 = vmatprep.subr.bf16.mxu0 0
  %188 = vmatpush1.bf16.msra.mxu0 %v150
  %189 = vmatprep.subr.bf16.mxu0 0
  %190 = vmatpush1.bf16.msra.mxu0 %v149
  %191 = vmatprep.subr.bf16.mxu0 0
  %192 = vmatpush1.bf16.msra.mxu0 %v148
  %193 = vmatprep.subr.bf16.mxu0 0
  %194 = vmatpush1.bf16.msra.mxu0 %v147
  %195 = vmatprep.subr.bf16.mxu0 0
  %196 = vmatpush2.bf16.msra.mxu0 %v162
  %197 = vmatprep.subr.bf16.mxu0 0
  %198 = vmatpush2.bf16.msra.mxu0 %v161
  %199 = vmatprep.subr.bf16.mxu0 0
  %200 = vmatpush2.bf16.msra.mxu0 %v160
  %201 = vmatprep.subr.bf16.mxu0 0
  %202 = vmatpush2.bf16.msra.mxu0 %v159
  %203 = vmatprep.subr.bf16.mxu0 0
  %204 = vmatpush2.bf16.msra.mxu0 %v158
  %205 = vmatprep.subr.bf16.mxu0 0
  %206 = vmatpush2.bf16.msra.mxu0 %v157
  %207 = vmatprep.subr.bf16.mxu0 0
  %208 = vmatpush2.bf16.msra.mxu0 %v156
  %209 = vmatprep.subr.bf16.mxu0 0
  %210 = vmatpush2.bf16.msra.mxu0 %v155
  %211 = vmatprep.mubr.bf16.mxu0 %v76
  %212 = vmatmul.mubr.bf16.gmra.mxu0 %v75
  %v213 = vpop.f32.mrf.mxu0
  %v214 = vadd.f32 0.0, %v213
  %v215 = vpop.f32.mrf.mxu0
  %v216 = vpop.f32.mrf.mxu0
  %v217 = vadd.f32 0.0, %v216
  %v218 = vpop.f32.mrf.mxu0
  %219 = vmatprep.mubr.bf16.mxu0 %v78
  %220 = vmatmul.mubr.bf16.gmra.mxu0 %v77
  %v221 = vpop.f32.mrf.mxu0
  %v222 = vadd.f32 0.0, %v221
  %v223 = vpop.f32.mrf.mxu0
  %v224 = vpop.f32.mrf.mxu0
  %v225 = vadd.f32 0.0, %v224
  %v226 = vpop.f32.mrf.mxu0
  %227 = vdwg.mxu0
  %v228 = vadd.f32 %v23, %v214
  %v229 = vadd.f32 %v24, %v217
  %v230 = vadd.f32 %v25, %v222
  %v231 = vadd.f32 %v26, %v225
  %232 = vst [vmem:[#allocation2] sm:$0xff] %v228
  %233 = vst [vmem:[#allocation2 + $0x8] sm:$0xff] %v229
  %234 = vst [vmem:[#allocation2 + $0x10] sm:$0xff] %v230
  %235 = vst [vmem:[#allocation2 + $0x18] sm:$0xff] %v231
  // Predicated region
  $region18: #{inv_decoder_forward.16} parent=0 // pred_check
    %p236 = pneg %p15
  $region19: #{inv_decoder_forward.16} parent=0 // pred_check_branch
    %238 = sbr.rel (%p236) target = $region21
  $region20: #{inv_decoder_forward.16} parent=0 // pred_region
    %v239 = vld [vmem:[#allocation2] sm:$0xff]
    %v240 = vld [vmem:[#allocation2 + $0x8] sm:$0xff]
    %v241 = vld [vmem:[#allocation2 + $0x10] sm:$0xff]
    %v242 = vld [vmem:[#allocation2 + $0x18] sm:$0xff]
    %v243 = vld [vmem:[%s2] sm:$0xf]
    %v244 = vld [vmem:[%s2 + $0x4] sm:$0xf]
    %v245 = vld [vmem:[%s2 + $0x8] sm:$0xf]
    %v246 = vld [vmem:[%s2 + $0xc] sm:$0xf]
    %v247 = vunpack.c.l.bf16 %v243
    %v248 = vunpack.c.l.bf16 %v244
    %v249 = vunpack.c.l.bf16 %v245
    %v250 = vunpack.c.l.bf16 %v246
    %v251 = vadd.f32 %v239, %v247
    %v252 = vadd.f32 %v240, %v248
    %v253 = vadd.f32 %v241, %v249
    %v254 = vadd.f32 %v242, %v250
    %v255 = vpack.c.bf16 %v252, %v251
    %v256 = vpack.c.bf16 %v254, %v253
    %v259 = vunpack.c.l.b16 %v255
    %v260 = vunpack.c.h.b16 %v255
    %v261 = vunpack.c.l.b16 %v256
    %v262 = vunpack.c.h.b16 %v256
    %v263 = vpack.c.b16 %v259, %v259
    %v264 = vpack.c.b16 %v260, %v260
    %v265 = vpack.c.b16 %v261, %v261
    %v266 = vpack.c.b16 %v262, %v262
    %271 = vst [vmem:[%s3] sm:$0xf] %v263
    %272 = vst [vmem:[%s3 + $0x4] sm:$0xf] %v264
    %273 = vst [vmem:[%s3 + $0x8] sm:$0xf] %v265
    %274 = vst [vmem:[%s3 + $0xc] sm:$0xf] %v266
  $region21: #{inv_decoder_forward.16} parent=0 // pred_fallthru
    _
  // Predicated region
  $region22: #{inv_decoder_forward.16} parent=0 // pred_check
    _
  $region23: #{inv_decoder_forward.16} parent=0 // pred_check_branch
    %276 = sbr.rel (0) target = $region25
  $region24: #{inv_decoder_forward.16} parent=0 // pred_region
    _
  $region25: #{inv_decoder_forward.16} parent=0 // pred_fallthru
    _
  // Predicated region
  $region26: #{inv_decoder_forward.16} parent=0 // pred_check
    _
  $region27: #{inv_decoder_forward.16} parent=0 // pred_check_branch
    %278 = sbr.rel (0) target = $region29
  $region28: #{inv_decoder_forward.16} parent=0 // pred_region
    _
  $region29: #{inv_decoder_forward.16} parent=0 // pred_fallthru
    _

// kernel: inv_decoder_forward.22
$region0: #{inv_decoder_forward.22}
  #allocation0 [shape = 'u32[]', space=smem, size = 0x4, offset = 0x4, fixed_abs, tag = 'smem constant byte address 0x4 - core index']
  #allocation1 [shape = 'u32[144,128]{1,0:T(1,128)}', space=vmem, size = 0x12000, scoped, tag = 'internal scratch']
  %s0 = inlined_call_operand.vmem [shape: bf16[32,128], index: 0, kind: input, shape index: {}]
  %s1 = inlined_call_operand.vmem [shape: f32[1,128], index: 1, kind: input, shape index: {}]
  %s2 = inlined_call_operand.vmem [shape: bf16[128,256], index: 2, kind: input, shape index: {}]
  %s3 = inlined_call_operand.vmem [shape: f32[32,256], index: 3, kind: output, shape index: {}]
  %s4 = sld [smem:[#allocation0]]
  $region22: #{inv_decoder_forward.22} parent=0
    _
  %s6 = ssub.s32 1, %s4
  %s7 = scalar_select 0, %s6, %s4
  // Predicated region
  $region2: #{inv_decoder_forward.22} parent=0 // pred_check
    _
  $region3: #{inv_decoder_forward.22} parent=0 // pred_check_branch
    %9 = sbr.rel (0) target = $region5
  $region4: #{inv_decoder_forward.22} parent=0 // pred_region
    _
  $region5: #{inv_decoder_forward.22} parent=0 // pred_fallthru
    _
  // Predicated region
  $region6: #{inv_decoder_forward.22} parent=0 // pred_check
    _
  $region7: #{inv_decoder_forward.22} parent=0 // pred_check_branch
    %11 = sbr.rel (0) target = $region9
  $region8: #{inv_decoder_forward.22} parent=0 // pred_region
    _
  $region9: #{inv_decoder_forward.22} parent=0 // pred_fallthru
    _
  // Predicated region
  $region10: #{inv_decoder_forward.22} parent=0 // pred_check
    _
  $region11: #{inv_decoder_forward.22} parent=0 // pred_check_branch
    %13 = sbr.rel (0) target = $region13
  $region12: #{inv_decoder_forward.22} parent=0 // pred_region
    _
  $region13: #{inv_decoder_forward.22} parent=0 // pred_fallthru
    _
  %v15 = vld [vmem:[%s0] sm:$0xf]
  %v16 = vld [vmem:[%s0 + $0x4] sm:$0xf]
  %v17 = vld [vmem:[%s0 + $0x8] sm:$0xf]
  %v18 = vld [vmem:[%s0 + $0xc] sm:$0xf]
  %v19 = vunpack.c.l.bf16 %v15
  %v20 = vunpack.c.l.bf16 %v16
  %v21 = vunpack.c.l.bf16 %v17
  %v22 = vunpack.c.l.bf16 %v18
  %v23 = vmul.f32 %v19, %v19
  %v24 = vmul.f32 %v20, %v20
  %v25 = vmul.f32 %v21, %v21
  %v26 = vmul.f32 %v22, %v22
  %27 = vadd.xlane.f32.xlu0 %v23
  %v28 = vpop.xlane.xlu0 %27
  %29 = vadd.xlane.f32.xlu0 %v24
  %v30 = vpop.xlane.xlu0 %29
  %31 = vadd.xlane.f32.xlu0 %v25
  %v32 = vpop.xlane.xlu0 %31
  %33 = vadd.xlane.f32.xlu0 %v26
  %v34 = vpop.xlane.xlu0 %33
  %v35 = vrcp.pop 128.0
  %v36 = vmul.f32 %v28, %v35
  %v37 = vmul.f32 %v30, %v35
  %v38 = vmul.f32 %v32, %v35
  %v39 = vmul.f32 %v34, %v35
  %v40 = vadd.f32 %v36, 1e-06
  %v41 = vadd.f32 %v37, 1e-06
  %v42 = vadd.f32 %v38, 1e-06
  %v43 = vadd.f32 %v39, 1e-06
  %v44 = vrsqrt.pop %v40
  %v45 = vrsqrt.pop %v41
  %v46 = vrsqrt.pop %v42
  %v47 = vrsqrt.pop %v43
  %v48 = vmul.f32 %v19, %v44
  %v49 = vmul.f32 %v20, %v45
  %v50 = vmul.f32 %v21, %v46
  %v51 = vmul.f32 %v22, %v47
  %v52 = vld [vmem:[%s1] sm:$0x1]
  %v54 = vlaneseq
  %v55 = vshrl.u32 %v54, 7
  %v56 = vsub.s32 0, %v55
  %v57 = vrot.slane %v52, %v56
  %v59 = vmul.f32 %v48, %v57
  %v60 = vmul.f32 %v49, %v57
  %v61 = vmul.f32 %v50, %v57
  %v62 = vmul.f32 %v51, %v57
  %v63 = vpack.c.bf16 %v60, %v59
  %v64 = vpack.c.bf16 %v62, %v61
  %v65 = vld [vmem:[%s2] sm:$0xff]
  %v66 = vld [vmem:[%s2 + $0x8] sm:$0xff]
  %v67 = vld [vmem:[%s2 + $0x10] sm:$0xff]
  %v68 = vld [vmem:[%s2 + $0x18] sm:$0xff]
  %v69 = vld [vmem:[%s2 + $0x20] sm:$0xff]
  %v70 = vld [vmem:[%s2 + $0x28] sm:$0xff]
  %v71 = vld [vmem:[%s2 + $0x30] sm:$0xff]
  %v72 = vld [vmem:[%s2 + $0x38] sm:$0xff]
  %v73 = vld [vmem:[%s2 + $0x40] sm:$0xff]
  %v74 = vld [vmem:[%s2 + $0x48] sm:$0xff]
  %v75 = vld [vmem:[%s2 + $0x50] sm:$0xff]
  %v76 = vld [vmem:[%s2 + $0x58] sm:$0xff]
  %v77 = vld [vmem:[%s2 + $0x60] sm:$0xff]
  %v78 = vld [vmem:[%s2 + $0x68] sm:$0xff]
  %v79 = vld [vmem:[%s2 + $0x70] sm:$0xff]
  %v80 = vld [vmem:[%s2 + $0x78] sm:$0xff]
  %v97 = vunpack.c.l.b16 %v65
  %v98 = vunpack.c.h.b16 %v65
  %v99 = vunpack.c.l.b16 %v66
  %v100 = vunpack.c.h.b16 %v66
  %v101 = vunpack.c.l.b16 %v67
  %v102 = vunpack.c.h.b16 %v67
  %v103 = vunpack.c.l.b16 %v68
  %v104 = vunpack.c.h.b16 %v68
  %v105 = vunpack.c.l.b16 %v69
  %v106 = vunpack.c.h.b16 %v69
  %v107 = vunpack.c.l.b16 %v70
  %v108 = vunpack.c.h.b16 %v70
  %v109 = vunpack.c.l.b16 %v71
  %v110 = vunpack.c.h.b16 %v71
  %v111 = vunpack.c.l.b16 %v72
  %v112 = vunpack.c.h.b16 %v72
  %v113 = vunpack.c.l.b16 %v73
  %v114 = vunpack.c.h.b16 %v73
  %v115 = vunpack.c.l.b16 %v74
  %v116 = vunpack.c.h.b16 %v74
  %v117 = vunpack.c.l.b16 %v75
  %v118 = vunpack.c.h.b16 %v75
  %v119 = vunpack.c.l.b16 %v76
  %v120 = vunpack.c.h.b16 %v76
  %v121 = vunpack.c.l.b16 %v77
  %v122 = vunpack.c.h.b16 %v77
  %v123 = vunpack.c.l.b16 %v78
  %v124 = vunpack.c.h.b16 %v78
  %v125 = vunpack.c.l.b16 %v79
  %v126 = vunpack.c.h.b16 %v79
  %v127 = vunpack.c.l.b16 %v80
  %v128 = vunpack.c.h.b16 %v80
  %v129 = vpack.c.b16 %v99, %v97
  %v130 = vpack.c.b16 %v100, %v98
  %v131 = vpack.c.b16 %v103, %v101
  %v132 = vpack.c.b16 %v104, %v102
  %v133 = vpack.c.b16 %v107, %v105
  %v134 = vpack.c.b16 %v108, %v106
  %v135 = vpack.c.b16 %v111, %v109
  %v136 = vpack.c.b16 %v112, %v110
  %v137 = vpack.c.b16 %v115, %v113
  %v138 = vpack.c.b16 %v116, %v114
  %v139 = vpack.c.b16 %v119, %v117
  %v140 = vpack.c.b16 %v120, %v118
  %v141 = vpack.c.b16 %v123, %v121
  %v142 = vpack.c.b16 %v124, %v122
  %v143 = vpack.c.b16 %v127, %v125
  %v144 = vpack.c.b16 %v128, %v126
  %161 = vmatprep.subr.bf16.mxu0 %v144
  %162 = vmatpush1.bf16.msra.mxu0 %v143
  %163 = vmatprep.subr.bf16.mxu0 %v142
  %164 = vmatpush1.bf16.msra.mxu0 %v141
  %165 = vmatprep.subr.bf16.mxu0 %v140
  %166 = vmatpush1.bf16.msra.mxu0 %v139
  %167 = vmatprep.subr.bf16.mxu0 %v138
  %168 = vmatpush1.bf16.msra.mxu0 %v137
  %169 = vmatprep.subr.bf16.mxu0 %v136
  %170 = vmatpush1.bf16.msra.mxu0 %v135
  %171 = vmatprep.subr.bf16.mxu0 %v134
  %172 = vmatpush1.bf16.msra.mxu0 %v133
  %173 = vmatprep.subr.bf16.mxu0 %v132
  %174 = vmatpush1.bf16.msra.mxu0 %v131
  %175 = vmatprep.subr.bf16.mxu0 %v130
  %176 = vmatpush1.bf16.msra.mxu0 %v129
  %177 = vmatprep.subr.bf16.mxu0 0
  %178 = vmatpush2.bf16.msra.mxu0 0
  %179 = vmatprep.subr.bf16.mxu0 0
  %180 = vmatpush2.bf16.msra.mxu0 0
  %181 = vmatprep.subr.bf16.mxu0 0
  %182 = vmatpush2.bf16.msra.mxu0 0
  %183 = vmatprep.subr.bf16.mxu0 0
  %184 = vmatpush2.bf16.msra.mxu0 0
  %185 = vmatprep.subr.bf16.mxu0 0
  %186 = vmatpush2.bf16.msra.mxu0 0
  %187 = vmatprep.subr.bf16.mxu0 0
  %188 = vmatpush2.bf16.msra.mxu0 0
  %189 = vmatprep.subr.bf16.mxu0 0
  %190 = vmatpush2.bf16.msra.mxu0 0
  %191 = vmatprep.subr.bf16.mxu0 0
  %192 = vmatpush2.bf16.msra.mxu0 0
  %193 = vmatprep.mubr.bf16.mxu0 0
  %194 = vmatmul.mubr.bf16.gmra.mxu0 %v63
  %v195 = vpop.f32.mrf.mxu0
  %v196 = vadd.f32 0.0, %v195
  %v197 = vpop.f32.mrf.mxu0
  %v198 = vadd.f32 0.0, %v197
  %v199 = vpop.f32.mrf.mxu0
  %v200 = vadd.f32 0.0, %v199
  %v201 = vpop.f32.mrf.mxu0
  %v202 = vadd.f32 0.0, %v201
  %203 = vmatprep.mubr.bf16.mxu0 0
  %204 = vmatmul.mubr.bf16.gmra.mxu0 %v64
  %v205 = vpop.f32.mrf.mxu0
  %v206 = vadd.f32 0.0, %v205
  %v207 = vpop.f32.mrf.mxu0
  %v208 = vadd.f32 0.0, %v207
  %v209 = vpop.f32.mrf.mxu0
  %v210 = vadd.f32 0.0, %v209
  %v211 = vpop.f32.mrf.mxu0
  %v212 = vadd.f32 0.0, %v211
  %213 = vdwg.mxu0
  %214 = vst [vmem:[%s3] sm:$0xff] %v196
  %215 = vst [vmem:[%s3 + $0x8] sm:$0xff] %v198
  %216 = vst [vmem:[%s3 + $0x10] sm:$0xff] %v200
  %217 = vst [vmem:[%s3 + $0x18] sm:$0xff] %v202
  %218 = vst [vmem:[%s3 + $0x20] sm:$0xff] %v206
  %219 = vst [vmem:[%s3 + $0x28] sm:$0xff] %v208
  %220 = vst [vmem:[%s3 + $0x30] sm:$0xff] %v210
  %221 = vst [vmem:[%s3 + $0x38] sm:$0xff] %v212
  // Predicated region
  $region14: #{inv_decoder_forward.22} parent=0 // pred_check
    _
  $region15: #{inv_decoder_forward.22} parent=0 // pred_check_branch
    %223 = sbr.rel (0) target = $region17
  $region16: #{inv_decoder_forward.22} parent=0 // pred_region
    _
  $region17: #{inv_decoder_forward.22} parent=0 // pred_fallthru
    _
  // Predicated region
  $region18: #{inv_decoder_forward.22} parent=0 // pred_check
    _
  $region19: #{inv_decoder_forward.22} parent=0 // pred_check_branch
    %225 = sbr.rel (0) target = $region21
  $region20: #{inv_decoder_forward.22} parent=0 // pred_region
    _
  $region21: #{inv_decoder_forward.22} parent=0 // pred_fallthru
    _

// kernel: inv_decoder_forward.23
$region0: #{inv_decoder_forward.23}
  #allocation0 [shape = 'u32[]', space=smem, size = 0x4, offset = 0x4, fixed_abs, tag = 'smem constant byte address 0x4 - core index']
  #allocation1 [shape = 'u32[144,128]{1,0:T(1,128)}', space=vmem, size = 0x12000, scoped, tag = 'internal scratch']
  %s0 = inlined_call_operand.vmem [shape: f32[30,256], index: 0, kind: input, shape index: {}]
  %s1 = inlined_call_operand.vmem [shape: s32[30,1], index: 1, kind: input, shape index: {}]
  %s2 = inlined_call_operand.hbm [shape: f32[1,1], index: 2, kind: output, shape index: {0}]
  %s3 = inlined_call_operand.hbm [shape: f32[1,1], index: 3, kind: output, shape index: {1}]
  %4 = xla_tuple %s2, %s3
  %s5 = sld [smem:[#allocation0]]
  $region30: #{inv_decoder_forward.23} parent=0
    _
  %s7 = ssub.s32 1, %s5
  %s8 = scalar_select 0, %s7, %s5
  $region1: #{inv_decoder_forward.23} parent=0
    #allocation2 [shape = 'u8[512]{0}', space=vmem, size = 0x400, scoped, tag = 'output window, operand 0, single buffered']
    #allocation3 [shape = 's32[1]{0}', space=sflag, size = 0x4, scoped, tag = 'scoped memory for inv_decoder_forward.23']
    #allocation4 [shape = 'u8[512]{0}', space=vmem, size = 0x400, scoped, tag = 'output window, operand 1, single buffered']
    #allocation5 [shape = 's32[1]{0}', space=sflag, size = 0x4, scoped, tag = 'scoped memory for inv_decoder_forward.23']
    %9 = vsyncpa [#allocation3], 0
    %10 = vsyncpa [#allocation5], 0
    // Predicated region
    $region2: #{inv_decoder_forward.23} parent=1 // pred_check
      _
    $region3: #{inv_decoder_forward.23} parent=1 // pred_check_branch
      %12 = sbr.rel (0) target = $region5
    $region4: #{inv_decoder_forward.23} parent=1 // pred_region
      _
    $region5: #{inv_decoder_forward.23} parent=1 // pred_fallthru
      _
    // Predicated region
    $region6: #{inv_decoder_forward.23} parent=1 // pred_check
      _
    $region7: #{inv_decoder_forward.23} parent=1 // pred_check_branch
      %14 = sbr.rel (0) target = $region9
    $region8: #{inv_decoder_forward.23} parent=1 // pred_region
      _
    $region9: #{inv_decoder_forward.23} parent=1 // pred_fallthru
      _
    %p15 = scmp.eq.s32.totalorder 0, 0
    // Predicated region
    $region10: #{inv_decoder_forward.23} parent=1 // pred_check
      %p16 = pneg %p15
    $region11: #{inv_decoder_forward.23} parent=1 // pred_check_branch
      %18 = sbr.rel (%p16) target = $region13
    $region12: #{inv_decoder_forward.23} parent=1 // pred_region
      %vm19 = vcmask 0
      %20 = vst.msk [vmem:[#allocation2] sm:$0x1] %vm19, 0.0
      %21 = vst.msk [vmem:[#allocation4] sm:$0x1] %vm19, 0.0
    $region13: #{inv_decoder_forward.23} parent=1 // pred_fallthru
      _
    %v22 = vld [vmem:[%s0] sm:$0xff]
    %v23 = vld [vmem:[%s0 + $0x8] sm:$0xff]
    %v24 = vld [vmem:[%s0 + $0x10] sm:$0xff]
    %v25 = vld [vmem:[%s0 + $0x18] sm:$0xff]
    %v26 = vld [vmem:[%s0 + $0x20] sm:$0xff]
    %v27 = vld [vmem:[%s0 + $0x28] sm:$0xff]
    %v28 = vld [vmem:[%s0 + $0x30] sm:$0x3f]
    %v29 = vld [vmem:[%s0 + $0x38] sm:$0x3f]
    %v30 = vld [vmem:[%s1] sm:$0xff]
    %v31 = vld [vmem:[%s1 + $0x8] sm:$0xff]
    %v32 = vld [vmem:[%s1 + $0x10] sm:$0xff]
    %v33 = vld [vmem:[%s1 + $0x18] sm:$0x3f]
    %v34 = vmax.f32 %v22, %v23
    %35 = vmax.xlane.f32.xlu0 %v34
    %v36 = vpop.xlane.xlu0 %35
    %v37 = vmax.f32 %v24, %v25
    %38 = vmax.xlane.f32.xlu0 %v37
    %v39 = vpop.xlane.xlu0 %38
    %v40 = vmax.f32 %v26, %v27
    %41 = vmax.xlane.f32.xlu0 %v40
    %v42 = vpop.xlane.xlu0 %41
    %vm43 = vcmask 1045504
    %v44 = vsel %vm43, %v28, -inf
    %v45 = vsel %vm43, %v29, -inf
    %v46 = vmax.f32 %v44, %v45
    %47 = vmax.xlane.f32.xlu0 %v46
    %v48 = vpop.xlane.xlu0 %47
    %v49 = vsub.f32 %v22, %v36
    %v50 = vsub.f32 %v23, %v36
    %v51 = vsub.f32 %v24, %v39
    %v52 = vsub.f32 %v25, %v39
    %v53 = vsub.f32 %v26, %v42
    %v54 = vsub.f32 %v27, %v42
    %v55 = vsub.f32 %v28, %v48
    %v56 = vsub.f32 %v29, %v48
    %v57 = vmul.f32 %v49, 1.442695
    %v58 = vpow.pop %v57
    %v59 = vmul.f32 %v50, 1.442695
    %v60 = vpow.pop %v59
    %v61 = vmul.f32 %v51, 1.442695
    %v62 = vpow.pop %v61
    %v63 = vmul.f32 %v52, 1.442695
    %v64 = vpow.pop %v63
    %v65 = vmul.f32 %v53, 1.442695
    %v66 = vpow.pop %v65
    %v67 = vmul.f32 %v54, 1.442695
    %v68 = vpow.pop %v67
    %v69 = vmul.f32 %v55, 1.442695
    %v70 = vpow.pop %v69
    %v71 = vmul.f32 %v56, 1.442695
    %v72 = vpow.pop %v71
    %v73 = vadd.f32 %v58, %v60
    %74 = vadd.xlane.f32.xlu0 %v73
    %v75 = vpop.xlane.xlu0 %74
    %v76 = vadd.f32 %v62, %v64
    %77 = vadd.xlane.f32.xlu0 %v76
    %v78 = vpop.xlane.xlu0 %77
    %v79 = vadd.f32 %v66, %v68
    %80 = vadd.xlane.f32.xlu0 %v79
    %v81 = vpop.xlane.xlu0 %80
    %v82 = vsel %vm43, %v70, 0.0
    %v83 = vsel %vm43, %v72, 0.0
    %v84 = vadd.f32 %v82, %v83
    %85 = vadd.xlane.f32.xlu0 %v84
    %v86 = vpop.xlane.xlu0 %85
    %v87 = vlog2.pop %v75
    %v88 = vmul.f32 %v87, 0.6931472
    %v89 = vlog2.pop %v78
    %v90 = vmul.f32 %v89, 0.6931472
    %v91 = vlog2.pop %v81
    %v92 = vmul.f32 %v91, 0.6931472
    %v93 = vlog2.pop %v86
    %v94 = vmul.f32 %v93, 0.6931472
    %v95 = vadd.f32 %v88, %v36
    %v96 = vadd.f32 %v90, %v39
    %v97 = vadd.f32 %v92, %v42
    %v98 = vadd.f32 %v94, %v48
    %v99 = vlaneseq
    %v100 = vand.u32 %v99, 127
    %v101 = vadd.s32 %v100, 128
    %102 = vset.pattern.permute.xlu0 0
    %103 = vperm.xlu0 %102, %v30
    %v104 = vpop.permute.xlu0 %103
    %105 = vset.pattern.permute.xlu0 0
    %106 = vperm.xlu0 %105, %v31
    %v107 = vpop.permute.xlu0 %106
    %108 = vset.pattern.permute.xlu0 0
    %109 = vperm.xlu0 %108, %v32
    %v110 = vpop.permute.xlu0 %109
    %111 = vset.pattern.permute.xlu0 0
    %112 = vperm.xlu0 %111, %v33
    %v113 = vpop.permute.xlu0 %112
    %vm114 = vcmp.eq.s32.totalorder %v100, %v104
    %vm115 = vcmp.eq.s32.totalorder %v101, %v104
    %vm116 = vcmp.eq.s32.totalorder %v100, %v107
    %vm117 = vcmp.eq.s32.totalorder %v101, %v107
    %vm118 = vcmp.eq.s32.totalorder %v100, %v110
    %vm119 = vcmp.eq.s32.totalorder %v101, %v110
    %vm120 = vcmp.eq.s32.totalorder %v100, %v113
    %vm121 = vcmp.eq.s32.totalorder %v101, %v113
    %v122 = vsel %vm114, %v22, 0.0
    %v123 = vsel %vm115, %v23, 0.0
    %v124 = vsel %vm116, %v24, 0.0
    %v125 = vsel %vm117, %v25, 0.0
    %v126 = vsel %vm118, %v26, 0.0
    %v127 = vsel %vm119, %v27, 0.0
    %v128 = vsel %vm120, %v28, 0.0
    %v129 = vsel %vm121, %v29, 0.0
    %v130 = vadd.f32 %v122, %v123
    %131 = vadd.xlane.f32.xlu0 %v130
    %v132 = vpop.xlane.xlu0 %131
    %v133 = vadd.f32 %v124, %v125
    %134 = vadd.xlane.f32.xlu0 %v133
    %v135 = vpop.xlane.xlu0 %134
    %v136 = vadd.f32 %v126, %v127
    %137 = vadd.xlane.f32.xlu0 %v136
    %v138 = vpop.xlane.xlu0 %137
    %v139 = vsel %vm43, %v128, 0.0
    %v140 = vsel %vm43, %v129, 0.0
    %v141 = vadd.f32 %v139, %v140
    %142 = vadd.xlane.f32.xlu0 %v141
    %v143 = vpop.xlane.xlu0 %142
    %vm144 = vcmp.ne.s32.totalorder %v30, 4294967196
    %vm145 = vcmp.ne.s32.totalorder %v31, 4294967196
    %vm146 = vcmp.ne.s32.totalorder %v32, 4294967196
    %vm147 = vcmp.ne.s32.totalorder %v33, 4294967196
    %v148 = vsel %vm144, 1, 0
    %v149 = vsel %vm145, 1, 0
    %v150 = vsel %vm146, 1, 0
    %v151 = vsel %vm147, 1, 0
    %v152 = vcvt.s32.f32 %v148
    %v153 = vcvt.s32.f32 %v149
    %v154 = vcvt.s32.f32 %v150
    %v155 = vcvt.s32.f32 %v151
    %v156 = vsub.f32 %v95, %v132
    %v157 = vsub.f32 %v96, %v135
    %v158 = vsub.f32 %v97, %v138
    %v159 = vsub.f32 %v98, %v143
    %v160 = vmul.f32 %v156, %v152
    %v161 = vmul.f32 %v157, %v153
    %v162 = vmul.f32 %v158, %v154
    %v163 = vmul.f32 %v159, %v155
    %v164 = vld [vmem:[#allocation2] sm:$0x1]
    %vm165 = vcmask 7168
    %v166 = vsel %vm165, %v160, 0.0
    %v167 = vsel %vm165, %v161, 0.0
    %v168 = vadd.f32 %v166, %v167
    %v169 = vsel %vm165, %v162, 0.0
    %v170 = vadd.f32 %v168, %v169
    %vm171 = vcmask 5120
    %v172 = vsel %vm171, %v163, 0.0
    %v173 = vadd.f32 %v170, %v172
    %v174 = vrot.slane %v173, 4
    %v175 = vadd.f32 %v173, %v174
    %v176 = vrot.slane %v175, 2
    %v177 = vadd.f32 %v175, %v176
    %v178 = vrot.slane %v177, 1
    %v179 = vadd.f32 %v177, %v178
    %v180 = vadd.f32 %v164, %v179
    %vm181 = vcmask 0
    %182 = vst.msk [vmem:[#allocation2] sm:$0x1] %vm181, %v180
    %v183 = vld [vmem:[#allocation4] sm:$0x1]
    %v184 = vsel %vm165, %v152, 0.0
    %v185 = vsel %vm165, %v153, 0.0
    %v186 = vadd.f32 %v184, %v185
    %v187 = vsel %vm165, %v154, 0.0
    %v188 = vadd.f32 %v186, %v187
    %v189 = vsel %vm171, %v155, 0.0
    %v190 = vadd.f32 %v188, %v189
    %v191 = vrot.slane %v190, 4
    %v192 = vadd.f32 %v190, %v191
    %v193 = vrot.slane %v192, 2
    %v194 = vadd.f32 %v192, %v193
    %v195 = vrot.slane %v194, 1
    %v196 = vadd.f32 %v194, %v195
    %v197 = vadd.f32 %v183, %v196
    %198 = vst.msk [vmem:[#allocation4] sm:$0x1] %vm181, %v197
    // Predicated region
    $region14: #{inv_decoder_forward.23} parent=1 // pred_check
      _
    $region15: #{inv_decoder_forward.23} parent=1 // pred_check_branch
      %200 = sbr.rel (0) target = $region17
    $region16: #{inv_decoder_forward.23} parent=1 // pred_region
      %s202 = ssub.s32 16, 16
      %203 = vsyncadd [#allocation3], %s202
      %s205 = sshll.u32 [#allocation2], 4
      %s206 = int_to_ptr.vmem [resolvable:$true] %s205
      %208 = dma.vmem_to_hbm [thread:$0]  %s206, 16, %s2, [#allocation3]
    $region17: #{inv_decoder_forward.23} parent=1 // pred_fallthru
      _
    // Predicated region
    $region18: #{inv_decoder_forward.23} parent=1 // pred_check
      _
    $region19: #{inv_decoder_forward.23} parent=1 // pred_check_branch
      %210 = sbr.rel (0) target = $region21
    $region20: #{inv_decoder_forward.23} parent=1 // pred_region
      %s212 = ssub.s32 16, 16
      %213 = vsyncadd [#allocation5], %s212
      %s215 = sshll.u32 [#allocation4], 4
      %s216 = int_to_ptr.vmem [resolvable:$true] %s215
      %218 = dma.vmem_to_hbm [thread:$0]  %s216, 16, %s3, [#allocation5]
    $region21: #{inv_decoder_forward.23} parent=1 // pred_fallthru
      _
    // Predicated region
    $region22: #{inv_decoder_forward.23} parent=1 // pred_check
      _
    $region23: #{inv_decoder_forward.23} parent=1 // pred_check_branch
      %220 = sbr.rel (0) target = $region25
    $region24: #{inv_decoder_forward.23} parent=1 // pred_region
      %221 = dma.done [#allocation3], 16
    $region25: #{inv_decoder_forward.23} parent=1 // pred_fallthru
      _
    // Predicated region
    $region26: #{inv_decoder_forward.23} parent=1 // pred_check
      _
    $region27: #{inv_decoder_forward.23} parent=1 // pred_check_branch
      %223 = sbr.rel (0) target = $region29
    $region28: #{inv_decoder_forward.23} parent=1 // pred_region
      %224 = dma.done [#allocation5], 16
    $region29: #{inv_decoder_forward.23} parent=1 // pred_fallthru
      _
    %225 = vsyncpa [#allocation3], 1
    %226 = vsyncpa [#allocation5], 1

</llo_original>
